<compile_context>
chip_gen: v7x
topology: tpu7x:2x2x1
jax: 0.10.0
libtpu: 0.0.40
codegen_flags: <defaults>
</compile_context>

<pallas_src>
import functools

import jax
import jax.numpy as jnp
from jax.experimental import pallas as pl
from jax.experimental.pallas import tpu as pltpu

INPUT_DIM = 784          # 1 * 28 * 28
NUM_CATEGORIES = 10
LATENT_DIM = 15
H1, H2, H3 = 350, 175, 80

# hardware-friendly padded widths (zero padding is a mathematical no-op here)
H1P, H2P, H3P = 384, 192, 128
LATP = 128               # padded latent width (mean/logvar each occupy 128 lanes)
DEFAULT_BATCH_TILE = 512


def _round_up(x, m):
    return (x + m - 1) // m * m


def cvae_forward_kernel(
    x_ref, eps_ref, encb_ref, decb_ref,
    w1_ref,
    w2_ref, b2_ref,
    w3_ref, b3_ref,
    wmv_ref, bmv_ref,
    wd1_ref,
    wd2_ref, bd2_ref,
    wd3_ref, bd3_ref,
    wd4_ref, bd4_ref,
    recon_ref, mv_ref,
):
    f32 = jnp.float32
    bf16 = jnp.bfloat16

    x = x_ref[...]                                            # (TB, 784) bf16

    # encoder layer 1: per-row bias already contains cond @ W1c + b1
    h = jnp.dot(x, w1_ref[...], preferred_element_type=f32) + encb_ref[...]
    h = jnp.maximum(h, 0.0).astype(bf16)
    h = jnp.maximum(
        jnp.dot(h, w2_ref[...], preferred_element_type=f32) + b2_ref[...], 0.0
    ).astype(bf16)
    h = jnp.maximum(
        jnp.dot(h, w3_ref[...], preferred_element_type=f32) + b3_ref[...], 0.0
    ).astype(bf16)

    # fused mean/logvar heads: lanes [0:128) = mean, [128:256) = logvar (padded)
    mv = jnp.dot(h, wmv_ref[...], preferred_element_type=f32) + bmv_ref[...]
    mean = mv[:, :LATP]
    logvar = mv[:, LATP:]

    # reparameterization: z = eps * exp(0.5 * logvar) + mean   (padded lanes = 0)
    z = (eps_ref[...] * jnp.exp(0.5 * logvar) + mean).astype(bf16)

    # decoder layer 1: per-row bias already contains cond @ Wd1c + bd1
    d = jnp.maximum(
        jnp.dot(z, wd1_ref[...], preferred_element_type=f32) + decb_ref[...], 0.0
    ).astype(bf16)
    d = jnp.maximum(
        jnp.dot(d, wd2_ref[...], preferred_element_type=f32) + bd2_ref[...], 0.0
    ).astype(bf16)
    d = jnp.maximum(
        jnp.dot(d, wd3_ref[...], preferred_element_type=f32) + bd3_ref[...], 0.0
    ).astype(bf16)
    logits = jnp.dot(d, wd4_ref[...], preferred_element_type=f32) + bd4_ref[...]

    recon_ref[...] = jax.nn.sigmoid(logits)
    mv_ref[...] = mv


# ----------------------------------------------------------------------------
# parameter construction (PyTorch nn.Linear-style init, kept in "math" layout)
# ----------------------------------------------------------------------------
def init_linear(key, in_dim, out_dim):
    kw, kb = jax.random.split(key)
    bound = 1.0 / jnp.sqrt(jnp.float32(in_dim))
    w = jax.random.uniform(kw, (in_dim, out_dim), jnp.float32, -bound, bound)
    b = jax.random.uniform(kb, (1, out_dim), jnp.float32, -bound, bound)
    return w, b


def init_params(key):
    keys = jax.random.split(key, 9)
    params = {}
    w1, b1 = init_linear(keys[0], INPUT_DIM + NUM_CATEGORIES, H1)
    params["w1x"], params["w1c"], params["b1"] = w1[:INPUT_DIM], w1[INPUT_DIM:], b1
    params["w2"], params["b2"] = init_linear(keys[1], H1, H2)
    params["w3"], params["b3"] = init_linear(keys[2], H2, H3)
    params["wm"], params["bm"] = init_linear(keys[3], H3, LATENT_DIM)
    params["wv"], params["bv"] = init_linear(keys[4], H3, LATENT_DIM)
    wd1, bd1 = init_linear(keys[5], LATENT_DIM + NUM_CATEGORIES, H3)
    params["wd1z"], params["wd1c"], params["bd1"] = wd1[:LATENT_DIM], wd1[LATENT_DIM:], bd1
    params["wd2"], params["bd2"] = init_linear(keys[6], H3, H2)
    params["wd3"], params["bd3"] = init_linear(keys[7], H2, H1)
    params["wd4"], params["bd4"] = init_linear(keys[8], H1, INPUT_DIM)
    return params


def prepare_kernel_params(params):
    """Zero-pad to hardware-friendly sizes, fuse mean/logvar heads, cast to bf16."""
    bf16 = jnp.bfloat16

    def pad_w(w, ip, op):
        return jnp.zeros((ip, op), jnp.float32).at[: w.shape[0], : w.shape[1]].set(w)

    def pad_b(b, op):
        return jnp.zeros((1, op), jnp.float32).at[:, : b.shape[1]].set(b)

    kp = {}
    # encoder
    kp["w1x"] = pad_w(params["w1x"], INPUT_DIM, H1P).astype(bf16)
    kp["w1c"] = pad_w(params["w1c"], NUM_CATEGORIES, H1P)          # f32, used in XLA prologue
    kp["b1"] = pad_b(params["b1"], H1P)                            # f32, folded into enc bias
    kp["w2"] = pad_w(params["w2"], H1P, H2P).astype(bf16)
    kp["b2"] = pad_b(params["b2"], H2P)
    kp["w3"] = pad_w(params["w3"], H2P, H3P).astype(bf16)
    kp["b3"] = pad_b(params["b3"], H3P)
    # fused latent heads (mean in lanes [0:15), logvar in lanes [128:143))
    wmv = jnp.zeros((H3P, 2 * LATP), jnp.float32)
    wmv = wmv.at[:H3, :LATENT_DIM].set(params["wm"])
    wmv = wmv.at[:H3, LATP:LATP + LATENT_DIM].set(params["wv"])
    bmv = jnp.zeros((1, 2 * LATP), jnp.float32)
    bmv = bmv.at[:, :LATENT_DIM].set(params["bm"])
    bmv = bmv.at[:, LATP:LATP + LATENT_DIM].set(params["bv"])
    kp["wmv"] = wmv.astype(bf16)
    kp["bmv"] = bmv
    # decoder
    kp["wd1z"] = pad_w(params["wd1z"], LATP, H3P).astype(bf16)
    kp["wd1c"] = pad_w(params["wd1c"], NUM_CATEGORIES, H3P)        # f32, XLA prologue
    kp["bd1"] = pad_b(params["bd1"], H3P)                          # f32, folded into dec bias
    kp["wd2"] = pad_w(params["wd2"], H3P, H2P).astype(bf16)
    kp["bd2"] = pad_b(params["bd2"], H2P)
    kp["wd3"] = pad_w(params["wd3"], H2P, H1P).astype(bf16)
    kp["bd3"] = pad_b(params["bd3"], H1P)
    kp["wd4"] = pad_w(params["wd4"], H1P, INPUT_DIM).astype(bf16)
    kp["bd4"] = pad_b(params["bd4"], INPUT_DIM)
    return kp


# ----------------------------------------------------------------------------
# forward
# ----------------------------------------------------------------------------
@functools.partial(jax.jit, static_argnames=("batch_tile",))
def cvae_forward(data_input, condition, eps, kparams, *, batch_tile=DEFAULT_BATCH_TILE):
    """Forward pass matching ConditionalVariationalAutoencoder.forward.

    data_input: (N, 1, 28, 28)   condition: (N, 10) one-hot   eps: (N, 15)
    Returns (data_recon (N,1,28,28) f32, mean (N,15) f32, logvar (N,15) f32).
    """
    n = data_input.shape[0]
    x = data_input.reshape(n, -1).astype(jnp.float32)
    c = condition.astype(jnp.float32)

    # fold the one-hot conditioning matmuls into per-row bias tiles (cheap XLA op)
    enc_bias = c @ kparams["w1c"] + kparams["b1"]                  # (N, H1P) f32
    dec_bias = c @ kparams["wd1c"] + kparams["bd1"]                # (N, H3P) f32

    eps_pad = jnp.zeros((n, LATP), jnp.float32).at[:, :LATENT_DIM].set(
        eps.astype(jnp.float32))

    # batch tiling
    tb = min(batch_tile, _round_up(n, 8))
    n_pad = _round_up(n, tb)
    pad = n_pad - n

    def padr(a):
        return jnp.pad(a, ((0, pad), (0, 0))) if pad else a

    x_b = padr(x).astype(jnp.bfloat16)
    eps_p = padr(eps_pad)
    enc_b = padr(enc_bias)
    dec_b = padr(dec_bias)

    grid = (n_pad // tb,)

    def rspec(width):          # per-row tensors: indexed by the batch program id
        return pl.BlockSpec((tb, width), lambda i: (i, 0))

    def cspec(shape):          # weights/biases: VMEM-resident across iterations
        return pl.BlockSpec(shape, lambda i: (0, 0))

    ordered_args = (
        x_b, eps_p, enc_b, dec_b,
        kparams["w1x"],
        kparams["w2"], kparams["b2"],
        kparams["w3"], kparams["b3"],
        kparams["wmv"], kparams["bmv"],
        kparams["wd1z"],
        kparams["wd2"], kparams["bd2"],
        kparams["wd3"], kparams["bd3"],
        kparams["wd4"], kparams["bd4"],
    )
    in_specs = [
        rspec(INPUT_DIM), rspec(LATP), rspec(H1P), rspec(H3P),
        cspec(kparams["w1x"].shape),
        cspec(kparams["w2"].shape), cspec(kparams["b2"].shape),
        cspec(kparams["w3"].shape), cspec(kparams["b3"].shape),
        cspec(kparams["wmv"].shape), cspec(kparams["bmv"].shape),
        cspec(kparams["wd1z"].shape),
        cspec(kparams["wd2"].shape), cspec(kparams["bd2"].shape),
        cspec(kparams["wd3"].shape), cspec(kparams["bd3"].shape),
        cspec(kparams["wd4"].shape), cspec(kparams["bd4"].shape),
    ]

    recon_pad, mv_pad = pl.pallas_call(
        cvae_forward_kernel,
        out_shape=(
            jax.ShapeDtypeStruct((n_pad, INPUT_DIM), jnp.float32),   # recon (flat)
            jax.ShapeDtypeStruct((n_pad, 2 * LATP), jnp.float32),    # fused mean|logvar
        ),
        grid=grid,
        in_specs=in_specs,
        out_specs=(rspec(INPUT_DIM), rspec(2 * LATP)),
        compiler_params=pltpu.CompilerParams(
            dimension_semantics=("parallel",),
            vmem_limit_bytes=32 << 20,
        ),
    )(*ordered_args)

    data_recon = recon_pad[:n].reshape(-1, 1, 28, 28)
    mean = mv_pad[:n, :LATENT_DIM]
    logvar = mv_pad[:n, LATP:LATP + LATENT_DIM]
    return data_recon, mean, logvar


def cvae_forward_ref(data_input, condition, eps, params):
    """Pure-JAX f32 reference (unpadded params) for correctness checking."""
    n = data_input.shape[0]
    x = data_input.reshape(n, -1)
    c = condition
    h = jax.nn.relu(x @ params["w1x"] + c @ params["w1c"] + params["b1"])
    h = jax.nn.relu(h @ params["w2"] + params["b2"])
    h = jax.nn.relu(h @ params["w3"] + params["b3"])
    mean = h @ params["wm"] + params["bm"]
    logvar = h @ params["wv"] + params["bv"]
    z = eps * jnp.exp(0.5 * logvar) + mean
    d = jax.nn.relu(z @ params["wd1z"] + c @ params["wd1c"] + params["bd1"])
    d = jax.nn.relu(d @ params["wd2"] + params["bd2"])
    d = jax.nn.relu(d @ params["wd3"] + params["bd3"])
    recon = jax.nn.sigmoid(d @ params["wd4"] + params["bd4"])
    return recon.reshape(-1, 1, 28, 28), mean, logvar


if __name__ == "__main__":
    key = jax.random.PRNGKey(0)
    k_params, k_x, k_cond, k_eps = jax.random.split(key, 4)

    N = 2
    params = init_params(k_params)
    kparams = prepare_kernel_params(params)

    data_input = jax.random.uniform(k_x, (N, 1, 28, 28), jnp.float32)
    labels = jax.random.randint(k_cond, (N,), 0, NUM_CATEGORIES)
    condition = jax.nn.one_hot(labels, NUM_CATEGORIES, dtype=jnp.float32)
    eps = jax.random.normal(k_eps, (N, LATENT_DIM), jnp.float32)

    recon, mean, logvar = cvae_forward(data_input, condition, eps, kparams)
    jax.block_until_ready((recon, mean, logvar))

    # sanity check against pure-JAX f32 reference (kernel uses bf16 weights,
    # so tolerances are loosened accordingly)
    recon_r, mean_r, logvar_r = cvae_forward_ref(data_input, condition, eps, params)
    assert recon.shape == (N, 1, 28, 28)
    assert mean.shape == (N, LATENT_DIM) and logvar.shape == (N, LATENT_DIM)
    assert jnp.allclose(recon, recon_r, atol=3e-2), float(jnp.max(jnp.abs(recon - recon_r)))
    assert jnp.allclose(mean, mean_r, atol=5e-2), float(jnp.max(jnp.abs(mean - mean_r)))
    assert jnp.allclose(logvar, logvar_r, atol=5e-2), float(jnp.max(jnp.abs(logvar - logvar_r)))

    print("KERNEL_OK")
</pallas_src>

<mosaic_0001>
module attributes {stable_mosaic.version = 11 : i64} {
  func.func @cvae_forward_kernel(%arg0: i32, %arg1: memref<8x784xbf16, #tpu.memory_space<vmem>>, %arg2: memref<8x128xf32, #tpu.memory_space<vmem>>, %arg3: memref<8x384xf32, #tpu.memory_space<vmem>>, %arg4: memref<8x128xf32, #tpu.memory_space<vmem>>, %arg5: memref<784x384xbf16, #tpu.memory_space<vmem>>, %arg6: memref<384x192xbf16, #tpu.memory_space<vmem>>, %arg7: memref<1x192xf32, #tpu.memory_space<vmem>>, %arg8: memref<192x128xbf16, #tpu.memory_space<vmem>>, %arg9: memref<1x128xf32, #tpu.memory_space<vmem>>, %arg10: memref<128x256xbf16, #tpu.memory_space<vmem>>, %arg11: memref<1x256xf32, #tpu.memory_space<vmem>>, %arg12: memref<128x128xbf16, #tpu.memory_space<vmem>>, %arg13: memref<128x192xbf16, #tpu.memory_space<vmem>>, %arg14: memref<1x192xf32, #tpu.memory_space<vmem>>, %arg15: memref<192x384xbf16, #tpu.memory_space<vmem>>, %arg16: memref<1x384xf32, #tpu.memory_space<vmem>>, %arg17: memref<384x784xbf16, #tpu.memory_space<vmem>>, %arg18: memref<1x784xf32, #tpu.memory_space<vmem>>, %arg19: memref<8x784xf32, #tpu.memory_space<vmem>>, %arg20: memref<8x256xf32, #tpu.memory_space<vmem>>) attributes {dimension_semantics = [#tpu.dimension_semantics<parallel>], iteration_bounds = array<i64: 1>, scalar_prefetch = 0 : i64, scratch_operands = 0 : i64, tpu.core_type = #tpu.core_type<tc>, window_params = [{transform_indices = @transform_0, window_bounds = array<i64: 8, 784>}, {transform_indices = @transform_1, window_bounds = array<i64: 8, 128>}, {transform_indices = @transform_2, window_bounds = array<i64: 8, 384>}, {transform_indices = @transform_3, window_bounds = array<i64: 8, 128>}, {pipeline_mode = #tpu.pipeline_mode<synchronous>, transform_indices = @transform_4, window_bounds = array<i64: 784, 384>}, {pipeline_mode = #tpu.pipeline_mode<synchronous>, transform_indices = @transform_5, window_bounds = array<i64: 384, 192>}, {pipeline_mode = #tpu.pipeline_mode<synchronous>, transform_indices = @transform_6, window_bounds = array<i64: 1, 192>}, {pipeline_mode = #tpu.pipeline_mode<synchronous>, transform_indices = @transform_7, window_bounds = array<i64: 192, 128>}, {pipeline_mode = #tpu.pipeline_mode<synchronous>, transform_indices = @transform_8, window_bounds = array<i64: 1, 128>}, {pipeline_mode = #tpu.pipeline_mode<synchronous>, transform_indices = @transform_9, window_bounds = array<i64: 128, 256>}, {pipeline_mode = #tpu.pipeline_mode<synchronous>, transform_indices = @transform_10, window_bounds = array<i64: 1, 256>}, {pipeline_mode = #tpu.pipeline_mode<synchronous>, transform_indices = @transform_11, window_bounds = array<i64: 128, 128>}, {pipeline_mode = #tpu.pipeline_mode<synchronous>, transform_indices = @transform_12, window_bounds = array<i64: 128, 192>}, {pipeline_mode = #tpu.pipeline_mode<synchronous>, transform_indices = @transform_13, window_bounds = array<i64: 1, 192>}, {pipeline_mode = #tpu.pipeline_mode<synchronous>, transform_indices = @transform_14, window_bounds = array<i64: 192, 384>}, {pipeline_mode = #tpu.pipeline_mode<synchronous>, transform_indices = @transform_15, window_bounds = array<i64: 1, 384>}, {pipeline_mode = #tpu.pipeline_mode<synchronous>, transform_indices = @transform_16, window_bounds = array<i64: 384, 784>}, {pipeline_mode = #tpu.pipeline_mode<synchronous>, transform_indices = @transform_17, window_bounds = array<i64: 1, 784>}, {transform_indices = @transform_18, window_bounds = array<i64: 8, 784>}, {transform_indices = @transform_19, window_bounds = array<i64: 8, 256>}]} {
    %c0 = arith.constant 0 : index
    %c0_0 = arith.constant 0 : index
    %0 = vector.load %arg1[%c0, %c0_0] : memref<8x784xbf16, #tpu.memory_space<vmem>>, vector<8x784xbf16>
    %c0_1 = arith.constant 0 : index
    %c0_2 = arith.constant 0 : index
    %1 = vector.load %arg5[%c0_1, %c0_2] : memref<784x384xbf16, #tpu.memory_space<vmem>>, vector<784x384xbf16>
    %cst = arith.constant dense<0.000000e+00> : vector<8x384xf32>
    %2 = tpu.matmul %0, %1, %cst {dimension_numbers = #tpu.dot_dimension_numbers<[1], [0], [0], [1], [0, 0, 1, 1], [], []>} : vector<8x784xbf16>, vector<784x384xbf16>, vector<8x384xf32> -> vector<8x384xf32>
    %c0_3 = arith.constant 0 : index
    %c0_4 = arith.constant 0 : index
    %3 = vector.load %arg3[%c0_3, %c0_4] : memref<8x384xf32, #tpu.memory_space<vmem>>, vector<8x384xf32>
    %4 = arith.addf %2, %3 : vector<8x384xf32>
    %cst_5 = arith.constant 0.000000e+00 : f32
    %5 = vector.broadcast %cst_5 : f32 to vector<8x384xf32>
    %6 = arith.maximumf %4, %5 : vector<8x384xf32>
    %7 = arith.truncf %6 : vector<8x384xf32> to vector<8x384xbf16>
    %c0_6 = arith.constant 0 : index
    %c0_7 = arith.constant 0 : index
    %8 = vector.load %arg6[%c0_6, %c0_7] : memref<384x192xbf16, #tpu.memory_space<vmem>>, vector<384x192xbf16>
    %cst_8 = arith.constant dense<0.000000e+00> : vector<8x192xf32>
    %9 = tpu.matmul %7, %8, %cst_8 {dimension_numbers = #tpu.dot_dimension_numbers<[1], [0], [0], [1], [0, 0, 1, 1], [], []>} : vector<8x384xbf16>, vector<384x192xbf16>, vector<8x192xf32> -> vector<8x192xf32>
    %c0_9 = arith.constant 0 : index
    %c0_10 = arith.constant 0 : index
    %10 = vector.load %arg7[%c0_9, %c0_10] : memref<1x192xf32, #tpu.memory_space<vmem>>, vector<1x192xf32>
    %11 = vector.broadcast %10 : vector<1x192xf32> to vector<8x192xf32>
    %12 = arith.addf %9, %11 : vector<8x192xf32>
    %cst_11 = arith.constant 0.000000e+00 : f32
    %13 = vector.broadcast %cst_11 : f32 to vector<8x192xf32>
    %14 = arith.maximumf %12, %13 : vector<8x192xf32>
    %15 = arith.truncf %14 : vector<8x192xf32> to vector<8x192xbf16>
    %c0_12 = arith.constant 0 : index
    %c0_13 = arith.constant 0 : index
    %16 = vector.load %arg8[%c0_12, %c0_13] : memref<192x128xbf16, #tpu.memory_space<vmem>>, vector<192x128xbf16>
    %cst_14 = arith.constant dense<0.000000e+00> : vector<8x128xf32>
    %17 = tpu.matmul %15, %16, %cst_14 {dimension_numbers = #tpu.dot_dimension_numbers<[1], [0], [0], [1], [0, 0, 1, 1], [], []>} : vector<8x192xbf16>, vector<192x128xbf16>, vector<8x128xf32> -> vector<8x128xf32>
    %c0_15 = arith.constant 0 : index
    %c0_16 = arith.constant 0 : index
    %18 = vector.load %arg9[%c0_15, %c0_16] : memref<1x128xf32, #tpu.memory_space<vmem>>, vector<1x128xf32>
    %19 = vector.broadcast %18 : vector<1x128xf32> to vector<8x128xf32>
    %20 = arith.addf %17, %19 : vector<8x128xf32>
    %cst_17 = arith.constant 0.000000e+00 : f32
    %21 = vector.broadcast %cst_17 : f32 to vector<8x128xf32>
    %22 = arith.maximumf %20, %21 : vector<8x128xf32>
    %23 = arith.truncf %22 : vector<8x128xf32> to vector<8x128xbf16>
    %c0_18 = arith.constant 0 : index
    %c0_19 = arith.constant 0 : index
    %24 = vector.load %arg10[%c0_18, %c0_19] : memref<128x256xbf16, #tpu.memory_space<vmem>>, vector<128x256xbf16>
    %cst_20 = arith.constant dense<0.000000e+00> : vector<8x256xf32>
    %25 = tpu.matmul %23, %24, %cst_20 {dimension_numbers = #tpu.dot_dimension_numbers<[1], [0], [0], [1], [0, 0, 1, 1], [], []>} : vector<8x128xbf16>, vector<128x256xbf16>, vector<8x256xf32> -> vector<8x256xf32>
    %c0_21 = arith.constant 0 : index
    %c0_22 = arith.constant 0 : index
    %26 = vector.load %arg11[%c0_21, %c0_22] : memref<1x256xf32, #tpu.memory_space<vmem>>, vector<1x256xf32>
    %27 = vector.broadcast %26 : vector<1x256xf32> to vector<8x256xf32>
    %28 = arith.addf %25, %27 : vector<8x256xf32>
    %29 = vector.extract_strided_slice %28 {offsets = [0, 0], sizes = [8, 128], strides = [1, 1]} : vector<8x256xf32> to vector<8x128xf32>
    %30 = vector.extract_strided_slice %28 {offsets = [0, 128], sizes = [8, 128], strides = [1, 1]} : vector<8x256xf32> to vector<8x128xf32>
    %c0_23 = arith.constant 0 : index
    %c0_24 = arith.constant 0 : index
    %31 = vector.load %arg2[%c0_23, %c0_24] : memref<8x128xf32, #tpu.memory_space<vmem>>, vector<8x128xf32>
    %cst_25 = arith.constant 5.000000e-01 : f32
    %32 = vector.broadcast %cst_25 : f32 to vector<8x128xf32>
    %33 = arith.mulf %32, %30 : vector<8x128xf32>
    %34 = math.exp %33 : vector<8x128xf32>
    %35 = arith.mulf %31, %34 : vector<8x128xf32>
    %36 = arith.addf %35, %29 : vector<8x128xf32>
    %37 = arith.truncf %36 : vector<8x128xf32> to vector<8x128xbf16>
    %c0_26 = arith.constant 0 : index
    %c0_27 = arith.constant 0 : index
    %38 = vector.load %arg12[%c0_26, %c0_27] : memref<128x128xbf16, #tpu.memory_space<vmem>>, vector<128x128xbf16>
    %cst_28 = arith.constant dense<0.000000e+00> : vector<8x128xf32>
    %39 = tpu.matmul %37, %38, %cst_28 {dimension_numbers = #tpu.dot_dimension_numbers<[1], [0], [0], [1], [0, 0, 1, 1], [], []>} : vector<8x128xbf16>, vector<128x128xbf16>, vector<8x128xf32> -> vector<8x128xf32>
    %c0_29 = arith.constant 0 : index
    %c0_30 = arith.constant 0 : index
    %40 = vector.load %arg4[%c0_29, %c0_30] : memref<8x128xf32, #tpu.memory_space<vmem>>, vector<8x128xf32>
    %41 = arith.addf %39, %40 : vector<8x128xf32>
    %cst_31 = arith.constant 0.000000e+00 : f32
    %42 = vector.broadcast %cst_31 : f32 to vector<8x128xf32>
    %43 = arith.maximumf %41, %42 : vector<8x128xf32>
    %44 = arith.truncf %43 : vector<8x128xf32> to vector<8x128xbf16>
    %c0_32 = arith.constant 0 : index
    %c0_33 = arith.constant 0 : index
    %45 = vector.load %arg13[%c0_32, %c0_33] : memref<128x192xbf16, #tpu.memory_space<vmem>>, vector<128x192xbf16>
    %cst_34 = arith.constant dense<0.000000e+00> : vector<8x192xf32>
    %46 = tpu.matmul %44, %45, %cst_34 {dimension_numbers = #tpu.dot_dimension_numbers<[1], [0], [0], [1], [0, 0, 1, 1], [], []>} : vector<8x128xbf16>, vector<128x192xbf16>, vector<8x192xf32> -> vector<8x192xf32>
    %c0_35 = arith.constant 0 : index
    %c0_36 = arith.constant 0 : index
    %47 = vector.load %arg14[%c0_35, %c0_36] : memref<1x192xf32, #tpu.memory_space<vmem>>, vector<1x192xf32>
    %48 = vector.broadcast %47 : vector<1x192xf32> to vector<8x192xf32>
    %49 = arith.addf %46, %48 : vector<8x192xf32>
    %cst_37 = arith.constant 0.000000e+00 : f32
    %50 = vector.broadcast %cst_37 : f32 to vector<8x192xf32>
    %51 = arith.maximumf %49, %50 : vector<8x192xf32>
    %52 = arith.truncf %51 : vector<8x192xf32> to vector<8x192xbf16>
    %c0_38 = arith.constant 0 : index
    %c0_39 = arith.constant 0 : index
    %53 = vector.load %arg15[%c0_38, %c0_39] : memref<192x384xbf16, #tpu.memory_space<vmem>>, vector<192x384xbf16>
    %cst_40 = arith.constant dense<0.000000e+00> : vector<8x384xf32>
    %54 = tpu.matmul %52, %53, %cst_40 {dimension_numbers = #tpu.dot_dimension_numbers<[1], [0], [0], [1], [0, 0, 1, 1], [], []>} : vector<8x192xbf16>, vector<192x384xbf16>, vector<8x384xf32> -> vector<8x384xf32>
    %c0_41 = arith.constant 0 : index
    %c0_42 = arith.constant 0 : index
    %55 = vector.load %arg16[%c0_41, %c0_42] : memref<1x384xf32, #tpu.memory_space<vmem>>, vector<1x384xf32>
    %56 = vector.broadcast %55 : vector<1x384xf32> to vector<8x384xf32>
    %57 = arith.addf %54, %56 : vector<8x384xf32>
    %cst_43 = arith.constant 0.000000e+00 : f32
    %58 = vector.broadcast %cst_43 : f32 to vector<8x384xf32>
    %59 = arith.maximumf %57, %58 : vector<8x384xf32>
    %60 = arith.truncf %59 : vector<8x384xf32> to vector<8x384xbf16>
    %c0_44 = arith.constant 0 : index
    %c0_45 = arith.constant 0 : index
    %61 = vector.load %arg17[%c0_44, %c0_45] : memref<384x784xbf16, #tpu.memory_space<vmem>>, vector<384x784xbf16>
    %cst_46 = arith.constant dense<0.000000e+00> : vector<8x784xf32>
    %62 = tpu.matmul %60, %61, %cst_46 {dimension_numbers = #tpu.dot_dimension_numbers<[1], [0], [0], [1], [0, 0, 1, 1], [], []>} : vector<8x384xbf16>, vector<384x784xbf16>, vector<8x784xf32> -> vector<8x784xf32>
    %c0_47 = arith.constant 0 : index
    %c0_48 = arith.constant 0 : index
    %63 = vector.load %arg18[%c0_47, %c0_48] : memref<1x784xf32, #tpu.memory_space<vmem>>, vector<1x784xf32>
    %64 = vector.broadcast %63 : vector<1x784xf32> to vector<8x784xf32>
    %65 = arith.addf %62, %64 : vector<8x784xf32>
    %66 = arith.negf %65 : vector<8x784xf32>
    %67 = math.exp %66 : vector<8x784xf32>
    %cst_49 = arith.constant 1.000000e+00 : f32
    %68 = vector.broadcast %cst_49 : f32 to vector<8x784xf32>
    %69 = arith.addf %68, %67 : vector<8x784xf32>
    %70 = arith.divf %68, %69 : vector<8x784xf32>
    %c0_50 = arith.constant 0 : index
    %c0_51 = arith.constant 0 : index
    %71 = vector.load %arg19[%c0_50, %c0_51] : memref<8x784xf32, #tpu.memory_space<vmem>>, vector<8x784xf32>
    tpu.vector_store %arg19[%c0_50, %c0_51], %70 {strides = array<i32>} : memref<8x784xf32, #tpu.memory_space<vmem>>, vector<8x784xf32>,
    %c0_52 = arith.constant 0 : index
    %c0_53 = arith.constant 0 : index
    %72 = vector.load %arg20[%c0_52, %c0_53] : memref<8x256xf32, #tpu.memory_space<vmem>>, vector<8x256xf32>
    tpu.vector_store %arg20[%c0_52, %c0_53], %28 {strides = array<i32>} : memref<8x256xf32, #tpu.memory_space<vmem>>, vector<8x256xf32>,
    return
  }
  func.func @transform_0(%arg0: i32) -> (i32, i32) {
    %c0_i32 = arith.constant 0 : i32
    %c0_i32_0 = arith.constant 0 : i32
    return %arg0, %c0_i32 : i32, i32
  }
  func.func @transform_1(%arg0: i32) -> (i32, i32) {
    %c0_i32 = arith.constant 0 : i32
    %c0_i32_0 = arith.constant 0 : i32
    return %arg0, %c0_i32 : i32, i32
  }
  func.func @transform_2(%arg0: i32) -> (i32, i32) {
    %c0_i32 = arith.constant 0 : i32
    %c0_i32_0 = arith.constant 0 : i32
    return %arg0, %c0_i32 : i32, i32
  }
  func.func @transform_3(%arg0: i32) -> (i32, i32) {
    %c0_i32 = arith.constant 0 : i32
    %c0_i32_0 = arith.constant 0 : i32
    return %arg0, %c0_i32 : i32, i32
  }
  func.func @transform_4(%arg0: i32) -> (i32, i32) {
    %c0_i32 = arith.constant 0 : i32
    %c0_i32_0 = arith.constant 0 : i32
    %c0_i32_1 = arith.constant 0 : i32
    return %c0_i32, %c0_i32_0 : i32, i32
  }
  func.func @transform_5(%arg0: i32) -> (i32, i32) {
    %c0_i32 = arith.constant 0 : i32
    %c0_i32_0 = arith.constant 0 : i32
    %c0_i32_1 = arith.constant 0 : i32
    return %c0_i32, %c0_i32_0 : i32, i32
  }
  func.func @transform_6(%arg0: i32) -> (i32, i32) {
    %c0_i32 = arith.constant 0 : i32
    %c0_i32_0 = arith.constant 0 : i32
    %c0_i32_1 = arith.constant 0 : i32
    return %c0_i32, %c0_i32_0 : i32, i32
  }
  func.func @transform_7(%arg0: i32) -> (i32, i32) {
    %c0_i32 = arith.constant 0 : i32
    %c0_i32_0 = arith.constant 0 : i32
    %c0_i32_1 = arith.constant 0 : i32
    return %c0_i32, %c0_i32_0 : i32, i32
  }
  func.func @transform_8(%arg0: i32) -> (i32, i32) {
    %c0_i32 = arith.constant 0 : i32
    %c0_i32_0 = arith.constant 0 : i32
    %c0_i32_1 = arith.constant 0 : i32
    return %c0_i32, %c0_i32_0 : i32, i32
  }
  func.func @transform_9(%arg0: i32) -> (i32, i32) {
    %c0_i32 = arith.constant 0 : i32
    %c0_i32_0 = arith.constant 0 : i32
    %c0_i32_1 = arith.constant 0 : i32
    return %c0_i32, %c0_i32_0 : i32, i32
  }
  func.func @transform_10(%arg0: i32) -> (i32, i32) {
    %c0_i32 = arith.constant 0 : i32
    %c0_i32_0 = arith.constant 0 : i32
    %c0_i32_1 = arith.constant 0 : i32
    return %c0_i32, %c0_i32_0 : i32, i32
  }
  func.func @transform_11(%arg0: i32) -> (i32, i32) {
    %c0_i32 = arith.constant 0 : i32
    %c0_i32_0 = arith.constant 0 : i32
    %c0_i32_1 = arith.constant 0 : i32
    return %c0_i32, %c0_i32_0 : i32, i32
  }
  func.func @transform_12(%arg0: i32) -> (i32, i32) {
    %c0_i32 = arith.constant 0 : i32
    %c0_i32_0 = arith.constant 0 : i32
    %c0_i32_1 = arith.constant 0 : i32
    return %c0_i32, %c0_i32_0 : i32, i32
  }
  func.func @transform_13(%arg0: i32) -> (i32, i32) {
    %c0_i32 = arith.constant 0 : i32
    %c0_i32_0 = arith.constant 0 : i32
    %c0_i32_1 = arith.constant 0 : i32
    return %c0_i32, %c0_i32_0 : i32, i32
  }
  func.func @transform_14(%arg0: i32) -> (i32, i32) {
    %c0_i32 = arith.constant 0 : i32
    %c0_i32_0 = arith.constant 0 : i32
    %c0_i32_1 = arith.constant 0 : i32
    return %c0_i32, %c0_i32_0 : i32, i32
  }
  func.func @transform_15(%arg0: i32) -> (i32, i32) {
    %c0_i32 = arith.constant 0 : i32
    %c0_i32_0 = arith.constant 0 : i32
    %c0_i32_1 = arith.constant 0 : i32
    return %c0_i32, %c0_i32_0 : i32, i32
  }
  func.func @transform_16(%arg0: i32) -> (i32, i32) {
    %c0_i32 = arith.constant 0 : i32
    %c0_i32_0 = arith.constant 0 : i32
    %c0_i32_1 = arith.constant 0 : i32
    return %c0_i32, %c0_i32_0 : i32, i32
  }
  func.func @transform_17(%arg0: i32) -> (i32, i32) {
    %c0_i32 = arith.constant 0 : i32
    %c0_i32_0 = arith.constant 0 : i32
    %c0_i32_1 = arith.constant 0 : i32
    return %c0_i32, %c0_i32_0 : i32, i32
  }
  func.func @transform_18(%arg0: i32) -> (i32, i32) {
    %c0_i32 = arith.constant 0 : i32
    %c0_i32_0 = arith.constant 0 : i32
    return %arg0, %c0_i32 : i32, i32
  }
  func.func @transform_19(%arg0: i32) -> (i32, i32) {
    %c0_i32 = arith.constant 0 : i32
    %c0_i32_0 = arith.constant 0 : i32
    return %arg0, %c0_i32 : i32, i32
  }
}

</mosaic_0001>

<llo_original>
// kernel: cvae_forward.1
$region0: #{cvae_forward.1}
  #allocation0 [shape = 'u32[]', space=smem, size = 0x4, offset = 0x4, fixed_abs, tag = 'smem constant byte address 0x4 - core index']
  #allocation1 [shape = 'u32[144,128]{1,0:T(1,128)}', space=vmem, size = 0x12000, scoped, tag = 'internal scratch']
  %s0 = inlined_call_operand.vmem [shape: bf16[8,784], index: 0, kind: input, shape index: {}]
  %s1 = inlined_call_operand.vmem [shape: f32[8,128], index: 1, kind: input, shape index: {}]
  %s2 = inlined_call_operand.vmem [shape: f32[8,384], index: 2, kind: input, shape index: {}]
  %s3 = inlined_call_operand.vmem [shape: f32[8,128], index: 3, kind: input, shape index: {}]
  %s4 = inlined_call_operand.vmem [shape: bf16[784,384], index: 4, kind: input, shape index: {}]
  %s5 = inlined_call_operand.vmem [shape: bf16[384,192], index: 5, kind: input, shape index: {}]
  %s6 = inlined_call_operand.vmem [shape: f32[1,192], index: 6, kind: input, shape index: {}]
  %s7 = inlined_call_operand.vmem [shape: bf16[192,128], index: 7, kind: input, shape index: {}]
  %s8 = inlined_call_operand.vmem [shape: f32[1,128], index: 8, kind: input, shape index: {}]
  %s9 = inlined_call_operand.vmem [shape: bf16[128,256], index: 9, kind: input, shape index: {}]
  %s10 = inlined_call_operand.vmem [shape: f32[1,256], index: 10, kind: input, shape index: {}]
  %s11 = inlined_call_operand.vmem [shape: bf16[128,128], index: 11, kind: input, shape index: {}]
  %s12 = inlined_call_operand.vmem [shape: bf16[128,192], index: 12, kind: input, shape index: {}]
  %s13 = inlined_call_operand.vmem [shape: f32[1,192], index: 13, kind: input, shape index: {}]
  %s14 = inlined_call_operand.vmem [shape: bf16[192,384], index: 14, kind: input, shape index: {}]
  %s15 = inlined_call_operand.vmem [shape: f32[1,384], index: 15, kind: input, shape index: {}]
  %s16 = inlined_call_operand.vmem [shape: bf16[384,784], index: 16, kind: input, shape index: {}]
  %s17 = inlined_call_operand.vmem [shape: f32[1,784], index: 17, kind: input, shape index: {}]
  %s18 = inlined_call_operand.vmem [shape: f32[8,784], index: 18, kind: output, shape index: {0}]
  %s19 = inlined_call_operand.vmem [shape: f32[8,256], index: 19, kind: output, shape index: {1}]
  %20 = xla_tuple %s18, %s19
  %s21 = sld [smem:[#allocation0]]
  $region90: #{cvae_forward.1} parent=0
    _
  %s23 = ssub.s32 1, %s21
  %s24 = scalar_select 0, %s23, %s21
  // Predicated region
  $region2: #{cvae_forward.1} parent=0 // pred_check
    _
  $region3: #{cvae_forward.1} parent=0 // pred_check_branch
    %26 = sbr.rel (0) target = $region5
  $region4: #{cvae_forward.1} parent=0 // pred_region
    _
  $region5: #{cvae_forward.1} parent=0 // pred_fallthru
    _
  // Predicated region
  $region6: #{cvae_forward.1} parent=0 // pred_check
    _
  $region7: #{cvae_forward.1} parent=0 // pred_check_branch
    %28 = sbr.rel (0) target = $region9
  $region8: #{cvae_forward.1} parent=0 // pred_region
    _
  $region9: #{cvae_forward.1} parent=0 // pred_fallthru
    _
  // Predicated region
  $region10: #{cvae_forward.1} parent=0 // pred_check
    _
  $region11: #{cvae_forward.1} parent=0 // pred_check_branch
    %30 = sbr.rel (0) target = $region13
  $region12: #{cvae_forward.1} parent=0 // pred_region
    _
  $region13: #{cvae_forward.1} parent=0 // pred_fallthru
    _
  // Predicated region
  $region14: #{cvae_forward.1} parent=0 // pred_check
    _
  $region15: #{cvae_forward.1} parent=0 // pred_check_branch
    %32 = sbr.rel (0) target = $region17
  $region16: #{cvae_forward.1} parent=0 // pred_region
    _
  $region17: #{cvae_forward.1} parent=0 // pred_fallthru
    _
  // Predicated region
  $region18: #{cvae_forward.1} parent=0 // pred_check
    _
  $region19: #{cvae_forward.1} parent=0 // pred_check_branch
    %34 = sbr.rel (0) target = $region21
  $region20: #{cvae_forward.1} parent=0 // pred_region
    _
  $region21: #{cvae_forward.1} parent=0 // pred_fallthru
    _
  // Predicated region
  $region22: #{cvae_forward.1} parent=0 // pred_check
    _
  $region23: #{cvae_forward.1} parent=0 // pred_check_branch
    %36 = sbr.rel (0) target = $region25
  $region24: #{cvae_forward.1} parent=0 // pred_region
    _
  $region25: #{cvae_forward.1} parent=0 // pred_fallthru
    _
  // Predicated region
  $region26: #{cvae_forward.1} parent=0 // pred_check
    _
  $region27: #{cvae_forward.1} parent=0 // pred_check_branch
    %38 = sbr.rel (0) target = $region29
  $region28: #{cvae_forward.1} parent=0 // pred_region
    _
  $region29: #{cvae_forward.1} parent=0 // pred_fallthru
    _
  // Predicated region
  $region30: #{cvae_forward.1} parent=0 // pred_check
    _
  $region31: #{cvae_forward.1} parent=0 // pred_check_branch
    %40 = sbr.rel (0) target = $region33
  $region32: #{cvae_forward.1} parent=0 // pred_region
    _
  $region33: #{cvae_forward.1} parent=0 // pred_fallthru
    _
  // Predicated region
  $region34: #{cvae_forward.1} parent=0 // pred_check
    _
  $region35: #{cvae_forward.1} parent=0 // pred_check_branch
    %42 = sbr.rel (0) target = $region37
  $region36: #{cvae_forward.1} parent=0 // pred_region
    _
  $region37: #{cvae_forward.1} parent=0 // pred_fallthru
    _
  // Predicated region
  $region38: #{cvae_forward.1} parent=0 // pred_check
    _
  $region39: #{cvae_forward.1} parent=0 // pred_check_branch
    %44 = sbr.rel (0) target = $region41
  $region40: #{cvae_forward.1} parent=0 // pred_region
    _
  $region41: #{cvae_forward.1} parent=0 // pred_fallthru
    _
  // Predicated region
  $region42: #{cvae_forward.1} parent=0 // pred_check
    _
  $region43: #{cvae_forward.1} parent=0 // pred_check_branch
    %46 = sbr.rel (0) target = $region45
  $region44: #{cvae_forward.1} parent=0 // pred_region
    _
  $region45: #{cvae_forward.1} parent=0 // pred_fallthru
    _
  // Predicated region
  $region46: #{cvae_forward.1} parent=0 // pred_check
    _
  $region47: #{cvae_forward.1} parent=0 // pred_check_branch
    %48 = sbr.rel (0) target = $region49
  $region48: #{cvae_forward.1} parent=0 // pred_region
    _
  $region49: #{cvae_forward.1} parent=0 // pred_fallthru
    _
  // Predicated region
  $region50: #{cvae_forward.1} parent=0 // pred_check
    _
  $region51: #{cvae_forward.1} parent=0 // pred_check_branch
    %50 = sbr.rel (0) target = $region53
  $region52: #{cvae_forward.1} parent=0 // pred_region
    _
  $region53: #{cvae_forward.1} parent=0 // pred_fallthru
    _
  // Predicated region
  $region54: #{cvae_forward.1} parent=0 // pred_check
    _
  $region55: #{cvae_forward.1} parent=0 // pred_check_branch
    %52 = sbr.rel (0) target = $region57
  $region56: #{cvae_forward.1} parent=0 // pred_region
    _
  $region57: #{cvae_forward.1} parent=0 // pred_fallthru
    _
  // Predicated region
  $region58: #{cvae_forward.1} parent=0 // pred_check
    _
  $region59: #{cvae_forward.1} parent=0 // pred_check_branch
    %54 = sbr.rel (0) target = $region61
  $region60: #{cvae_forward.1} parent=0 // pred_region
    _
  $region61: #{cvae_forward.1} parent=0 // pred_fallthru
    _
  // Predicated region
  $region62: #{cvae_forward.1} parent=0 // pred_check
    _
  $region63: #{cvae_forward.1} parent=0 // pred_check_branch
    %56 = sbr.rel (0) target = $region65
  $region64: #{cvae_forward.1} parent=0 // pred_region
    _
  $region65: #{cvae_forward.1} parent=0 // pred_fallthru
    _
  // Predicated region
  $region66: #{cvae_forward.1} parent=0 // pred_check
    _
  $region67: #{cvae_forward.1} parent=0 // pred_check_branch
    %58 = sbr.rel (0) target = $region69
  $region68: #{cvae_forward.1} parent=0 // pred_region
    _
  $region69: #{cvae_forward.1} parent=0 // pred_fallthru
    _
  // Predicated region
  $region70: #{cvae_forward.1} parent=0 // pred_check
    _
  $region71: #{cvae_forward.1} parent=0 // pred_check_branch
    %60 = sbr.rel (0) target = $region73
  $region72: #{cvae_forward.1} parent=0 // pred_region
    _
  $region73: #{cvae_forward.1} parent=0 // pred_fallthru
    _
  %v62 = vld [vmem:[%s0] sm:$0xff]
  %v63 = vld [vmem:[%s0 + $0x8] sm:$0xff]
  %v64 = vld [vmem:[%s0 + $0x10] sm:$0xff]
  %v65 = vld [vmem:[%s0 + $0x18] sm:$0xf]
  %v66 = vld [vmem:[%s4] sm:$0xff]
  %v67 = vld [vmem:[%s4 + $0x8] sm:$0xf]
  %v68 = vld [vmem:[%s4 + $0xc] sm:$0xff]
  %v69 = vld [vmem:[%s4 + $0x14] sm:$0xf]
  %v70 = vld [vmem:[%s4 + $0x18] sm:$0xff]
  %v71 = vld [vmem:[%s4 + $0x20] sm:$0xf]
  %v72 = vld [vmem:[%s4 + $0x24] sm:$0xff]
  %v73 = vld [vmem:[%s4 + $0x2c] sm:$0xf]
  %v74 = vld [vmem:[%s4 + $0x30] sm:$0xff]
  %v75 = vld [vmem:[%s4 + $0x38] sm:$0xf]
  %v76 = vld [vmem:[%s4 + $0x3c] sm:$0xff]
  %v77 = vld [vmem:[%s4 + $0x44] sm:$0xf]
  %v78 = vld [vmem:[%s4 + $0x48] sm:$0xff]
  %v79 = vld [vmem:[%s4 + $0x50] sm:$0xf]
  %v80 = vld [vmem:[%s4 + $0x54] sm:$0xff]
  %v81 = vld [vmem:[%s4 + $0x5c] sm:$0xf]
  %v82 = vld [vmem:[%s4 + $0x60] sm:$0xff]
  %v83 = vld [vmem:[%s4 + $0x68] sm:$0xf]
  %v84 = vld [vmem:[%s4 + $0x6c] sm:$0xff]
  %v85 = vld [vmem:[%s4 + $0x74] sm:$0xf]
  %v86 = vld [vmem:[%s4 + $0x78] sm:$0xff]
  %v87 = vld [vmem:[%s4 + $0x80] sm:$0xf]
  %v88 = vld [vmem:[%s4 + $0x84] sm:$0xff]
  %v89 = vld [vmem:[%s4 + $0x8c] sm:$0xf]
  %v90 = vld [vmem:[%s4 + $0x90] sm:$0xff]
  %v91 = vld [vmem:[%s4 + $0x98] sm:$0xf]
  %v92 = vld [vmem:[%s4 + $0x9c] sm:$0xff]
  %v93 = vld [vmem:[%s4 + $0xa4] sm:$0xf]
  %v94 = vld [vmem:[%s4 + $0xa8] sm:$0xff]
  %v95 = vld [vmem:[%s4 + $0xb0] sm:$0xf]
  %v96 = vld [vmem:[%s4 + $0xb4] sm:$0xff]
  %v97 = vld [vmem:[%s4 + $0xbc] sm:$0xf]
  %v98 = vld [vmem:[%s4 + $0xc0] sm:$0xff]
  %v99 = vld [vmem:[%s4 + $0xc8] sm:$0xf]
  %v100 = vld [vmem:[%s4 + $0xcc] sm:$0xff]
  %v101 = vld [vmem:[%s4 + $0xd4] sm:$0xf]
  %v102 = vld [vmem:[%s4 + $0xd8] sm:$0xff]
  %v103 = vld [vmem:[%s4 + $0xe0] sm:$0xf]
  %v104 = vld [vmem:[%s4 + $0xe4] sm:$0xff]
  %v105 = vld [vmem:[%s4 + $0xec] sm:$0xf]
  %v106 = vld [vmem:[%s4 + $0xf0] sm:$0xff]
  %v107 = vld [vmem:[%s4 + $0xf8] sm:$0xf]
  %v108 = vld [vmem:[%s4 + $0xfc] sm:$0xff]
  %v109 = vld [vmem:[%s4 + $0x104] sm:$0xf]
  %v110 = vld [vmem:[%s4 + $0x108] sm:$0xff]
  %v111 = vld [vmem:[%s4 + $0x110] sm:$0xf]
  %v112 = vld [vmem:[%s4 + $0x114] sm:$0xff]
  %v113 = vld [vmem:[%s4 + $0x11c] sm:$0xf]
  %v114 = vld [vmem:[%s4 + $0x120] sm:$0xff]
  %v115 = vld [vmem:[%s4 + $0x128] sm:$0xf]
  %v116 = vld [vmem:[%s4 + $0x12c] sm:$0xff]
  %v117 = vld [vmem:[%s4 + $0x134] sm:$0xf]
  %v118 = vld [vmem:[%s4 + $0x138] sm:$0xff]
  %v119 = vld [vmem:[%s4 + $0x140] sm:$0xf]
  %v120 = vld [vmem:[%s4 + $0x144] sm:$0xff]
  %v121 = vld [vmem:[%s4 + $0x14c] sm:$0xf]
  %v122 = vld [vmem:[%s4 + $0x150] sm:$0xff]
  %v123 = vld [vmem:[%s4 + $0x158] sm:$0xf]
  %v124 = vld [vmem:[%s4 + $0x15c] sm:$0xff]
  %v125 = vld [vmem:[%s4 + $0x164] sm:$0xf]
  %v126 = vld [vmem:[%s4 + $0x168] sm:$0xff]
  %v127 = vld [vmem:[%s4 + $0x170] sm:$0xf]
  %v128 = vld [vmem:[%s4 + $0x174] sm:$0xff]
  %v129 = vld [vmem:[%s4 + $0x17c] sm:$0xf]
  %v130 = vld [vmem:[%s4 + $0x180] sm:$0xff]
  %v131 = vld [vmem:[%s4 + $0x188] sm:$0xf]
  %v132 = vld [vmem:[%s4 + $0x18c] sm:$0xff]
  %v133 = vld [vmem:[%s4 + $0x194] sm:$0xf]
  %v134 = vld [vmem:[%s4 + $0x198] sm:$0xff]
  %v135 = vld [vmem:[%s4 + $0x1a0] sm:$0xf]
  %v136 = vld [vmem:[%s4 + $0x1a4] sm:$0xff]
  %v137 = vld [vmem:[%s4 + $0x1ac] sm:$0xf]
  %v138 = vld [vmem:[%s4 + $0x1b0] sm:$0xff]
  %v139 = vld [vmem:[%s4 + $0x1b8] sm:$0xf]
  %v140 = vld [vmem:[%s4 + $0x1bc] sm:$0xff]
  %v141 = vld [vmem:[%s4 + $0x1c4] sm:$0xf]
  %v142 = vld [vmem:[%s4 + $0x1c8] sm:$0xff]
  %v143 = vld [vmem:[%s4 + $0x1d0] sm:$0xf]
  %v144 = vld [vmem:[%s4 + $0x1d4] sm:$0xff]
  %v145 = vld [vmem:[%s4 + $0x1dc] sm:$0xf]
  %v146 = vld [vmem:[%s4 + $0x1e0] sm:$0xff]
  %v147 = vld [vmem:[%s4 + $0x1e8] sm:$0xf]
  %v148 = vld [vmem:[%s4 + $0x1ec] sm:$0xff]
  %v149 = vld [vmem:[%s4 + $0x1f4] sm:$0xf]
  %v150 = vld [vmem:[%s4 + $0x1f8] sm:$0xff]
  %v151 = vld [vmem:[%s4 + $0x200] sm:$0xf]
  %v152 = vld [vmem:[%s4 + $0x204] sm:$0xff]
  %v153 = vld [vmem:[%s4 + $0x20c] sm:$0xf]
  %v154 = vld [vmem:[%s4 + $0x210] sm:$0xff]
  %v155 = vld [vmem:[%s4 + $0x218] sm:$0xf]
  %v156 = vld [vmem:[%s4 + $0x21c] sm:$0xff]
  %v157 = vld [vmem:[%s4 + $0x224] sm:$0xf]
  %v158 = vld [vmem:[%s4 + $0x228] sm:$0xff]
  %v159 = vld [vmem:[%s4 + $0x230] sm:$0xf]
  %v160 = vld [vmem:[%s4 + $0x234] sm:$0xff]
  %v161 = vld [vmem:[%s4 + $0x23c] sm:$0xf]
  %v162 = vld [vmem:[%s4 + $0x240] sm:$0xff]
  %v163 = vld [vmem:[%s4 + $0x248] sm:$0xf]
  %v164 = vld [vmem:[%s4 + $0x24c] sm:$0xff]
  %v165 = vld [vmem:[%s4 + $0x254] sm:$0xf]
  %v166 = vld [vmem:[%s4 + $0x258] sm:$0xff]
  %v167 = vld [vmem:[%s4 + $0x260] sm:$0xf]
  %v168 = vld [vmem:[%s4 + $0x264] sm:$0xff]
  %v169 = vld [vmem:[%s4 + $0x26c] sm:$0xf]
  %v170 = vld [vmem:[%s4 + $0x270] sm:$0xff]
  %v171 = vld [vmem:[%s4 + $0x278] sm:$0xf]
  %v172 = vld [vmem:[%s4 + $0x27c] sm:$0xff]
  %v173 = vld [vmem:[%s4 + $0x284] sm:$0xf]
  %v174 = vld [vmem:[%s4 + $0x288] sm:$0xff]
  %v175 = vld [vmem:[%s4 + $0x290] sm:$0xf]
  %v176 = vld [vmem:[%s4 + $0x294] sm:$0xff]
  %v177 = vld [vmem:[%s4 + $0x29c] sm:$0xf]
  %v178 = vld [vmem:[%s4 + $0x2a0] sm:$0xff]
  %v179 = vld [vmem:[%s4 + $0x2a8] sm:$0xf]
  %v180 = vld [vmem:[%s4 + $0x2ac] sm:$0xff]
  %v181 = vld [vmem:[%s4 + $0x2b4] sm:$0xf]
  %v182 = vld [vmem:[%s4 + $0x2b8] sm:$0xff]
  %v183 = vld [vmem:[%s4 + $0x2c0] sm:$0xf]
  %v184 = vld [vmem:[%s4 + $0x2c4] sm:$0xff]
  %v185 = vld [vmem:[%s4 + $0x2cc] sm:$0xf]
  %v186 = vld [vmem:[%s4 + $0x2d0] sm:$0xff]
  %v187 = vld [vmem:[%s4 + $0x2d8] sm:$0xf]
  %v188 = vld [vmem:[%s4 + $0x2dc] sm:$0xff]
  %v189 = vld [vmem:[%s4 + $0x2e4] sm:$0xf]
  %v190 = vld [vmem:[%s4 + $0x2e8] sm:$0xff]
  %v191 = vld [vmem:[%s4 + $0x2f0] sm:$0xf]
  %v192 = vld [vmem:[%s4 + $0x2f4] sm:$0xff]
  %v193 = vld [vmem:[%s4 + $0x2fc] sm:$0xf]
  %v194 = vld [vmem:[%s4 + $0x300] sm:$0xff]
  %v195 = vld [vmem:[%s4 + $0x308] sm:$0xf]
  %v196 = vld [vmem:[%s4 + $0x30c] sm:$0xff]
  %v197 = vld [vmem:[%s4 + $0x314] sm:$0xf]
  %v198 = vld [vmem:[%s4 + $0x318] sm:$0xff]
  %v199 = vld [vmem:[%s4 + $0x320] sm:$0xf]
  %v200 = vld [vmem:[%s4 + $0x324] sm:$0xff]
  %v201 = vld [vmem:[%s4 + $0x32c] sm:$0xf]
  %v202 = vld [vmem:[%s4 + $0x330] sm:$0xff]
  %v203 = vld [vmem:[%s4 + $0x338] sm:$0xf]
  %v204 = vld [vmem:[%s4 + $0x33c] sm:$0xff]
  %v205 = vld [vmem:[%s4 + $0x344] sm:$0xf]
  %v206 = vld [vmem:[%s4 + $0x348] sm:$0xff]
  %v207 = vld [vmem:[%s4 + $0x350] sm:$0xf]
  %v208 = vld [vmem:[%s4 + $0x354] sm:$0xff]
  %v209 = vld [vmem:[%s4 + $0x35c] sm:$0xf]
  %v210 = vld [vmem:[%s4 + $0x360] sm:$0xff]
  %v211 = vld [vmem:[%s4 + $0x368] sm:$0xf]
  %v212 = vld [vmem:[%s4 + $0x36c] sm:$0xff]
  %v213 = vld [vmem:[%s4 + $0x374] sm:$0xf]
  %v214 = vld [vmem:[%s4 + $0x378] sm:$0xff]
  %v215 = vld [vmem:[%s4 + $0x380] sm:$0xf]
  %v216 = vld [vmem:[%s4 + $0x384] sm:$0xff]
  %v217 = vld [vmem:[%s4 + $0x38c] sm:$0xf]
  %v218 = vld [vmem:[%s4 + $0x390] sm:$0xff]
  %v219 = vld [vmem:[%s4 + $0x398] sm:$0xf]
  %v220 = vld [vmem:[%s4 + $0x39c] sm:$0xff]
  %v221 = vld [vmem:[%s4 + $0x3a4] sm:$0xf]
  %v222 = vld [vmem:[%s4 + $0x3a8] sm:$0xff]
  %v223 = vld [vmem:[%s4 + $0x3b0] sm:$0xf]
  %v224 = vld [vmem:[%s4 + $0x3b4] sm:$0xff]
  %v225 = vld [vmem:[%s4 + $0x3bc] sm:$0xf]
  %v226 = vld [vmem:[%s4 + $0x3c0] sm:$0xff]
  %v227 = vld [vmem:[%s4 + $0x3c8] sm:$0xf]
  %v228 = vld [vmem:[%s4 + $0x3cc] sm:$0xff]
  %v229 = vld [vmem:[%s4 + $0x3d4] sm:$0xf]
  %v230 = vld [vmem:[%s4 + $0x3d8] sm:$0xff]
  %v231 = vld [vmem:[%s4 + $0x3e0] sm:$0xf]
  %v232 = vld [vmem:[%s4 + $0x3e4] sm:$0xff]
  %v233 = vld [vmem:[%s4 + $0x3ec] sm:$0xf]
  %v234 = vld [vmem:[%s4 + $0x3f0] sm:$0xff]
  %v235 = vld [vmem:[%s4 + $0x3f8] sm:$0xf]
  %v236 = vld [vmem:[%s4 + $0x3fc] sm:$0xff]
  %v237 = vld [vmem:[%s4 + $0x404] sm:$0xf]
  %v238 = vld [vmem:[%s4 + $0x408] sm:$0xff]
  %v239 = vld [vmem:[%s4 + $0x410] sm:$0xf]
  %v240 = vld [vmem:[%s4 + $0x414] sm:$0xff]
  %v241 = vld [vmem:[%s4 + $0x41c] sm:$0xf]
  %v242 = vld [vmem:[%s4 + $0x420] sm:$0xff]
  %v243 = vld [vmem:[%s4 + $0x428] sm:$0xf]
  %v244 = vld [vmem:[%s4 + $0x42c] sm:$0xff]
  %v245 = vld [vmem:[%s4 + $0x434] sm:$0xf]
  %v246 = vld [vmem:[%s4 + $0x438] sm:$0xff]
  %v247 = vld [vmem:[%s4 + $0x440] sm:$0xf]
  %v248 = vld [vmem:[%s4 + $0x444] sm:$0xff]
  %v249 = vld [vmem:[%s4 + $0x44c] sm:$0xf]
  %v250 = vld [vmem:[%s4 + $0x450] sm:$0xff]
  %v251 = vld [vmem:[%s4 + $0x458] sm:$0xf]
  %v252 = vld [vmem:[%s4 + $0x45c] sm:$0xff]
  %v253 = vld [vmem:[%s4 + $0x464] sm:$0xf]
  %v254 = vld [vmem:[%s4 + $0x468] sm:$0xff]
  %v255 = vld [vmem:[%s4 + $0x470] sm:$0xf]
  %v256 = vld [vmem:[%s4 + $0x474] sm:$0xff]
  %v257 = vld [vmem:[%s4 + $0x47c] sm:$0xf]
  %v258 = vld [vmem:[%s4 + $0x480] sm:$0xff]
  %v259 = vld [vmem:[%s4 + $0x488] sm:$0xf]
  %v260 = vld [vmem:[%s4 + $0x48c] sm:$0xff]
  %v261 = vld [vmem:[%s4 + $0x494] sm:$0xf]
  %v262 = vld [vmem:[%s2] sm:$0xff]
  %v263 = vld [vmem:[%s2 + $0x8] sm:$0xff]
  %v264 = vld [vmem:[%s2 + $0x10] sm:$0xff]
  %v269 = vunpack.c.l.b16 %v62
  %v270 = vunpack.c.h.b16 %v62
  %v271 = vunpack.c.l.b16 %v63
  %v272 = vunpack.c.h.b16 %v63
  %v273 = vunpack.c.l.b16 %v64
  %v274 = vunpack.c.h.b16 %v64
  %v275 = vunpack.c.l.b16 %v65
  %v276 = vpack.c.b16 %v269, %v269
  %v277 = vpack.c.b16 %v270, %v270
  %v278 = vpack.c.b16 %v271, %v271
  %v279 = vpack.c.b16 %v272, %v272
  %v280 = vpack.c.b16 %v273, %v273
  %v281 = vpack.c.b16 %v274, %v274
  %v282 = vpack.c.b16 %v275, %v275
  %v485 = vunpack.c.l.b16 %v66
  %v486 = vunpack.c.h.b16 %v66
  %v487 = vunpack.c.l.b16 %v67
  %v488 = vunpack.c.l.b16 %v68
  %v489 = vunpack.c.h.b16 %v68
  %v490 = vunpack.c.l.b16 %v69
  %v491 = vunpack.c.l.b16 %v70
  %v492 = vunpack.c.h.b16 %v70
  %v493 = vunpack.c.l.b16 %v71
  %v494 = vunpack.c.l.b16 %v72
  %v495 = vunpack.c.h.b16 %v72
  %v496 = vunpack.c.l.b16 %v73
  %v497 = vunpack.c.l.b16 %v74
  %v498 = vunpack.c.h.b16 %v74
  %v499 = vunpack.c.l.b16 %v75
  %v500 = vunpack.c.l.b16 %v76
  %v501 = vunpack.c.h.b16 %v76
  %v502 = vunpack.c.l.b16 %v77
  %v503 = vunpack.c.l.b16 %v78
  %v504 = vunpack.c.h.b16 %v78
  %v505 = vunpack.c.l.b16 %v79
  %v506 = vunpack.c.l.b16 %v80
  %v507 = vunpack.c.h.b16 %v80
  %v508 = vunpack.c.l.b16 %v81
  %v509 = vunpack.c.l.b16 %v82
  %v510 = vunpack.c.h.b16 %v82
  %v511 = vunpack.c.l.b16 %v83
  %v512 = vunpack.c.l.b16 %v84
  %v513 = vunpack.c.h.b16 %v84
  %v514 = vunpack.c.l.b16 %v85
  %v515 = vunpack.c.l.b16 %v86
  %v516 = vunpack.c.h.b16 %v86
  %v517 = vunpack.c.l.b16 %v87
  %v518 = vunpack.c.l.b16 %v88
  %v519 = vunpack.c.h.b16 %v88
  %v520 = vunpack.c.l.b16 %v89
  %v521 = vunpack.c.l.b16 %v90
  %v522 = vunpack.c.h.b16 %v90
  %v523 = vunpack.c.l.b16 %v91
  %v524 = vunpack.c.l.b16 %v92
  %v525 = vunpack.c.h.b16 %v92
  %v526 = vunpack.c.l.b16 %v93
  %v527 = vunpack.c.l.b16 %v94
  %v528 = vunpack.c.h.b16 %v94
  %v529 = vunpack.c.l.b16 %v95
  %v530 = vunpack.c.l.b16 %v96
  %v531 = vunpack.c.h.b16 %v96
  %v532 = vunpack.c.l.b16 %v97
  %v533 = vunpack.c.l.b16 %v98
  %v534 = vunpack.c.h.b16 %v98
  %v535 = vunpack.c.l.b16 %v99
  %v536 = vunpack.c.l.b16 %v100
  %v537 = vunpack.c.h.b16 %v100
  %v538 = vunpack.c.l.b16 %v101
  %v539 = vunpack.c.l.b16 %v102
  %v540 = vunpack.c.h.b16 %v102
  %v541 = vunpack.c.l.b16 %v103
  %v542 = vunpack.c.l.b16 %v104
  %v543 = vunpack.c.h.b16 %v104
  %v544 = vunpack.c.l.b16 %v105
  %v545 = vunpack.c.l.b16 %v106
  %v546 = vunpack.c.h.b16 %v106
  %v547 = vunpack.c.l.b16 %v107
  %v548 = vunpack.c.l.b16 %v108
  %v549 = vunpack.c.h.b16 %v108
  %v550 = vunpack.c.l.b16 %v109
  %v551 = vunpack.c.l.b16 %v110
  %v552 = vunpack.c.h.b16 %v110
  %v553 = vunpack.c.l.b16 %v111
  %v554 = vunpack.c.l.b16 %v112
  %v555 = vunpack.c.h.b16 %v112
  %v556 = vunpack.c.l.b16 %v113
  %v557 = vunpack.c.l.b16 %v114
  %v558 = vunpack.c.h.b16 %v114
  %v559 = vunpack.c.l.b16 %v115
  %v560 = vunpack.c.l.b16 %v116
  %v561 = vunpack.c.h.b16 %v116
  %v562 = vunpack.c.l.b16 %v117
  %v563 = vunpack.c.l.b16 %v118
  %v564 = vunpack.c.h.b16 %v118
  %v565 = vunpack.c.l.b16 %v119
  %v566 = vunpack.c.l.b16 %v120
  %v567 = vunpack.c.h.b16 %v120
  %v568 = vunpack.c.l.b16 %v121
  %v569 = vunpack.c.l.b16 %v122
  %v570 = vunpack.c.h.b16 %v122
  %v571 = vunpack.c.l.b16 %v123
  %v572 = vunpack.c.l.b16 %v124
  %v573 = vunpack.c.h.b16 %v124
  %v574 = vunpack.c.l.b16 %v125
  %v575 = vunpack.c.l.b16 %v126
  %v576 = vunpack.c.h.b16 %v126
  %v577 = vunpack.c.l.b16 %v127
  %v578 = vunpack.c.l.b16 %v128
  %v579 = vunpack.c.h.b16 %v128
  %v580 = vunpack.c.l.b16 %v129
  %v581 = vunpack.c.l.b16 %v130
  %v582 = vunpack.c.h.b16 %v130
  %v583 = vunpack.c.l.b16 %v131
  %v584 = vunpack.c.l.b16 %v132
  %v585 = vunpack.c.h.b16 %v132
  %v586 = vunpack.c.l.b16 %v133
  %v587 = vunpack.c.l.b16 %v134
  %v588 = vunpack.c.h.b16 %v134
  %v589 = vunpack.c.l.b16 %v135
  %v590 = vunpack.c.l.b16 %v136
  %v591 = vunpack.c.h.b16 %v136
  %v592 = vunpack.c.l.b16 %v137
  %v593 = vunpack.c.l.b16 %v138
  %v594 = vunpack.c.h.b16 %v138
  %v595 = vunpack.c.l.b16 %v139
  %v596 = vunpack.c.l.b16 %v140
  %v597 = vunpack.c.h.b16 %v140
  %v598 = vunpack.c.l.b16 %v141
  %v599 = vunpack.c.l.b16 %v142
  %v600 = vunpack.c.h.b16 %v142
  %v601 = vunpack.c.l.b16 %v143
  %v602 = vunpack.c.l.b16 %v144
  %v603 = vunpack.c.h.b16 %v144
  %v604 = vunpack.c.l.b16 %v145
  %v605 = vunpack.c.l.b16 %v146
  %v606 = vunpack.c.h.b16 %v146
  %v607 = vunpack.c.l.b16 %v147
  %v608 = vunpack.c.l.b16 %v148
  %v609 = vunpack.c.h.b16 %v148
  %v610 = vunpack.c.l.b16 %v149
  %v611 = vunpack.c.l.b16 %v150
  %v612 = vunpack.c.h.b16 %v150
  %v613 = vunpack.c.l.b16 %v151
  %v614 = vunpack.c.l.b16 %v152
  %v615 = vunpack.c.h.b16 %v152
  %v616 = vunpack.c.l.b16 %v153
  %v617 = vunpack.c.l.b16 %v154
  %v618 = vunpack.c.h.b16 %v154
  %v619 = vunpack.c.l.b16 %v155
  %v620 = vunpack.c.l.b16 %v156
  %v621 = vunpack.c.h.b16 %v156
  %v622 = vunpack.c.l.b16 %v157
  %v623 = vunpack.c.l.b16 %v158
  %v624 = vunpack.c.h.b16 %v158
  %v625 = vunpack.c.l.b16 %v159
  %v626 = vunpack.c.l.b16 %v160
  %v627 = vunpack.c.h.b16 %v160
  %v628 = vunpack.c.l.b16 %v161
  %v629 = vunpack.c.l.b16 %v162
  %v630 = vunpack.c.h.b16 %v162
  %v631 = vunpack.c.l.b16 %v163
  %v632 = vunpack.c.l.b16 %v164
  %v633 = vunpack.c.h.b16 %v164
  %v634 = vunpack.c.l.b16 %v165
  %v635 = vunpack.c.l.b16 %v166
  %v636 = vunpack.c.h.b16 %v166
  %v637 = vunpack.c.l.b16 %v167
  %v638 = vunpack.c.l.b16 %v168
  %v639 = vunpack.c.h.b16 %v168
  %v640 = vunpack.c.l.b16 %v169
  %v641 = vunpack.c.l.b16 %v170
  %v642 = vunpack.c.h.b16 %v170
  %v643 = vunpack.c.l.b16 %v171
  %v644 = vunpack.c.l.b16 %v172
  %v645 = vunpack.c.h.b16 %v172
  %v646 = vunpack.c.l.b16 %v173
  %v647 = vunpack.c.l.b16 %v174
  %v648 = vunpack.c.h.b16 %v174
  %v649 = vunpack.c.l.b16 %v175
  %v650 = vunpack.c.l.b16 %v176
  %v651 = vunpack.c.h.b16 %v176
  %v652 = vunpack.c.l.b16 %v177
  %v653 = vunpack.c.l.b16 %v178
  %v654 = vunpack.c.h.b16 %v178
  %v655 = vunpack.c.l.b16 %v179
  %v656 = vunpack.c.l.b16 %v180
  %v657 = vunpack.c.h.b16 %v180
  %v658 = vunpack.c.l.b16 %v181
  %v659 = vunpack.c.l.b16 %v182
  %v660 = vunpack.c.h.b16 %v182
  %v661 = vunpack.c.l.b16 %v183
  %v662 = vunpack.c.l.b16 %v184
  %v663 = vunpack.c.h.b16 %v184
  %v664 = vunpack.c.l.b16 %v185
  %v665 = vunpack.c.l.b16 %v186
  %v666 = vunpack.c.h.b16 %v186
  %v667 = vunpack.c.l.b16 %v187
  %v668 = vunpack.c.l.b16 %v188
  %v669 = vunpack.c.h.b16 %v188
  %v670 = vunpack.c.l.b16 %v189
  %v671 = vunpack.c.l.b16 %v190
  %v672 = vunpack.c.h.b16 %v190
  %v673 = vunpack.c.l.b16 %v191
  %v674 = vunpack.c.l.b16 %v192
  %v675 = vunpack.c.h.b16 %v192
  %v676 = vunpack.c.l.b16 %v193
  %v677 = vunpack.c.l.b16 %v194
  %v678 = vunpack.c.h.b16 %v194
  %v679 = vunpack.c.l.b16 %v195
  %v680 = vunpack.c.l.b16 %v196
  %v681 = vunpack.c.h.b16 %v196
  %v682 = vunpack.c.l.b16 %v197
  %v683 = vunpack.c.l.b16 %v198
  %v684 = vunpack.c.h.b16 %v198
  %v685 = vunpack.c.l.b16 %v199
  %v686 = vunpack.c.l.b16 %v200
  %v687 = vunpack.c.h.b16 %v200
  %v688 = vunpack.c.l.b16 %v201
  %v689 = vunpack.c.l.b16 %v202
  %v690 = vunpack.c.h.b16 %v202
  %v691 = vunpack.c.l.b16 %v203
  %v692 = vunpack.c.l.b16 %v204
  %v693 = vunpack.c.h.b16 %v204
  %v694 = vunpack.c.l.b16 %v205
  %v695 = vunpack.c.l.b16 %v206
  %v696 = vunpack.c.h.b16 %v206
  %v697 = vunpack.c.l.b16 %v207
  %v698 = vunpack.c.l.b16 %v208
  %v699 = vunpack.c.h.b16 %v208
  %v700 = vunpack.c.l.b16 %v209
  %v701 = vunpack.c.l.b16 %v210
  %v702 = vunpack.c.h.b16 %v210
  %v703 = vunpack.c.l.b16 %v211
  %v704 = vunpack.c.l.b16 %v212
  %v705 = vunpack.c.h.b16 %v212
  %v706 = vunpack.c.l.b16 %v213
  %v707 = vunpack.c.l.b16 %v214
  %v708 = vunpack.c.h.b16 %v214
  %v709 = vunpack.c.l.b16 %v215
  %v710 = vunpack.c.l.b16 %v216
  %v711 = vunpack.c.h.b16 %v216
  %v712 = vunpack.c.l.b16 %v217
  %v713 = vunpack.c.l.b16 %v218
  %v714 = vunpack.c.h.b16 %v218
  %v715 = vunpack.c.l.b16 %v219
  %v716 = vunpack.c.l.b16 %v220
  %v717 = vunpack.c.h.b16 %v220
  %v718 = vunpack.c.l.b16 %v221
  %v719 = vunpack.c.l.b16 %v222
  %v720 = vunpack.c.h.b16 %v222
  %v721 = vunpack.c.l.b16 %v223
  %v722 = vunpack.c.l.b16 %v224
  %v723 = vunpack.c.h.b16 %v224
  %v724 = vunpack.c.l.b16 %v225
  %v725 = vunpack.c.l.b16 %v226
  %v726 = vunpack.c.h.b16 %v226
  %v727 = vunpack.c.l.b16 %v227
  %v728 = vunpack.c.l.b16 %v228
  %v729 = vunpack.c.h.b16 %v228
  %v730 = vunpack.c.l.b16 %v229
  %v731 = vunpack.c.l.b16 %v230
  %v732 = vunpack.c.h.b16 %v230
  %v733 = vunpack.c.l.b16 %v231
  %v734 = vunpack.c.l.b16 %v232
  %v735 = vunpack.c.h.b16 %v232
  %v736 = vunpack.c.l.b16 %v233
  %v737 = vunpack.c.l.b16 %v234
  %v738 = vunpack.c.h.b16 %v234
  %v739 = vunpack.c.l.b16 %v235
  %v740 = vunpack.c.l.b16 %v236
  %v741 = vunpack.c.h.b16 %v236
  %v742 = vunpack.c.l.b16 %v237
  %v743 = vunpack.c.l.b16 %v238
  %v744 = vunpack.c.h.b16 %v238
  %v745 = vunpack.c.l.b16 %v239
  %v746 = vunpack.c.l.b16 %v240
  %v747 = vunpack.c.h.b16 %v240
  %v748 = vunpack.c.l.b16 %v241
  %v749 = vunpack.c.l.b16 %v242
  %v750 = vunpack.c.h.b16 %v242
  %v751 = vunpack.c.l.b16 %v243
  %v752 = vunpack.c.l.b16 %v244
  %v753 = vunpack.c.h.b16 %v244
  %v754 = vunpack.c.l.b16 %v245
  %v755 = vunpack.c.l.b16 %v246
  %v756 = vunpack.c.h.b16 %v246
  %v757 = vunpack.c.l.b16 %v247
  %v758 = vunpack.c.l.b16 %v248
  %v759 = vunpack.c.h.b16 %v248
  %v760 = vunpack.c.l.b16 %v249
  %v761 = vunpack.c.l.b16 %v250
  %v762 = vunpack.c.h.b16 %v250
  %v763 = vunpack.c.l.b16 %v251
  %v764 = vunpack.c.l.b16 %v252
  %v765 = vunpack.c.h.b16 %v252
  %v766 = vunpack.c.l.b16 %v253
  %v767 = vunpack.c.l.b16 %v254
  %v768 = vunpack.c.h.b16 %v254
  %v769 = vunpack.c.l.b16 %v255
  %v770 = vunpack.c.l.b16 %v256
  %v771 = vunpack.c.h.b16 %v256
  %v772 = vunpack.c.l.b16 %v257
  %v773 = vunpack.c.l.b16 %v258
  %v774 = vunpack.c.h.b16 %v258
  %v775 = vunpack.c.l.b16 %v259
  %v776 = vunpack.c.l.b16 %v260
  %v777 = vunpack.c.h.b16 %v260
  %v778 = vunpack.c.l.b16 %v261
  %v779 = vpack.c.b16 %v488, %v485
  %v780 = vpack.c.b16 %v489, %v486
  %v781 = vpack.c.b16 %v490, %v487
  %v782 = vpack.c.b16 %v494, %v491
  %v783 = vpack.c.b16 %v495, %v492
  %v784 = vpack.c.b16 %v496, %v493
  %v785 = vpack.c.b16 %v500, %v497
  %v786 = vpack.c.b16 %v501, %v498
  %v787 = vpack.c.b16 %v502, %v499
  %v788 = vpack.c.b16 %v506, %v503
  %v789 = vpack.c.b16 %v507, %v504
  %v790 = vpack.c.b16 %v508, %v505
  %v791 = vpack.c.b16 %v512, %v509
  %v792 = vpack.c.b16 %v513, %v510
  %v793 = vpack.c.b16 %v514, %v511
  %v794 = vpack.c.b16 %v518, %v515
  %v795 = vpack.c.b16 %v519, %v516
  %v796 = vpack.c.b16 %v520, %v517
  %v797 = vpack.c.b16 %v524, %v521
  %v798 = vpack.c.b16 %v525, %v522
  %v799 = vpack.c.b16 %v526, %v523
  %v800 = vpack.c.b16 %v530, %v527
  %v801 = vpack.c.b16 %v531, %v528
  %v802 = vpack.c.b16 %v532, %v529
  %v803 = vpack.c.b16 %v536, %v533
  %v804 = vpack.c.b16 %v537, %v534
  %v805 = vpack.c.b16 %v538, %v535
  %v806 = vpack.c.b16 %v542, %v539
  %v807 = vpack.c.b16 %v543, %v540
  %v808 = vpack.c.b16 %v544, %v541
  %v809 = vpack.c.b16 %v548, %v545
  %v810 = vpack.c.b16 %v549, %v546
  %v811 = vpack.c.b16 %v550, %v547
  %v812 = vpack.c.b16 %v554, %v551
  %v813 = vpack.c.b16 %v555, %v552
  %v814 = vpack.c.b16 %v556, %v553
  %v815 = vpack.c.b16 %v560, %v557
  %v816 = vpack.c.b16 %v561, %v558
  %v817 = vpack.c.b16 %v562, %v559
  %v818 = vpack.c.b16 %v566, %v563
  %v819 = vpack.c.b16 %v567, %v564
  %v820 = vpack.c.b16 %v568, %v565
  %v821 = vpack.c.b16 %v572, %v569
  %v822 = vpack.c.b16 %v573, %v570
  %v823 = vpack.c.b16 %v574, %v571
  %v824 = vpack.c.b16 %v578, %v575
  %v825 = vpack.c.b16 %v579, %v576
  %v826 = vpack.c.b16 %v580, %v577
  %v827 = vpack.c.b16 %v584, %v581
  %v828 = vpack.c.b16 %v585, %v582
  %v829 = vpack.c.b16 %v586, %v583
  %v830 = vpack.c.b16 %v590, %v587
  %v831 = vpack.c.b16 %v591, %v588
  %v832 = vpack.c.b16 %v592, %v589
  %v833 = vpack.c.b16 %v596, %v593
  %v834 = vpack.c.b16 %v597, %v594
  %v835 = vpack.c.b16 %v598, %v595
  %v836 = vpack.c.b16 %v602, %v599
  %v837 = vpack.c.b16 %v603, %v600
  %v838 = vpack.c.b16 %v604, %v601
  %v839 = vpack.c.b16 %v608, %v605
  %v840 = vpack.c.b16 %v609, %v606
  %v841 = vpack.c.b16 %v610, %v607
  %v842 = vpack.c.b16 %v614, %v611
  %v843 = vpack.c.b16 %v615, %v612
  %v844 = vpack.c.b16 %v616, %v613
  %v845 = vpack.c.b16 %v620, %v617
  %v846 = vpack.c.b16 %v621, %v618
  %v847 = vpack.c.b16 %v622, %v619
  %v848 = vpack.c.b16 %v626, %v623
  %v849 = vpack.c.b16 %v627, %v624
  %v850 = vpack.c.b16 %v628, %v625
  %v851 = vpack.c.b16 %v632, %v629
  %v852 = vpack.c.b16 %v633, %v630
  %v853 = vpack.c.b16 %v634, %v631
  %v854 = vpack.c.b16 %v638, %v635
  %v855 = vpack.c.b16 %v639, %v636
  %v856 = vpack.c.b16 %v640, %v637
  %v857 = vpack.c.b16 %v644, %v641
  %v858 = vpack.c.b16 %v645, %v642
  %v859 = vpack.c.b16 %v646, %v643
  %v860 = vpack.c.b16 %v650, %v647
  %v861 = vpack.c.b16 %v651, %v648
  %v862 = vpack.c.b16 %v652, %v649
  %v863 = vpack.c.b16 %v656, %v653
  %v864 = vpack.c.b16 %v657, %v654
  %v865 = vpack.c.b16 %v658, %v655
  %v866 = vpack.c.b16 %v662, %v659
  %v867 = vpack.c.b16 %v663, %v660
  %v868 = vpack.c.b16 %v664, %v661
  %v869 = vpack.c.b16 %v668, %v665
  %v870 = vpack.c.b16 %v669, %v666
  %v871 = vpack.c.b16 %v670, %v667
  %v872 = vpack.c.b16 %v674, %v671
  %v873 = vpack.c.b16 %v675, %v672
  %v874 = vpack.c.b16 %v676, %v673
  %v875 = vpack.c.b16 %v680, %v677
  %v876 = vpack.c.b16 %v681, %v678
  %v877 = vpack.c.b16 %v682, %v679
  %v878 = vpack.c.b16 %v686, %v683
  %v879 = vpack.c.b16 %v687, %v684
  %v880 = vpack.c.b16 %v688, %v685
  %v881 = vpack.c.b16 %v692, %v689
  %v882 = vpack.c.b16 %v693, %v690
  %v883 = vpack.c.b16 %v694, %v691
  %v884 = vpack.c.b16 %v698, %v695
  %v885 = vpack.c.b16 %v699, %v696
  %v886 = vpack.c.b16 %v700, %v697
  %v887 = vpack.c.b16 %v704, %v701
  %v888 = vpack.c.b16 %v705, %v702
  %v889 = vpack.c.b16 %v706, %v703
  %v890 = vpack.c.b16 %v710, %v707
  %v891 = vpack.c.b16 %v711, %v708
  %v892 = vpack.c.b16 %v712, %v709
  %v893 = vpack.c.b16 %v716, %v713
  %v894 = vpack.c.b16 %v717, %v714
  %v895 = vpack.c.b16 %v718, %v715
  %v896 = vpack.c.b16 %v722, %v719
  %v897 = vpack.c.b16 %v723, %v720
  %v898 = vpack.c.b16 %v724, %v721
  %v899 = vpack.c.b16 %v728, %v725
  %v900 = vpack.c.b16 %v729, %v726
  %v901 = vpack.c.b16 %v730, %v727
  %v902 = vpack.c.b16 %v734, %v731
  %v903 = vpack.c.b16 %v735, %v732
  %v904 = vpack.c.b16 %v736, %v733
  %v905 = vpack.c.b16 %v740, %v737
  %v906 = vpack.c.b16 %v741, %v738
  %v907 = vpack.c.b16 %v742, %v739
  %v908 = vpack.c.b16 %v746, %v743
  %v909 = vpack.c.b16 %v747, %v744
  %v910 = vpack.c.b16 %v748, %v745
  %v911 = vpack.c.b16 %v752, %v749
  %v912 = vpack.c.b16 %v753, %v750
  %v913 = vpack.c.b16 %v754, %v751
  %v914 = vpack.c.b16 %v758, %v755
  %v915 = vpack.c.b16 %v759, %v756
  %v916 = vpack.c.b16 %v760, %v757
  %v917 = vpack.c.b16 %v764, %v761
  %v918 = vpack.c.b16 %v765, %v762
  %v919 = vpack.c.b16 %v766, %v763
  %v920 = vpack.c.b16 %v770, %v767
  %v921 = vpack.c.b16 %v771, %v768
  %v922 = vpack.c.b16 %v772, %v769
  %v923 = vpack.c.b16 %v776, %v773
  %v924 = vpack.c.b16 %v777, %v774
  %v925 = vpack.c.b16 %v778, %v775
  %vm1073 = vcmask 130048
  %v1075 = vsel %vm1073, %v282, 0
  %1077 = vmatprep.subr.bf16.mxu0 %v780
  %1078 = vmatpush1.bf16.msra.mxu0 %v779
  %1079 = vmatprep.subr.bf16.mxu0 %v783
  %1080 = vmatpush1.bf16.msra.mxu0 %v782
  %1081 = vmatprep.subr.bf16.mxu0 %v786
  %1082 = vmatpush1.bf16.msra.mxu0 %v785
  %1083 = vmatprep.subr.bf16.mxu0 %v789
  %1084 = vmatpush1.bf16.msra.mxu0 %v788
  %1085 = vmatprep.subr.bf16.mxu0 %v792
  %1086 = vmatpush1.bf16.msra.mxu0 %v791
  %1087 = vmatprep.subr.bf16.mxu0 %v795
  %1088 = vmatpush1.bf16.msra.mxu0 %v794
  %1089 = vmatprep.subr.bf16.mxu0 %v798
  %1090 = vmatpush1.bf16.msra.mxu0 %v797
  %1091 = vmatprep.subr.bf16.mxu0 %v801
  %1092 = vmatpush1.bf16.msra.mxu0 %v800
  %1093 = vmatprep.subr.bf16.mxu0 %v804
  %1094 = vmatpush1.bf16.msra.mxu0 %v803
  %1095 = vmatprep.subr.bf16.mxu0 %v807
  %1096 = vmatpush1.bf16.msra.mxu0 %v806
  %1097 = vmatprep.subr.bf16.mxu0 %v810
  %1098 = vmatpush1.bf16.msra.mxu0 %v809
  %1099 = vmatprep.subr.bf16.mxu0 %v813
  %1100 = vmatpush1.bf16.msra.mxu0 %v812
  %1101 = vmatprep.subr.bf16.mxu0 %v816
  %1102 = vmatpush1.bf16.msra.mxu0 %v815
  %1103 = vmatprep.subr.bf16.mxu0 %v819
  %1104 = vmatpush1.bf16.msra.mxu0 %v818
  %1105 = vmatprep.subr.bf16.mxu0 %v822
  %1106 = vmatpush1.bf16.msra.mxu0 %v821
  %1107 = vmatprep.subr.bf16.mxu0 %v825
  %1108 = vmatpush1.bf16.msra.mxu0 %v824
  %1109 = vmatprep.mubr.bf16.mxu0 %v277
  %1110 = vmatmul.mubr.bf16.gmra.mrb[0].mxu0 %v276
  %v1111 = vpop.f32.mrb[0].mxu0
  %v1112 = vadd.f32 %v262, %v1111
  %v1113 = vpop.f32.mrb[0].mxu0
  %v1114 = vadd.f32 %v263, %v1113
  %v1115 = vpop.f32.mrb[0].mxu0
  %v1116 = vpop.f32.mrb[0].mxu0
  %1117 = vdwg.mxu0
  %1118 = vmatprep.subr.bf16.mxu0 %v828
  %1119 = vmatpush1.bf16.msra.mxu0 %v827
  %1120 = vmatprep.subr.bf16.mxu0 %v831
  %1121 = vmatpush1.bf16.msra.mxu0 %v830
  %1122 = vmatprep.subr.bf16.mxu0 %v834
  %1123 = vmatpush1.bf16.msra.mxu0 %v833
  %1124 = vmatprep.subr.bf16.mxu0 %v837
  %1125 = vmatpush1.bf16.msra.mxu0 %v836
  %1126 = vmatprep.subr.bf16.mxu0 %v840
  %1127 = vmatpush1.bf16.msra.mxu0 %v839
  %1128 = vmatprep.subr.bf16.mxu0 %v843
  %1129 = vmatpush1.bf16.msra.mxu0 %v842
  %1130 = vmatprep.subr.bf16.mxu0 %v846
  %1131 = vmatpush1.bf16.msra.mxu0 %v845
  %1132 = vmatprep.subr.bf16.mxu0 %v849
  %1133 = vmatpush1.bf16.msra.mxu0 %v848
  %1134 = vmatprep.subr.bf16.mxu0 %v852
  %1135 = vmatpush1.bf16.msra.mxu0 %v851
  %1136 = vmatprep.subr.bf16.mxu0 %v855
  %1137 = vmatpush1.bf16.msra.mxu0 %v854
  %1138 = vmatprep.subr.bf16.mxu0 %v858
  %1139 = vmatpush1.bf16.msra.mxu0 %v857
  %1140 = vmatprep.subr.bf16.mxu0 %v861
  %1141 = vmatpush1.bf16.msra.mxu0 %v860
  %1142 = vmatprep.subr.bf16.mxu0 %v864
  %1143 = vmatpush1.bf16.msra.mxu0 %v863
  %1144 = vmatprep.subr.bf16.mxu0 %v867
  %1145 = vmatpush1.bf16.msra.mxu0 %v866
  %1146 = vmatprep.subr.bf16.mxu0 %v870
  %1147 = vmatpush1.bf16.msra.mxu0 %v869
  %1148 = vmatprep.subr.bf16.mxu0 %v873
  %1149 = vmatpush1.bf16.msra.mxu0 %v872
  %1150 = vmatprep.mubr.bf16.mxu0 %v279
  %1151 = vmatmul.mubr.bf16.gmra.mrb[0].mxu0 %v278
  %v1152 = vpop.f32.mrb[0].mxu0
  %v1153 = vadd.f32 %v1112, %v1152
  %v1154 = vpop.f32.mrb[0].mxu0
  %v1155 = vadd.f32 %v1114, %v1154
  %v1156 = vpop.f32.mrb[0].mxu0
  %v1157 = vpop.f32.mrb[0].mxu0
  %1158 = vdwg.mxu0
  %1159 = vmatprep.subr.bf16.mxu0 %v876
  %1160 = vmatpush1.bf16.msra.mxu0 %v875
  %1161 = vmatprep.subr.bf16.mxu0 %v879
  %1162 = vmatpush1.bf16.msra.mxu0 %v878
  %1163 = vmatprep.subr.bf16.mxu0 %v882
  %1164 = vmatpush1.bf16.msra.mxu0 %v881
  %1165 = vmatprep.subr.bf16.mxu0 %v885
  %1166 = vmatpush1.bf16.msra.mxu0 %v884
  %1167 = vmatprep.subr.bf16.mxu0 %v888
  %1168 = vmatpush1.bf16.msra.mxu0 %v887
  %1169 = vmatprep.subr.bf16.mxu0 %v891
  %1170 = vmatpush1.bf16.msra.mxu0 %v890
  %1171 = vmatprep.subr.bf16.mxu0 %v894
  %1172 = vmatpush1.bf16.msra.mxu0 %v893
  %1173 = vmatprep.subr.bf16.mxu0 %v897
  %1174 = vmatpush1.bf16.msra.mxu0 %v896
  %1175 = vmatprep.subr.bf16.mxu0 %v900
  %1176 = vmatpush1.bf16.msra.mxu0 %v899
  %1177 = vmatprep.subr.bf16.mxu0 %v903
  %1178 = vmatpush1.bf16.msra.mxu0 %v902
  %1179 = vmatprep.subr.bf16.mxu0 %v906
  %1180 = vmatpush1.bf16.msra.mxu0 %v905
  %1181 = vmatprep.subr.bf16.mxu0 %v909
  %1182 = vmatpush1.bf16.msra.mxu0 %v908
  %1183 = vmatprep.subr.bf16.mxu0 %v912
  %1184 = vmatpush1.bf16.msra.mxu0 %v911
  %1185 = vmatprep.subr.bf16.mxu0 %v915
  %1186 = vmatpush1.bf16.msra.mxu0 %v914
  %1187 = vmatprep.subr.bf16.mxu0 %v918
  %1188 = vmatpush1.bf16.msra.mxu0 %v917
  %1189 = vmatprep.subr.bf16.mxu0 %v921
  %1190 = vmatpush1.bf16.msra.mxu0 %v920
  %1191 = vmatprep.mubr.bf16.mxu0 %v281
  %1192 = vmatmul.mubr.bf16.gmra.mrb[0].mxu0 %v280
  %v1193 = vpop.f32.mrb[0].mxu0
  %v1194 = vadd.f32 %v1153, %v1193
  %v1195 = vpop.f32.mrb[0].mxu0
  %v1196 = vadd.f32 %v1155, %v1195
  %v1197 = vpop.f32.mrb[0].mxu0
  %v1198 = vpop.f32.mrb[0].mxu0
  %1199 = vdwg.mxu0
  %1200 = vmatprep.subr.bf16.mxu0 %v924
  %1201 = vmatpush1.bf16.msra.mxu0 %v923
  %1202 = vmatprep.subr.bf16.mxu0 0
  %1203 = vmatpush1.bf16.msra.mxu0 0
  %1204 = vmatprep.subr.bf16.mxu0 0
  %1205 = vmatpush1.bf16.msra.mxu0 0
  %1206 = vmatprep.subr.bf16.mxu0 0
  %1207 = vmatpush1.bf16.msra.mxu0 0
  %1208 = vmatprep.subr.bf16.mxu0 0
  %1209 = vmatpush1.bf16.msra.mxu0 0
  %1210 = vmatprep.subr.bf16.mxu0 0
  %1211 = vmatpush1.bf16.msra.mxu0 0
  %1212 = vmatprep.subr.bf16.mxu0 0
  %1213 = vmatpush1.bf16.msra.mxu0 0
  %1214 = vmatprep.subr.bf16.mxu0 0
  %1215 = vmatpush1.bf16.msra.mxu0 0
  %1216 = vmatprep.subr.bf16.mxu0 0
  %1217 = vmatpush1.bf16.msra.mxu0 0
  %1218 = vmatprep.subr.bf16.mxu0 0
  %1219 = vmatpush1.bf16.msra.mxu0 0
  %1220 = vmatprep.subr.bf16.mxu0 0
  %1221 = vmatpush1.bf16.msra.mxu0 0
  %1222 = vmatprep.subr.bf16.mxu0 0
  %1223 = vmatpush1.bf16.msra.mxu0 0
  %1224 = vmatprep.subr.bf16.mxu0 0
  %1225 = vmatpush1.bf16.msra.mxu0 0
  %1226 = vmatprep.subr.bf16.mxu0 0
  %1227 = vmatpush1.bf16.msra.mxu0 0
  %1228 = vmatprep.subr.bf16.mxu0 0
  %1229 = vmatpush1.bf16.msra.mxu0 0
  %1230 = vmatprep.subr.bf16.mxu0 0
  %1231 = vmatpush1.bf16.msra.mxu0 0
  %1232 = vmatprep.mubr.bf16.mxu0 0
  %1233 = vmatmul.mubr.bf16.gmra.mrb[0].mxu0 %v1075
  %v1234 = vpop.f32.mrb[0].mxu0
  %v1235 = vadd.f32 %v1194, %v1234
  %v1236 = vpop.f32.mrb[0].mxu0
  %v1237 = vadd.f32 %v1196, %v1236
  %v1238 = vpop.f32.mrb[0].mxu0
  %v1239 = vpop.f32.mrb[0].mxu0
  %1240 = vdwg.mxu0
  %1241 = vmatprep.subr.bf16.mxu0 0
  %1242 = vmatpush1.bf16.msra.mxu0 %v781
  %1243 = vmatprep.subr.bf16.mxu0 0
  %1244 = vmatpush1.bf16.msra.mxu0 %v784
  %1245 = vmatprep.subr.bf16.mxu0 0
  %1246 = vmatpush1.bf16.msra.mxu0 %v787
  %1247 = vmatprep.subr.bf16.mxu0 0
  %1248 = vmatpush1.bf16.msra.mxu0 %v790
  %1249 = vmatprep.subr.bf16.mxu0 0
  %1250 = vmatpush1.bf16.msra.mxu0 %v793
  %1251 = vmatprep.subr.bf16.mxu0 0
  %1252 = vmatpush1.bf16.msra.mxu0 %v796
  %1253 = vmatprep.subr.bf16.mxu0 0
  %1254 = vmatpush1.bf16.msra.mxu0 %v799
  %1255 = vmatprep.subr.bf16.mxu0 0
  %1256 = vmatpush1.bf16.msra.mxu0 %v802
  %1257 = vmatprep.subr.bf16.mxu0 0
  %1258 = vmatpush1.bf16.msra.mxu0 %v805
  %1259 = vmatprep.subr.bf16.mxu0 0
  %1260 = vmatpush1.bf16.msra.mxu0 %v808
  %1261 = vmatprep.subr.bf16.mxu0 0
  %1262 = vmatpush1.bf16.msra.mxu0 %v811
  %1263 = vmatprep.subr.bf16.mxu0 0
  %1264 = vmatpush1.bf16.msra.mxu0 %v814
  %1265 = vmatprep.subr.bf16.mxu0 0
  %1266 = vmatpush1.bf16.msra.mxu0 %v817
  %1267 = vmatprep.subr.bf16.mxu0 0
  %1268 = vmatpush1.bf16.msra.mxu0 %v820
  %1269 = vmatprep.subr.bf16.mxu0 0
  %1270 = vmatpush1.bf16.msra.mxu0 %v823
  %1271 = vmatprep.subr.bf16.mxu0 0
  %1272 = vmatpush1.bf16.msra.mxu0 %v826
  %1273 = vmatprep.mubr.bf16.mxu0 %v277
  %1274 = vmatmul.mubr.bf16.gmra.mrb[0].mxu0 %v276
  %v1275 = vpop.f32.mrb[0].mxu0
  %v1276 = vadd.f32 %v264, %v1275
  %v1277 = vpop.f32.mrb[0].mxu0
  %v1278 = vpop.f32.mrb[0].mxu0
  %v1279 = vpop.f32.mrb[0].mxu0
  %1280 = vdwg.mxu0
  %1281 = vmatprep.subr.bf16.mxu0 0
  %1282 = vmatpush1.bf16.msra.mxu0 %v829
  %1283 = vmatprep.subr.bf16.mxu0 0
  %1284 = vmatpush1.bf16.msra.mxu0 %v832
  %1285 = vmatprep.subr.bf16.mxu0 0
  %1286 = vmatpush1.bf16.msra.mxu0 %v835
  %1287 = vmatprep.subr.bf16.mxu0 0
  %1288 = vmatpush1.bf16.msra.mxu0 %v838
  %1289 = vmatprep.subr.bf16.mxu0 0
  %1290 = vmatpush1.bf16.msra.mxu0 %v841
  %1291 = vmatprep.subr.bf16.mxu0 0
  %1292 = vmatpush1.bf16.msra.mxu0 %v844
  %1293 = vmatprep.subr.bf16.mxu0 0
  %1294 = vmatpush1.bf16.msra.mxu0 %v847
  %1295 = vmatprep.subr.bf16.mxu0 0
  %1296 = vmatpush1.bf16.msra.mxu0 %v850
  %1297 = vmatprep.subr.bf16.mxu0 0
  %1298 = vmatpush1.bf16.msra.mxu0 %v853
  %1299 = vmatprep.subr.bf16.mxu0 0
  %1300 = vmatpush1.bf16.msra.mxu0 %v856
  %1301 = vmatprep.subr.bf16.mxu0 0
  %1302 = vmatpush1.bf16.msra.mxu0 %v859
  %1303 = vmatprep.subr.bf16.mxu0 0
  %1304 = vmatpush1.bf16.msra.mxu0 %v862
  %1305 = vmatprep.subr.bf16.mxu0 0
  %1306 = vmatpush1.bf16.msra.mxu0 %v865
  %1307 = vmatprep.subr.bf16.mxu0 0
  %1308 = vmatpush1.bf16.msra.mxu0 %v868
  %1309 = vmatprep.subr.bf16.mxu0 0
  %1310 = vmatpush1.bf16.msra.mxu0 %v871
  %1311 = vmatprep.subr.bf16.mxu0 0
  %1312 = vmatpush1.bf16.msra.mxu0 %v874
  %1313 = vmatprep.mubr.bf16.mxu0 %v279
  %1314 = vmatmul.mubr.bf16.gmra.mrb[0].mxu0 %v278
  %v1315 = vpop.f32.mrb[0].mxu0
  %v1316 = vadd.f32 %v1276, %v1315
  %v1317 = vpop.f32.mrb[0].mxu0
  %v1318 = vpop.f32.mrb[0].mxu0
  %v1319 = vpop.f32.mrb[0].mxu0
  %1320 = vdwg.mxu0
  %1321 = vmatprep.subr.bf16.mxu0 0
  %1322 = vmatpush1.bf16.msra.mxu0 %v877
  %1323 = vmatprep.subr.bf16.mxu0 0
  %1324 = vmatpush1.bf16.msra.mxu0 %v880
  %1325 = vmatprep.subr.bf16.mxu0 0
  %1326 = vmatpush1.bf16.msra.mxu0 %v883
  %1327 = vmatprep.subr.bf16.mxu0 0
  %1328 = vmatpush1.bf16.msra.mxu0 %v886
  %1329 = vmatprep.subr.bf16.mxu0 0
  %1330 = vmatpush1.bf16.msra.mxu0 %v889
  %1331 = vmatprep.subr.bf16.mxu0 0
  %1332 = vmatpush1.bf16.msra.mxu0 %v892
  %1333 = vmatprep.subr.bf16.mxu0 0
  %1334 = vmatpush1.bf16.msra.mxu0 %v895
  %1335 = vmatprep.subr.bf16.mxu0 0
  %1336 = vmatpush1.bf16.msra.mxu0 %v898
  %1337 = vmatprep.subr.bf16.mxu0 0
  %1338 = vmatpush1.bf16.msra.mxu0 %v901
  %1339 = vmatprep.subr.bf16.mxu0 0
  %1340 = vmatpush1.bf16.msra.mxu0 %v904
  %1341 = vmatprep.subr.bf16.mxu0 0
  %1342 = vmatpush1.bf16.msra.mxu0 %v907
  %1343 = vmatprep.subr.bf16.mxu0 0
  %1344 = vmatpush1.bf16.msra.mxu0 %v910
  %1345 = vmatprep.subr.bf16.mxu0 0
  %1346 = vmatpush1.bf16.msra.mxu0 %v913
  %1347 = vmatprep.subr.bf16.mxu0 0
  %1348 = vmatpush1.bf16.msra.mxu0 %v916
  %1349 = vmatprep.subr.bf16.mxu0 0
  %1350 = vmatpush1.bf16.msra.mxu0 %v919
  %1351 = vmatprep.subr.bf16.mxu0 0
  %1352 = vmatpush1.bf16.msra.mxu0 %v922
  %1353 = vmatprep.mubr.bf16.mxu0 %v281
  %1354 = vmatmul.mubr.bf16.gmra.mrb[0].mxu0 %v280
  %v1355 = vpop.f32.mrb[0].mxu0
  %v1356 = vadd.f32 %v1316, %v1355
  %v1357 = vpop.f32.mrb[0].mxu0
  %v1358 = vpop.f32.mrb[0].mxu0
  %v1359 = vpop.f32.mrb[0].mxu0
  %1360 = vdwg.mxu0
  %1361 = vmatprep.subr.bf16.mxu0 0
  %1362 = vmatpush1.bf16.msra.mxu0 %v925
  %1363 = vmatprep.subr.bf16.mxu0 0
  %1364 = vmatpush1.bf16.msra.mxu0 0
  %1365 = vmatprep.subr.bf16.mxu0 0
  %1366 = vmatpush1.bf16.msra.mxu0 0
  %1367 = vmatprep.subr.bf16.mxu0 0
  %1368 = vmatpush1.bf16.msra.mxu0 0
  %1369 = vmatprep.subr.bf16.mxu0 0
  %1370 = vmatpush1.bf16.msra.mxu0 0
  %1371 = vmatprep.subr.bf16.mxu0 0
  %1372 = vmatpush1.bf16.msra.mxu0 0
  %1373 = vmatprep.subr.bf16.mxu0 0
  %1374 = vmatpush1.bf16.msra.mxu0 0
  %1375 = vmatprep.subr.bf16.mxu0 0
  %1376 = vmatpush1.bf16.msra.mxu0 0
  %1377 = vmatprep.subr.bf16.mxu0 0
  %1378 = vmatpush1.bf16.msra.mxu0 0
  %1379 = vmatprep.subr.bf16.mxu0 0
  %1380 = vmatpush1.bf16.msra.mxu0 0
  %1381 = vmatprep.subr.bf16.mxu0 0
  %1382 = vmatpush1.bf16.msra.mxu0 0
  %1383 = vmatprep.subr.bf16.mxu0 0
  %1384 = vmatpush1.bf16.msra.mxu0 0
  %1385 = vmatprep.subr.bf16.mxu0 0
  %1386 = vmatpush1.bf16.msra.mxu0 0
  %1387 = vmatprep.subr.bf16.mxu0 0
  %1388 = vmatpush1.bf16.msra.mxu0 0
  %1389 = vmatprep.subr.bf16.mxu0 0
  %1390 = vmatpush1.bf16.msra.mxu0 0
  %1391 = vmatprep.subr.bf16.mxu0 0
  %1392 = vmatpush1.bf16.msra.mxu0 0
  %1393 = vmatprep.mubr.bf16.mxu0 0
  %1394 = vmatmul.mubr.bf16.gmra.mrb[0].mxu0 %v1075
  %v1395 = vpop.f32.mrb[0].mxu0
  %v1396 = vadd.f32 %v1356, %v1395
  %v1397 = vpop.f32.mrb[0].mxu0
  %v1398 = vpop.f32.mrb[0].mxu0
  %v1399 = vpop.f32.mrb[0].mxu0
  %1400 = vdwg.mxu0
  %v1401 = vmax.f32 %v1235, 0.0
  %v1402 = vmax.f32 %v1237, 0.0
  %v1403 = vmax.f32 %v1396, 0.0
  %v1404 = vpack.c.bf16 %v1401, %v1401
  %v1405 = vpack.c.bf16 %v1402, %v1402
  %v1406 = vpack.c.bf16 %v1403, %v1403
  %v1407 = vld [vmem:[%s5] sm:$0xff]
  %v1408 = vld [vmem:[%s5 + $0x8] sm:$0xff]
  %v1409 = vld [vmem:[%s5 + $0x10] sm:$0xff]
  %v1410 = vld [vmem:[%s5 + $0x18] sm:$0xff]
  %v1411 = vld [vmem:[%s5 + $0x20] sm:$0xff]
  %v1412 = vld [vmem:[%s5 + $0x28] sm:$0xff]
  %v1413 = vld [vmem:[%s5 + $0x30] sm:$0xff]
  %v1414 = vld [vmem:[%s5 + $0x38] sm:$0xff]
  %v1415 = vld [vmem:[%s5 + $0x40] sm:$0xff]
  %v1416 = vld [vmem:[%s5 + $0x48] sm:$0xff]
  %v1417 = vld [vmem:[%s5 + $0x50] sm:$0xff]
  %v1418 = vld [vmem:[%s5 + $0x58] sm:$0xff]
  %v1419 = vld [vmem:[%s5 + $0x60] sm:$0xff]
  %v1420 = vld [vmem:[%s5 + $0x68] sm:$0xff]
  %v1421 = vld [vmem:[%s5 + $0x70] sm:$0xff]
  %v1422 = vld [vmem:[%s5 + $0x78] sm:$0xff]
  %v1423 = vld [vmem:[%s5 + $0x80] sm:$0xff]
  %v1424 = vld [vmem:[%s5 + $0x88] sm:$0xff]
  %v1425 = vld [vmem:[%s5 + $0x90] sm:$0xff]
  %v1426 = vld [vmem:[%s5 + $0x98] sm:$0xff]
  %v1427 = vld [vmem:[%s5 + $0xa0] sm:$0xff]
  %v1428 = vld [vmem:[%s5 + $0xa8] sm:$0xff]
  %v1429 = vld [vmem:[%s5 + $0xb0] sm:$0xff]
  %v1430 = vld [vmem:[%s5 + $0xb8] sm:$0xff]
  %v1431 = vld [vmem:[%s5 + $0xc0] sm:$0xff]
  %v1432 = vld [vmem:[%s5 + $0xc8] sm:$0xff]
  %v1433 = vld [vmem:[%s5 + $0xd0] sm:$0xff]
  %v1434 = vld [vmem:[%s5 + $0xd8] sm:$0xff]
  %v1435 = vld [vmem:[%s5 + $0xe0] sm:$0xff]
  %v1436 = vld [vmem:[%s5 + $0xe8] sm:$0xff]
  %v1437 = vld [vmem:[%s5 + $0xf0] sm:$0xff]
  %v1438 = vld [vmem:[%s5 + $0xf8] sm:$0xff]
  %v1439 = vld [vmem:[%s5 + $0x100] sm:$0xff]
  %v1440 = vld [vmem:[%s5 + $0x108] sm:$0xff]
  %v1441 = vld [vmem:[%s5 + $0x110] sm:$0xff]
  %v1442 = vld [vmem:[%s5 + $0x118] sm:$0xff]
  %v1443 = vld [vmem:[%s5 + $0x120] sm:$0xff]
  %v1444 = vld [vmem:[%s5 + $0x128] sm:$0xff]
  %v1445 = vld [vmem:[%s5 + $0x130] sm:$0xff]
  %v1446 = vld [vmem:[%s5 + $0x138] sm:$0xff]
  %v1447 = vld [vmem:[%s5 + $0x140] sm:$0xff]
  %v1448 = vld [vmem:[%s5 + $0x148] sm:$0xff]
  %v1449 = vld [vmem:[%s5 + $0x150] sm:$0xff]
  %v1450 = vld [vmem:[%s5 + $0x158] sm:$0xff]
  %v1451 = vld [vmem:[%s5 + $0x160] sm:$0xff]
  %v1452 = vld [vmem:[%s5 + $0x168] sm:$0xff]
  %v1453 = vld [vmem:[%s5 + $0x170] sm:$0xff]
  %v1454 = vld [vmem:[%s5 + $0x178] sm:$0xff]
  %v1455 = vld [vmem:[%s6] sm:$0x3]
  %v1457 = vlaneseq
  %v1458 = vshrl.u32 %v1457, 7
  %v1459 = vsub.s32 0, %v1458
  %v1460 = vrot.slane %v1455, %v1459
  %v1461 = vlaneseq
  %v1462 = vshrl.u32 %v1461, 7
  %v1463 = vsub.s32 1, %v1462
  %v1464 = vrot.slane %v1455, %v1463
  %v1515 = vunpack.c.l.b16 %v1407
  %v1516 = vunpack.c.h.b16 %v1407
  %v1517 = vunpack.c.l.b16 %v1408
  %v1518 = vunpack.c.h.b16 %v1408
  %v1519 = vunpack.c.l.b16 %v1409
  %v1520 = vunpack.c.h.b16 %v1409
  %v1521 = vunpack.c.l.b16 %v1410
  %v1522 = vunpack.c.h.b16 %v1410
  %v1523 = vunpack.c.l.b16 %v1411
  %v1524 = vunpack.c.h.b16 %v1411
  %v1525 = vunpack.c.l.b16 %v1412
  %v1526 = vunpack.c.h.b16 %v1412
  %v1527 = vunpack.c.l.b16 %v1413
  %v1528 = vunpack.c.h.b16 %v1413
  %v1529 = vunpack.c.l.b16 %v1414
  %v1530 = vunpack.c.h.b16 %v1414
  %v1531 = vunpack.c.l.b16 %v1415
  %v1532 = vunpack.c.h.b16 %v1415
  %v1533 = vunpack.c.l.b16 %v1416
  %v1534 = vunpack.c.h.b16 %v1416
  %v1535 = vunpack.c.l.b16 %v1417
  %v1536 = vunpack.c.h.b16 %v1417
  %v1537 = vunpack.c.l.b16 %v1418
  %v1538 = vunpack.c.h.b16 %v1418
  %v1539 = vunpack.c.l.b16 %v1419
  %v1540 = vunpack.c.h.b16 %v1419
  %v1541 = vunpack.c.l.b16 %v1420
  %v1542 = vunpack.c.h.b16 %v1420
  %v1543 = vunpack.c.l.b16 %v1421
  %v1544 = vunpack.c.h.b16 %v1421
  %v1545 = vunpack.c.l.b16 %v1422
  %v1546 = vunpack.c.h.b16 %v1422
  %v1547 = vunpack.c.l.b16 %v1423
  %v1548 = vunpack.c.h.b16 %v1423
  %v1549 = vunpack.c.l.b16 %v1424
  %v1550 = vunpack.c.h.b16 %v1424
  %v1551 = vunpack.c.l.b16 %v1425
  %v1552 = vunpack.c.h.b16 %v1425
  %v1553 = vunpack.c.l.b16 %v1426
  %v1554 = vunpack.c.h.b16 %v1426
  %v1555 = vunpack.c.l.b16 %v1427
  %v1556 = vunpack.c.h.b16 %v1427
  %v1557 = vunpack.c.l.b16 %v1428
  %v1558 = vunpack.c.h.b16 %v1428
  %v1559 = vunpack.c.l.b16 %v1429
  %v1560 = vunpack.c.h.b16 %v1429
  %v1561 = vunpack.c.l.b16 %v1430
  %v1562 = vunpack.c.h.b16 %v1430
  %v1563 = vunpack.c.l.b16 %v1431
  %v1564 = vunpack.c.h.b16 %v1431
  %v1565 = vunpack.c.l.b16 %v1432
  %v1566 = vunpack.c.h.b16 %v1432
  %v1567 = vunpack.c.l.b16 %v1433
  %v1568 = vunpack.c.h.b16 %v1433
  %v1569 = vunpack.c.l.b16 %v1434
  %v1570 = vunpack.c.h.b16 %v1434
  %v1571 = vunpack.c.l.b16 %v1435
  %v1572 = vunpack.c.h.b16 %v1435
  %v1573 = vunpack.c.l.b16 %v1436
  %v1574 = vunpack.c.h.b16 %v1436
  %v1575 = vunpack.c.l.b16 %v1437
  %v1576 = vunpack.c.h.b16 %v1437
  %v1577 = vunpack.c.l.b16 %v1438
  %v1578 = vunpack.c.h.b16 %v1438
  %v1579 = vunpack.c.l.b16 %v1439
  %v1580 = vunpack.c.h.b16 %v1439
  %v1581 = vunpack.c.l.b16 %v1440
  %v1582 = vunpack.c.h.b16 %v1440
  %v1583 = vunpack.c.l.b16 %v1441
  %v1584 = vunpack.c.h.b16 %v1441
  %v1585 = vunpack.c.l.b16 %v1442
  %v1586 = vunpack.c.h.b16 %v1442
  %v1587 = vunpack.c.l.b16 %v1443
  %v1588 = vunpack.c.h.b16 %v1443
  %v1589 = vunpack.c.l.b16 %v1444
  %v1590 = vunpack.c.h.b16 %v1444
  %v1591 = vunpack.c.l.b16 %v1445
  %v1592 = vunpack.c.h.b16 %v1445
  %v1593 = vunpack.c.l.b16 %v1446
  %v1594 = vunpack.c.h.b16 %v1446
  %v1595 = vunpack.c.l.b16 %v1447
  %v1596 = vunpack.c.h.b16 %v1447
  %v1597 = vunpack.c.l.b16 %v1448
  %v1598 = vunpack.c.h.b16 %v1448
  %v1599 = vunpack.c.l.b16 %v1449
  %v1600 = vunpack.c.h.b16 %v1449
  %v1601 = vunpack.c.l.b16 %v1450
  %v1602 = vunpack.c.h.b16 %v1450
  %v1603 = vunpack.c.l.b16 %v1451
  %v1604 = vunpack.c.h.b16 %v1451
  %v1605 = vunpack.c.l.b16 %v1452
  %v1606 = vunpack.c.h.b16 %v1452
  %v1607 = vunpack.c.l.b16 %v1453
  %v1608 = vunpack.c.h.b16 %v1453
  %v1609 = vunpack.c.l.b16 %v1454
  %v1610 = vunpack.c.h.b16 %v1454
  %v1611 = vpack.c.b16 %v1517, %v1515
  %v1612 = vpack.c.b16 %v1518, %v1516
  %v1613 = vpack.c.b16 %v1521, %v1519
  %v1614 = vpack.c.b16 %v1522, %v1520
  %v1615 = vpack.c.b16 %v1525, %v1523
  %v1616 = vpack.c.b16 %v1526, %v1524
  %v1617 = vpack.c.b16 %v1529, %v1527
  %v1618 = vpack.c.b16 %v1530, %v1528
  %v1619 = vpack.c.b16 %v1533, %v1531
  %v1620 = vpack.c.b16 %v1534, %v1532
  %v1621 = vpack.c.b16 %v1537, %v1535
  %v1622 = vpack.c.b16 %v1538, %v1536
  %v1623 = vpack.c.b16 %v1541, %v1539
  %v1624 = vpack.c.b16 %v1542, %v1540
  %v1625 = vpack.c.b16 %v1545, %v1543
  %v1626 = vpack.c.b16 %v1546, %v1544
  %v1627 = vpack.c.b16 %v1549, %v1547
  %v1628 = vpack.c.b16 %v1550, %v1548
  %v1629 = vpack.c.b16 %v1553, %v1551
  %v1630 = vpack.c.b16 %v1554, %v1552
  %v1631 = vpack.c.b16 %v1557, %v1555
  %v1632 = vpack.c.b16 %v1558, %v1556
  %v1633 = vpack.c.b16 %v1561, %v1559
  %v1634 = vpack.c.b16 %v1562, %v1560
  %v1635 = vpack.c.b16 %v1565, %v1563
  %v1636 = vpack.c.b16 %v1566, %v1564
  %v1637 = vpack.c.b16 %v1569, %v1567
  %v1638 = vpack.c.b16 %v1570, %v1568
  %v1639 = vpack.c.b16 %v1573, %v1571
  %v1640 = vpack.c.b16 %v1574, %v1572
  %v1641 = vpack.c.b16 %v1577, %v1575
  %v1642 = vpack.c.b16 %v1578, %v1576
  %v1643 = vpack.c.b16 %v1581, %v1579
  %v1644 = vpack.c.b16 %v1582, %v1580
  %v1645 = vpack.c.b16 %v1585, %v1583
  %v1646 = vpack.c.b16 %v1586, %v1584
  %v1647 = vpack.c.b16 %v1589, %v1587
  %v1648 = vpack.c.b16 %v1590, %v1588
  %v1649 = vpack.c.b16 %v1593, %v1591
  %v1650 = vpack.c.b16 %v1594, %v1592
  %v1651 = vpack.c.b16 %v1597, %v1595
  %v1652 = vpack.c.b16 %v1598, %v1596
  %v1653 = vpack.c.b16 %v1601, %v1599
  %v1654 = vpack.c.b16 %v1602, %v1600
  %v1655 = vpack.c.b16 %v1605, %v1603
  %v1656 = vpack.c.b16 %v1606, %v1604
  %v1657 = vpack.c.b16 %v1609, %v1607
  %v1658 = vpack.c.b16 %v1610, %v1608
  %1707 = vmatprep.subr.bf16.mxu0 %v1612
  %1708 = vmatpush1.bf16.msra.mxu0 %v1611
  %1709 = vmatprep.subr.bf16.mxu0 %v1614
  %1710 = vmatpush1.bf16.msra.mxu0 %v1613
  %1711 = vmatprep.subr.bf16.mxu0 %v1616
  %1712 = vmatpush1.bf16.msra.mxu0 %v1615
  %1713 = vmatprep.subr.bf16.mxu0 %v1618
  %1714 = vmatpush1.bf16.msra.mxu0 %v1617
  %1715 = vmatprep.subr.bf16.mxu0 %v1620
  %1716 = vmatpush1.bf16.msra.mxu0 %v1619
  %1717 = vmatprep.subr.bf16.mxu0 %v1622
  %1718 = vmatpush1.bf16.msra.mxu0 %v1621
  %1719 = vmatprep.subr.bf16.mxu0 %v1624
  %1720 = vmatpush1.bf16.msra.mxu0 %v1623
  %1721 = vmatprep.subr.bf16.mxu0 %v1626
  %1722 = vmatpush1.bf16.msra.mxu0 %v1625
  %1723 = vmatprep.subr.bf16.mxu0 %v1628
  %1724 = vmatpush1.bf16.msra.mxu0 %v1627
  %1725 = vmatprep.subr.bf16.mxu0 %v1630
  %1726 = vmatpush1.bf16.msra.mxu0 %v1629
  %1727 = vmatprep.subr.bf16.mxu0 %v1632
  %1728 = vmatpush1.bf16.msra.mxu0 %v1631
  %1729 = vmatprep.subr.bf16.mxu0 %v1634
  %1730 = vmatpush1.bf16.msra.mxu0 %v1633
  %1731 = vmatprep.subr.bf16.mxu0 %v1636
  %1732 = vmatpush1.bf16.msra.mxu0 %v1635
  %1733 = vmatprep.subr.bf16.mxu0 %v1638
  %1734 = vmatpush1.bf16.msra.mxu0 %v1637
  %1735 = vmatprep.subr.bf16.mxu0 %v1640
  %1736 = vmatpush1.bf16.msra.mxu0 %v1639
  %1737 = vmatprep.subr.bf16.mxu0 %v1642
  %1738 = vmatpush1.bf16.msra.mxu0 %v1641
  %1739 = vmatprep.mubr.bf16.mxu0 %v1405
  %1740 = vmatmul.mubr.bf16.gmra.mrb[0].mxu0 %v1404
  %v1741 = vpop.f32.mrb[0].mxu0
  %v1742 = vadd.f32 %v1460, %v1741
  %v1743 = vpop.f32.mrb[0].mxu0
  %v1744 = vadd.f32 %v1464, %v1743
  %v1745 = vpop.f32.mrb[0].mxu0
  %v1746 = vpop.f32.mrb[0].mxu0
  %1747 = vdwg.mxu0
  %1748 = vmatprep.subr.bf16.mxu0 %v1644
  %1749 = vmatpush1.bf16.msra.mxu0 %v1643
  %1750 = vmatprep.subr.bf16.mxu0 %v1646
  %1751 = vmatpush1.bf16.msra.mxu0 %v1645
  %1752 = vmatprep.subr.bf16.mxu0 %v1648
  %1753 = vmatpush1.bf16.msra.mxu0 %v1647
  %1754 = vmatprep.subr.bf16.mxu0 %v1650
  %1755 = vmatpush1.bf16.msra.mxu0 %v1649
  %1756 = vmatprep.subr.bf16.mxu0 %v1652
  %1757 = vmatpush1.bf16.msra.mxu0 %v1651
  %1758 = vmatprep.subr.bf16.mxu0 %v1654
  %1759 = vmatpush1.bf16.msra.mxu0 %v1653
  %1760 = vmatprep.subr.bf16.mxu0 %v1656
  %1761 = vmatpush1.bf16.msra.mxu0 %v1655
  %1762 = vmatprep.subr.bf16.mxu0 %v1658
  %1763 = vmatpush1.bf16.msra.mxu0 %v1657
  %1764 = vmatprep.subr.bf16.mxu0 0
  %1765 = vmatpush1.bf16.msra.mxu0 0
  %1766 = vmatprep.subr.bf16.mxu0 0
  %1767 = vmatpush1.bf16.msra.mxu0 0
  %1768 = vmatprep.subr.bf16.mxu0 0
  %1769 = vmatpush1.bf16.msra.mxu0 0
  %1770 = vmatprep.subr.bf16.mxu0 0
  %1771 = vmatpush1.bf16.msra.mxu0 0
  %1772 = vmatprep.subr.bf16.mxu0 0
  %1773 = vmatpush1.bf16.msra.mxu0 0
  %1774 = vmatprep.subr.bf16.mxu0 0
  %1775 = vmatpush1.bf16.msra.mxu0 0
  %1776 = vmatprep.subr.bf16.mxu0 0
  %1777 = vmatpush1.bf16.msra.mxu0 0
  %1778 = vmatprep.subr.bf16.mxu0 0
  %1779 = vmatpush1.bf16.msra.mxu0 0
  %1780 = vmatprep.mubr.bf16.mxu0 0
  %1781 = vmatmul.mubr.bf16.gmra.mrb[0].mxu0 %v1406
  %v1782 = vpop.f32.mrb[0].mxu0
  %v1783 = vadd.f32 %v1742, %v1782
  %v1784 = vpop.f32.mrb[0].mxu0
  %v1785 = vadd.f32 %v1744, %v1784
  %v1786 = vpop.f32.mrb[0].mxu0
  %v1787 = vpop.f32.mrb[0].mxu0
  %1788 = vdwg.mxu0
  %v1789 = vmax.f32 %v1783, 0.0
  %v1790 = vmax.f32 %v1785, 0.0
  %v1791 = vpack.c.bf16 %v1789, %v1789
  %v1792 = vpack.c.bf16 %v1790, %v1790
  %v1793 = vld [vmem:[%s7] sm:$0xf]
  %v1794 = vld [vmem:[%s7 + $0x4] sm:$0xf]
  %v1795 = vld [vmem:[%s7 + $0x8] sm:$0xf]
  %v1796 = vld [vmem:[%s7 + $0xc] sm:$0xf]
  %v1797 = vld [vmem:[%s7 + $0x10] sm:$0xf]
  %v1798 = vld [vmem:[%s7 + $0x14] sm:$0xf]
  %v1799 = vld [vmem:[%s7 + $0x18] sm:$0xf]
  %v1800 = vld [vmem:[%s7 + $0x1c] sm:$0xf]
  %v1801 = vld [vmem:[%s7 + $0x20] sm:$0xf]
  %v1802 = vld [vmem:[%s7 + $0x24] sm:$0xf]
  %v1803 = vld [vmem:[%s7 + $0x28] sm:$0xf]
  %v1804 = vld [vmem:[%s7 + $0x2c] sm:$0xf]
  %v1805 = vld [vmem:[%s7 + $0x30] sm:$0xf]
  %v1806 = vld [vmem:[%s7 + $0x34] sm:$0xf]
  %v1807 = vld [vmem:[%s7 + $0x38] sm:$0xf]
  %v1808 = vld [vmem:[%s7 + $0x3c] sm:$0xf]
  %v1809 = vld [vmem:[%s7 + $0x40] sm:$0xf]
  %v1810 = vld [vmem:[%s7 + $0x44] sm:$0xf]
  %v1811 = vld [vmem:[%s7 + $0x48] sm:$0xf]
  %v1812 = vld [vmem:[%s7 + $0x4c] sm:$0xf]
  %v1813 = vld [vmem:[%s7 + $0x50] sm:$0xf]
  %v1814 = vld [vmem:[%s7 + $0x54] sm:$0xf]
  %v1815 = vld [vmem:[%s7 + $0x58] sm:$0xf]
  %v1816 = vld [vmem:[%s7 + $0x5c] sm:$0xf]
  %v1817 = vld [vmem:[%s8] sm:$0x1]
  %v1819 = vlaneseq
  %v1820 = vshrl.u32 %v1819, 7
  %v1821 = vsub.s32 0, %v1820
  %v1822 = vrot.slane %v1817, %v1821
  %v1848 = vunpack.c.l.b16 %v1793
  %v1849 = vunpack.c.l.b16 %v1794
  %v1850 = vunpack.c.l.b16 %v1795
  %v1851 = vunpack.c.l.b16 %v1796
  %v1852 = vunpack.c.l.b16 %v1797
  %v1853 = vunpack.c.l.b16 %v1798
  %v1854 = vunpack.c.l.b16 %v1799
  %v1855 = vunpack.c.l.b16 %v1800
  %v1856 = vunpack.c.l.b16 %v1801
  %v1857 = vunpack.c.l.b16 %v1802
  %v1858 = vunpack.c.l.b16 %v1803
  %v1859 = vunpack.c.l.b16 %v1804
  %v1860 = vunpack.c.l.b16 %v1805
  %v1861 = vunpack.c.l.b16 %v1806
  %v1862 = vunpack.c.l.b16 %v1807
  %v1863 = vunpack.c.l.b16 %v1808
  %v1864 = vunpack.c.l.b16 %v1809
  %v1865 = vunpack.c.l.b16 %v1810
  %v1866 = vunpack.c.l.b16 %v1811
  %v1867 = vunpack.c.l.b16 %v1812
  %v1868 = vunpack.c.l.b16 %v1813
  %v1869 = vunpack.c.l.b16 %v1814
  %v1870 = vunpack.c.l.b16 %v1815
  %v1871 = vunpack.c.l.b16 %v1816
  %v1872 = vpack.c.b16 %v1849, %v1848
  %v1873 = vpack.c.b16 %v1851, %v1850
  %v1874 = vpack.c.b16 %v1853, %v1852
  %v1875 = vpack.c.b16 %v1855, %v1854
  %v1876 = vpack.c.b16 %v1857, %v1856
  %v1877 = vpack.c.b16 %v1859, %v1858
  %v1878 = vpack.c.b16 %v1861, %v1860
  %v1879 = vpack.c.b16 %v1863, %v1862
  %v1880 = vpack.c.b16 %v1865, %v1864
  %v1881 = vpack.c.b16 %v1867, %v1866
  %v1882 = vpack.c.b16 %v1869, %v1868
  %v1883 = vpack.c.b16 %v1871, %v1870
  %vm1896 = vcmask 523264
  %v1898 = vsel %vm1896, %v1792, 0
  %1900 = vmatprep.subr.bf16.mxu0 0
  %1901 = vmatpush1.bf16.msra.mxu0 %v1872
  %1902 = vmatprep.subr.bf16.mxu0 0
  %1903 = vmatpush1.bf16.msra.mxu0 %v1873
  %1904 = vmatprep.subr.bf16.mxu0 0
  %1905 = vmatpush1.bf16.msra.mxu0 %v1874
  %1906 = vmatprep.subr.bf16.mxu0 0
  %1907 = vmatpush1.bf16.msra.mxu0 %v1875
  %1908 = vmatprep.subr.bf16.mxu0 0
  %1909 = vmatpush1.bf16.msra.mxu0 %v1876
  %1910 = vmatprep.subr.bf16.mxu0 0
  %1911 = vmatpush1.bf16.msra.mxu0 %v1877
  %1912 = vmatprep.subr.bf16.mxu0 0
  %1913 = vmatpush1.bf16.msra.mxu0 %v1878
  %1914 = vmatprep.subr.bf16.mxu0 0
  %1915 = vmatpush1.bf16.msra.mxu0 %v1879
  %1916 = vmatprep.subr.bf16.mxu0 0
  %1917 = vmatpush1.bf16.msra.mxu0 %v1880
  %1918 = vmatprep.subr.bf16.mxu0 0
  %1919 = vmatpush1.bf16.msra.mxu0 %v1881
  %1920 = vmatprep.subr.bf16.mxu0 0
  %1921 = vmatpush1.bf16.msra.mxu0 %v1882
  %1922 = vmatprep.subr.bf16.mxu0 0
  %1923 = vmatpush1.bf16.msra.mxu0 %v1883
  %1924 = vmatprep.subr.bf16.mxu0 0
  %1925 = vmatpush1.bf16.msra.mxu0 0
  %1926 = vmatprep.subr.bf16.mxu0 0
  %1927 = vmatpush1.bf16.msra.mxu0 0
  %1928 = vmatprep.subr.bf16.mxu0 0
  %1929 = vmatpush1.bf16.msra.mxu0 0
  %1930 = vmatprep.subr.bf16.mxu0 0
  %1931 = vmatpush1.bf16.msra.mxu0 0
  %1932 = vmatprep.mubr.bf16.mxu0 %v1898
  %1933 = vmatmul.mubr.bf16.gmra.mrb[0].mxu0 %v1791
  %v1934 = vpop.f32.mrb[0].mxu0
  %v1935 = vadd.f32 %v1822, %v1934
  %v1936 = vpop.f32.mrb[0].mxu0
  %v1937 = vpop.f32.mrb[0].mxu0
  %v1938 = vpop.f32.mrb[0].mxu0
  %1939 = vdwg.mxu0
  %v1940 = vmax.f32 %v1935, 0.0
  %v1941 = vpack.c.bf16 %v1940, %v1940
  %v1942 = vld [vmem:[%s9] sm:$0xff]
  %v1943 = vld [vmem:[%s9 + $0x8] sm:$0xff]
  %v1944 = vld [vmem:[%s9 + $0x10] sm:$0xff]
  %v1945 = vld [vmem:[%s9 + $0x18] sm:$0xff]
  %v1946 = vld [vmem:[%s9 + $0x20] sm:$0xff]
  %v1947 = vld [vmem:[%s9 + $0x28] sm:$0xff]
  %v1948 = vld [vmem:[%s9 + $0x30] sm:$0xff]
  %v1949 = vld [vmem:[%s9 + $0x38] sm:$0xff]
  %v1950 = vld [vmem:[%s9 + $0x40] sm:$0xff]
  %v1951 = vld [vmem:[%s9 + $0x48] sm:$0xff]
  %v1952 = vld [vmem:[%s9 + $0x50] sm:$0xff]
  %v1953 = vld [vmem:[%s9 + $0x58] sm:$0xff]
  %v1954 = vld [vmem:[%s9 + $0x60] sm:$0xff]
  %v1955 = vld [vmem:[%s9 + $0x68] sm:$0xff]
  %v1956 = vld [vmem:[%s9 + $0x70] sm:$0xff]
  %v1957 = vld [vmem:[%s9 + $0x78] sm:$0xff]
  %v1958 = vld [vmem:[%s10] sm:$0x3]
  %v1960 = vlaneseq
  %v1961 = vshrl.u32 %v1960, 7
  %v1962 = vsub.s32 0, %v1961
  %v1963 = vrot.slane %v1958, %v1962
  %v1964 = vlaneseq
  %v1965 = vshrl.u32 %v1964, 7
  %v1966 = vsub.s32 1, %v1965
  %v1967 = vrot.slane %v1958, %v1966
  %v1986 = vunpack.c.l.b16 %v1942
  %v1987 = vunpack.c.h.b16 %v1942
  %v1988 = vunpack.c.l.b16 %v1943
  %v1989 = vunpack.c.h.b16 %v1943
  %v1990 = vunpack.c.l.b16 %v1944
  %v1991 = vunpack.c.h.b16 %v1944
  %v1992 = vunpack.c.l.b16 %v1945
  %v1993 = vunpack.c.h.b16 %v1945
  %v1994 = vunpack.c.l.b16 %v1946
  %v1995 = vunpack.c.h.b16 %v1946
  %v1996 = vunpack.c.l.b16 %v1947
  %v1997 = vunpack.c.h.b16 %v1947
  %v1998 = vunpack.c.l.b16 %v1948
  %v1999 = vunpack.c.h.b16 %v1948
  %v2000 = vunpack.c.l.b16 %v1949
  %v2001 = vunpack.c.h.b16 %v1949
  %v2002 = vunpack.c.l.b16 %v1950
  %v2003 = vunpack.c.h.b16 %v1950
  %v2004 = vunpack.c.l.b16 %v1951
  %v2005 = vunpack.c.h.b16 %v1951
  %v2006 = vunpack.c.l.b16 %v1952
  %v2007 = vunpack.c.h.b16 %v1952
  %v2008 = vunpack.c.l.b16 %v1953
  %v2009 = vunpack.c.h.b16 %v1953
  %v2010 = vunpack.c.l.b16 %v1954
  %v2011 = vunpack.c.h.b16 %v1954
  %v2012 = vunpack.c.l.b16 %v1955
  %v2013 = vunpack.c.h.b16 %v1955
  %v2014 = vunpack.c.l.b16 %v1956
  %v2015 = vunpack.c.h.b16 %v1956
  %v2016 = vunpack.c.l.b16 %v1957
  %v2017 = vunpack.c.h.b16 %v1957
  %v2018 = vpack.c.b16 %v1988, %v1986
  %v2019 = vpack.c.b16 %v1989, %v1987
  %v2020 = vpack.c.b16 %v1992, %v1990
  %v2021 = vpack.c.b16 %v1993, %v1991
  %v2022 = vpack.c.b16 %v1996, %v1994
  %v2023 = vpack.c.b16 %v1997, %v1995
  %v2024 = vpack.c.b16 %v2000, %v1998
  %v2025 = vpack.c.b16 %v2001, %v1999
  %v2026 = vpack.c.b16 %v2004, %v2002
  %v2027 = vpack.c.b16 %v2005, %v2003
  %v2028 = vpack.c.b16 %v2008, %v2006
  %v2029 = vpack.c.b16 %v2009, %v2007
  %v2030 = vpack.c.b16 %v2012, %v2010
  %v2031 = vpack.c.b16 %v2013, %v2011
  %v2032 = vpack.c.b16 %v2016, %v2014
  %v2033 = vpack.c.b16 %v2017, %v2015
  %2050 = vmatprep.subr.bf16.mxu0 %v2019
  %2051 = vmatpush1.bf16.msra.mxu0 %v2018
  %2052 = vmatprep.subr.bf16.mxu0 %v2021
  %2053 = vmatpush1.bf16.msra.mxu0 %v2020
  %2054 = vmatprep.subr.bf16.mxu0 %v2023
  %2055 = vmatpush1.bf16.msra.mxu0 %v2022
  %2056 = vmatprep.subr.bf16.mxu0 %v2025
  %2057 = vmatpush1.bf16.msra.mxu0 %v2024
  %2058 = vmatprep.subr.bf16.mxu0 %v2027
  %2059 = vmatpush1.bf16.msra.mxu0 %v2026
  %2060 = vmatprep.subr.bf16.mxu0 %v2029
  %2061 = vmatpush1.bf16.msra.mxu0 %v2028
  %2062 = vmatprep.subr.bf16.mxu0 %v2031
  %2063 = vmatpush1.bf16.msra.mxu0 %v2030
  %2064 = vmatprep.subr.bf16.mxu0 %v2033
  %2065 = vmatpush1.bf16.msra.mxu0 %v2032
  %2066 = vmatprep.subr.bf16.mxu0 0
  %2067 = vmatpush1.bf16.msra.mxu0 0
  %2068 = vmatprep.subr.bf16.mxu0 0
  %2069 = vmatpush1.bf16.msra.mxu0 0
  %2070 = vmatprep.subr.bf16.mxu0 0
  %2071 = vmatpush1.bf16.msra.mxu0 0
  %2072 = vmatprep.subr.bf16.mxu0 0
  %2073 = vmatpush1.bf16.msra.mxu0 0
  %2074 = vmatprep.subr.bf16.mxu0 0
  %2075 = vmatpush1.bf16.msra.mxu0 0
  %2076 = vmatprep.subr.bf16.mxu0 0
  %2077 = vmatpush1.bf16.msra.mxu0 0
  %2078 = vmatprep.subr.bf16.mxu0 0
  %2079 = vmatpush1.bf16.msra.mxu0 0
  %2080 = vmatprep.subr.bf16.mxu0 0
  %2081 = vmatpush1.bf16.msra.mxu0 0
  %2082 = vmatprep.mubr.bf16.mxu0 0
  %2083 = vmatmul.mubr.bf16.gmra.mrb[0].mxu0 %v1941
  %v2084 = vpop.f32.mrb[0].mxu0
  %v2085 = vadd.f32 %v1963, %v2084
  %v2086 = vpop.f32.mrb[0].mxu0
  %v2087 = vadd.f32 %v1967, %v2086
  %v2088 = vpop.f32.mrb[0].mxu0
  %v2089 = vpop.f32.mrb[0].mxu0
  %2090 = vdwg.mxu0
  %v2091 = vld [vmem:[%s1] sm:$0xff]
  %v2092 = vmul.f32 %v2087, 0.5
  %v2093 = vmul.f32 %v2092, 1.442695
  %v2094 = vpow.pop %v2093
  %v2095 = vmul.f32 %v2091, %v2094
  %v2096 = vadd.f32 %v2095, %v2085
  %v2097 = vpack.c.bf16 %v2096, %v2096
  %v2098 = vld [vmem:[%s11] sm:$0xf]
  %v2099 = vld [vmem:[%s11 + $0x4] sm:$0xf]
  %v2100 = vld [vmem:[%s11 + $0x8] sm:$0xf]
  %v2101 = vld [vmem:[%s11 + $0xc] sm:$0xf]
  %v2102 = vld [vmem:[%s11 + $0x10] sm:$0xf]
  %v2103 = vld [vmem:[%s11 + $0x14] sm:$0xf]
  %v2104 = vld [vmem:[%s11 + $0x18] sm:$0xf]
  %v2105 = vld [vmem:[%s11 + $0x1c] sm:$0xf]
  %v2106 = vld [vmem:[%s11 + $0x20] sm:$0xf]
  %v2107 = vld [vmem:[%s11 + $0x24] sm:$0xf]
  %v2108 = vld [vmem:[%s11 + $0x28] sm:$0xf]
  %v2109 = vld [vmem:[%s11 + $0x2c] sm:$0xf]
  %v2110 = vld [vmem:[%s11 + $0x30] sm:$0xf]
  %v2111 = vld [vmem:[%s11 + $0x34] sm:$0xf]
  %v2112 = vld [vmem:[%s11 + $0x38] sm:$0xf]
  %v2113 = vld [vmem:[%s11 + $0x3c] sm:$0xf]
  %v2114 = vld [vmem:[%s3] sm:$0xff]
  %v2131 = vunpack.c.l.b16 %v2098
  %v2132 = vunpack.c.l.b16 %v2099
  %v2133 = vunpack.c.l.b16 %v2100
  %v2134 = vunpack.c.l.b16 %v2101
  %v2135 = vunpack.c.l.b16 %v2102
  %v2136 = vunpack.c.l.b16 %v2103
  %v2137 = vunpack.c.l.b16 %v2104
  %v2138 = vunpack.c.l.b16 %v2105
  %v2139 = vunpack.c.l.b16 %v2106
  %v2140 = vunpack.c.l.b16 %v2107
  %v2141 = vunpack.c.l.b16 %v2108
  %v2142 = vunpack.c.l.b16 %v2109
  %v2143 = vunpack.c.l.b16 %v2110
  %v2144 = vunpack.c.l.b16 %v2111
  %v2145 = vunpack.c.l.b16 %v2112
  %v2146 = vunpack.c.l.b16 %v2113
  %v2147 = vpack.c.b16 %v2132, %v2131
  %v2148 = vpack.c.b16 %v2134, %v2133
  %v2149 = vpack.c.b16 %v2136, %v2135
  %v2150 = vpack.c.b16 %v2138, %v2137
  %v2151 = vpack.c.b16 %v2140, %v2139
  %v2152 = vpack.c.b16 %v2142, %v2141
  %v2153 = vpack.c.b16 %v2144, %v2143
  %v2154 = vpack.c.b16 %v2146, %v2145
  %2163 = vmatprep.subr.bf16.mxu0 0
  %2164 = vmatpush1.bf16.msra.mxu0 %v2147
  %2165 = vmatprep.subr.bf16.mxu0 0
  %2166 = vmatpush1.bf16.msra.mxu0 %v2148
  %2167 = vmatprep.subr.bf16.mxu0 0
  %2168 = vmatpush1.bf16.msra.mxu0 %v2149
  %2169 = vmatprep.subr.bf16.mxu0 0
  %2170 = vmatpush1.bf16.msra.mxu0 %v2150
  %2171 = vmatprep.subr.bf16.mxu0 0
  %2172 = vmatpush1.bf16.msra.mxu0 %v2151
  %2173 = vmatprep.subr.bf16.mxu0 0
  %2174 = vmatpush1.bf16.msra.mxu0 %v2152
  %2175 = vmatprep.subr.bf16.mxu0 0
  %2176 = vmatpush1.bf16.msra.mxu0 %v2153
  %2177 = vmatprep.subr.bf16.mxu0 0
  %2178 = vmatpush1.bf16.msra.mxu0 %v2154
  %2179 = vmatprep.subr.bf16.mxu0 0
  %2180 = vmatpush1.bf16.msra.mxu0 0
  %2181 = vmatprep.subr.bf16.mxu0 0
  %2182 = vmatpush1.bf16.msra.mxu0 0
  %2183 = vmatprep.subr.bf16.mxu0 0
  %2184 = vmatpush1.bf16.msra.mxu0 0
  %2185 = vmatprep.subr.bf16.mxu0 0
  %2186 = vmatpush1.bf16.msra.mxu0 0
  %2187 = vmatprep.subr.bf16.mxu0 0
  %2188 = vmatpush1.bf16.msra.mxu0 0
  %2189 = vmatprep.subr.bf16.mxu0 0
  %2190 = vmatpush1.bf16.msra.mxu0 0
  %2191 = vmatprep.subr.bf16.mxu0 0
  %2192 = vmatpush1.bf16.msra.mxu0 0
  %2193 = vmatprep.subr.bf16.mxu0 0
  %2194 = vmatpush1.bf16.msra.mxu0 0
  %2195 = vmatprep.mubr.bf16.mxu0 0
  %2196 = vmatmul.mubr.bf16.gmra.mrb[0].mxu0 %v2097
  %v2197 = vpop.f32.mrb[0].mxu0
  %v2198 = vadd.f32 %v2114, %v2197
  %v2199 = vpop.f32.mrb[0].mxu0
  %v2200 = vpop.f32.mrb[0].mxu0
  %v2201 = vpop.f32.mrb[0].mxu0
  %2202 = vdwg.mxu0
  %v2203 = vmax.f32 %v2198, 0.0
  %v2204 = vpack.c.bf16 %v2203, %v2203
  %v2205 = vld [vmem:[%s12] sm:$0xff]
  %v2206 = vld [vmem:[%s12 + $0x8] sm:$0xff]
  %v2207 = vld [vmem:[%s12 + $0x10] sm:$0xff]
  %v2208 = vld [vmem:[%s12 + $0x18] sm:$0xff]
  %v2209 = vld [vmem:[%s12 + $0x20] sm:$0xff]
  %v2210 = vld [vmem:[%s12 + $0x28] sm:$0xff]
  %v2211 = vld [vmem:[%s12 + $0x30] sm:$0xff]
  %v2212 = vld [vmem:[%s12 + $0x38] sm:$0xff]
  %v2213 = vld [vmem:[%s12 + $0x40] sm:$0xff]
  %v2214 = vld [vmem:[%s12 + $0x48] sm:$0xff]
  %v2215 = vld [vmem:[%s12 + $0x50] sm:$0xff]
  %v2216 = vld [vmem:[%s12 + $0x58] sm:$0xff]
  %v2217 = vld [vmem:[%s12 + $0x60] sm:$0xff]
  %v2218 = vld [vmem:[%s12 + $0x68] sm:$0xff]
  %v2219 = vld [vmem:[%s12 + $0x70] sm:$0xff]
  %v2220 = vld [vmem:[%s12 + $0x78] sm:$0xff]
  %v2221 = vld [vmem:[%s13] sm:$0x3]
  %v2223 = vlaneseq
  %v2224 = vshrl.u32 %v2223, 7
  %v2225 = vsub.s32 0, %v2224
  %v2226 = vrot.slane %v2221, %v2225
  %v2227 = vlaneseq
  %v2228 = vshrl.u32 %v2227, 7
  %v2229 = vsub.s32 1, %v2228
  %v2230 = vrot.slane %v2221, %v2229
  %v2249 = vunpack.c.l.b16 %v2205
  %v2250 = vunpack.c.h.b16 %v2205
  %v2251 = vunpack.c.l.b16 %v2206
  %v2252 = vunpack.c.h.b16 %v2206
  %v2253 = vunpack.c.l.b16 %v2207
  %v2254 = vunpack.c.h.b16 %v2207
  %v2255 = vunpack.c.l.b16 %v2208
  %v2256 = vunpack.c.h.b16 %v2208
  %v2257 = vunpack.c.l.b16 %v2209
  %v2258 = vunpack.c.h.b16 %v2209
  %v2259 = vunpack.c.l.b16 %v2210
  %v2260 = vunpack.c.h.b16 %v2210
  %v2261 = vunpack.c.l.b16 %v2211
  %v2262 = vunpack.c.h.b16 %v2211
  %v2263 = vunpack.c.l.b16 %v2212
  %v2264 = vunpack.c.h.b16 %v2212
  %v2265 = vunpack.c.l.b16 %v2213
  %v2266 = vunpack.c.h.b16 %v2213
  %v2267 = vunpack.c.l.b16 %v2214
  %v2268 = vunpack.c.h.b16 %v2214
  %v2269 = vunpack.c.l.b16 %v2215
  %v2270 = vunpack.c.h.b16 %v2215
  %v2271 = vunpack.c.l.b16 %v2216
  %v2272 = vunpack.c.h.b16 %v2216
  %v2273 = vunpack.c.l.b16 %v2217
  %v2274 = vunpack.c.h.b16 %v2217
  %v2275 = vunpack.c.l.b16 %v2218
  %v2276 = vunpack.c.h.b16 %v2218
  %v2277 = vunpack.c.l.b16 %v2219
  %v2278 = vunpack.c.h.b16 %v2219
  %v2279 = vunpack.c.l.b16 %v2220
  %v2280 = vunpack.c.h.b16 %v2220
  %v2281 = vpack.c.b16 %v2251, %v2249
  %v2282 = vpack.c.b16 %v2252, %v2250
  %v2283 = vpack.c.b16 %v2255, %v2253
  %v2284 = vpack.c.b16 %v2256, %v2254
  %v2285 = vpack.c.b16 %v2259, %v2257
  %v2286 = vpack.c.b16 %v2260, %v2258
  %v2287 = vpack.c.b16 %v2263, %v2261
  %v2288 = vpack.c.b16 %v2264, %v2262
  %v2289 = vpack.c.b16 %v2267, %v2265
  %v2290 = vpack.c.b16 %v2268, %v2266
  %v2291 = vpack.c.b16 %v2271, %v2269
  %v2292 = vpack.c.b16 %v2272, %v2270
  %v2293 = vpack.c.b16 %v2275, %v2273
  %v2294 = vpack.c.b16 %v2276, %v2274
  %v2295 = vpack.c.b16 %v2279, %v2277
  %v2296 = vpack.c.b16 %v2280, %v2278
  %2313 = vmatprep.subr.bf16.mxu0 %v2282
  %2314 = vmatpush1.bf16.msra.mxu0 %v2281
  %2315 = vmatprep.subr.bf16.mxu0 %v2284
  %2316 = vmatpush1.bf16.msra.mxu0 %v2283
  %2317 = vmatprep.subr.bf16.mxu0 %v2286
  %2318 = vmatpush1.bf16.msra.mxu0 %v2285
  %2319 = vmatprep.subr.bf16.mxu0 %v2288
  %2320 = vmatpush1.bf16.msra.mxu0 %v2287
  %2321 = vmatprep.subr.bf16.mxu0 %v2290
  %2322 = vmatpush1.bf16.msra.mxu0 %v2289
  %2323 = vmatprep.subr.bf16.mxu0 %v2292
  %2324 = vmatpush1.bf16.msra.mxu0 %v2291
  %2325 = vmatprep.subr.bf16.mxu0 %v2294
  %2326 = vmatpush1.bf16.msra.mxu0 %v2293
  %2327 = vmatprep.subr.bf16.mxu0 %v2296
  %2328 = vmatpush1.bf16.msra.mxu0 %v2295
  %2329 = vmatprep.subr.bf16.mxu0 0
  %2330 = vmatpush1.bf16.msra.mxu0 0
  %2331 = vmatprep.subr.bf16.mxu0 0
  %2332 = vmatpush1.bf16.msra.mxu0 0
  %2333 = vmatprep.subr.bf16.mxu0 0
  %2334 = vmatpush1.bf16.msra.mxu0 0
  %2335 = vmatprep.subr.bf16.mxu0 0
  %2336 = vmatpush1.bf16.msra.mxu0 0
  %2337 = vmatprep.subr.bf16.mxu0 0
  %2338 = vmatpush1.bf16.msra.mxu0 0
  %2339 = vmatprep.subr.bf16.mxu0 0
  %2340 = vmatpush1.bf16.msra.mxu0 0
  %2341 = vmatprep.subr.bf16.mxu0 0
  %2342 = vmatpush1.bf16.msra.mxu0 0
  %2343 = vmatprep.subr.bf16.mxu0 0
  %2344 = vmatpush1.bf16.msra.mxu0 0
  %2345 = vmatprep.mubr.bf16.mxu0 0
  %2346 = vmatmul.mubr.bf16.gmra.mrb[0].mxu0 %v2204
  %v2347 = vpop.f32.mrb[0].mxu0
  %v2348 = vadd.f32 %v2226, %v2347
  %v2349 = vpop.f32.mrb[0].mxu0
  %v2350 = vadd.f32 %v2230, %v2349
  %v2351 = vpop.f32.mrb[0].mxu0
  %v2352 = vpop.f32.mrb[0].mxu0
  %2353 = vdwg.mxu0
  %v2354 = vmax.f32 %v2348, 0.0
  %v2355 = vmax.f32 %v2350, 0.0
  %v2356 = vpack.c.bf16 %v2354, %v2354
  %v2357 = vpack.c.bf16 %v2355, %v2355
  %v2358 = vld [vmem:[%s14] sm:$0xff]
  %v2359 = vld [vmem:[%s14 + $0x8] sm:$0xf]
  %v2360 = vld [vmem:[%s14 + $0xc] sm:$0xff]
  %v2361 = vld [vmem:[%s14 + $0x14] sm:$0xf]
  %v2362 = vld [vmem:[%s14 + $0x18] sm:$0xff]
  %v2363 = vld [vmem:[%s14 + $0x20] sm:$0xf]
  %v2364 = vld [vmem:[%s14 + $0x24] sm:$0xff]
  %v2365 = vld [vmem:[%s14 + $0x2c] sm:$0xf]
  %v2366 = vld [vmem:[%s14 + $0x30] sm:$0xff]
  %v2367 = vld [vmem:[%s14 + $0x38] sm:$0xf]
  %v2368 = vld [vmem:[%s14 + $0x3c] sm:$0xff]
  %v2369 = vld [vmem:[%s14 + $0x44] sm:$0xf]
  %v2370 = vld [vmem:[%s14 + $0x48] sm:$0xff]
  %v2371 = vld [vmem:[%s14 + $0x50] sm:$0xf]
  %v2372 = vld [vmem:[%s14 + $0x54] sm:$0xff]
  %v2373 = vld [vmem:[%s14 + $0x5c] sm:$0xf]
  %v2374 = vld [vmem:[%s14 + $0x60] sm:$0xff]
  %v2375 = vld [vmem:[%s14 + $0x68] sm:$0xf]
  %v2376 = vld [vmem:[%s14 + $0x6c] sm:$0xff]
  %v2377 = vld [vmem:[%s14 + $0x74] sm:$0xf]
  %v2378 = vld [vmem:[%s14 + $0x78] sm:$0xff]
  %v2379 = vld [vmem:[%s14 + $0x80] sm:$0xf]
  %v2380 = vld [vmem:[%s14 + $0x84] sm:$0xff]
  %v2381 = vld [vmem:[%s14 + $0x8c] sm:$0xf]
  %v2382 = vld [vmem:[%s14 + $0x90] sm:$0xff]
  %v2383 = vld [vmem:[%s14 + $0x98] sm:$0xf]
  %v2384 = vld [vmem:[%s14 + $0x9c] sm:$0xff]
  %v2385 = vld [vmem:[%s14 + $0xa4] sm:$0xf]
  %v2386 = vld [vmem:[%s14 + $0xa8] sm:$0xff]
  %v2387 = vld [vmem:[%s14 + $0xb0] sm:$0xf]
  %v2388 = vld [vmem:[%s14 + $0xb4] sm:$0xff]
  %v2389 = vld [vmem:[%s14 + $0xbc] sm:$0xf]
  %v2390 = vld [vmem:[%s14 + $0xc0] sm:$0xff]
  %v2391 = vld [vmem:[%s14 + $0xc8] sm:$0xf]
  %v2392 = vld [vmem:[%s14 + $0xcc] sm:$0xff]
  %v2393 = vld [vmem:[%s14 + $0xd4] sm:$0xf]
  %v2394 = vld [vmem:[%s14 + $0xd8] sm:$0xff]
  %v2395 = vld [vmem:[%s14 + $0xe0] sm:$0xf]
  %v2396 = vld [vmem:[%s14 + $0xe4] sm:$0xff]
  %v2397 = vld [vmem:[%s14 + $0xec] sm:$0xf]
  %v2398 = vld [vmem:[%s14 + $0xf0] sm:$0xff]
  %v2399 = vld [vmem:[%s14 + $0xf8] sm:$0xf]
  %v2400 = vld [vmem:[%s14 + $0xfc] sm:$0xff]
  %v2401 = vld [vmem:[%s14 + $0x104] sm:$0xf]
  %v2402 = vld [vmem:[%s14 + $0x108] sm:$0xff]
  %v2403 = vld [vmem:[%s14 + $0x110] sm:$0xf]
  %v2404 = vld [vmem:[%s14 + $0x114] sm:$0xff]
  %v2405 = vld [vmem:[%s14 + $0x11c] sm:$0xf]
  %v2406 = vld [vmem:[%s15] sm:$0x7]
  %v2408 = vlaneseq
  %v2409 = vshrl.u32 %v2408, 7
  %v2410 = vsub.s32 0, %v2409
  %v2411 = vrot.slane %v2406, %v2410
  %v2412 = vlaneseq
  %v2413 = vshrl.u32 %v2412, 7
  %v2414 = vsub.s32 1, %v2413
  %v2415 = vrot.slane %v2406, %v2414
  %v2416 = vlaneseq
  %v2417 = vshrl.u32 %v2416, 7
  %v2418 = vsub.s32 2, %v2417
  %v2419 = vrot.slane %v2406, %v2418
  %v2471 = vunpack.c.l.b16 %v2358
  %v2472 = vunpack.c.h.b16 %v2358
  %v2473 = vunpack.c.l.b16 %v2359
  %v2474 = vunpack.c.l.b16 %v2360
  %v2475 = vunpack.c.h.b16 %v2360
  %v2476 = vunpack.c.l.b16 %v2361
  %v2477 = vunpack.c.l.b16 %v2362
  %v2478 = vunpack.c.h.b16 %v2362
  %v2479 = vunpack.c.l.b16 %v2363
  %v2480 = vunpack.c.l.b16 %v2364
  %v2481 = vunpack.c.h.b16 %v2364
  %v2482 = vunpack.c.l.b16 %v2365
  %v2483 = vunpack.c.l.b16 %v2366
  %v2484 = vunpack.c.h.b16 %v2366
  %v2485 = vunpack.c.l.b16 %v2367
  %v2486 = vunpack.c.l.b16 %v2368
  %v2487 = vunpack.c.h.b16 %v2368
  %v2488 = vunpack.c.l.b16 %v2369
  %v2489 = vunpack.c.l.b16 %v2370
  %v2490 = vunpack.c.h.b16 %v2370
  %v2491 = vunpack.c.l.b16 %v2371
  %v2492 = vunpack.c.l.b16 %v2372
  %v2493 = vunpack.c.h.b16 %v2372
  %v2494 = vunpack.c.l.b16 %v2373
  %v2495 = vunpack.c.l.b16 %v2374
  %v2496 = vunpack.c.h.b16 %v2374
  %v2497 = vunpack.c.l.b16 %v2375
  %v2498 = vunpack.c.l.b16 %v2376
  %v2499 = vunpack.c.h.b16 %v2376
  %v2500 = vunpack.c.l.b16 %v2377
  %v2501 = vunpack.c.l.b16 %v2378
  %v2502 = vunpack.c.h.b16 %v2378
  %v2503 = vunpack.c.l.b16 %v2379
  %v2504 = vunpack.c.l.b16 %v2380
  %v2505 = vunpack.c.h.b16 %v2380
  %v2506 = vunpack.c.l.b16 %v2381
  %v2507 = vunpack.c.l.b16 %v2382
  %v2508 = vunpack.c.h.b16 %v2382
  %v2509 = vunpack.c.l.b16 %v2383
  %v2510 = vunpack.c.l.b16 %v2384
  %v2511 = vunpack.c.h.b16 %v2384
  %v2512 = vunpack.c.l.b16 %v2385
  %v2513 = vunpack.c.l.b16 %v2386
  %v2514 = vunpack.c.h.b16 %v2386
  %v2515 = vunpack.c.l.b16 %v2387
  %v2516 = vunpack.c.l.b16 %v2388
  %v2517 = vunpack.c.h.b16 %v2388
  %v2518 = vunpack.c.l.b16 %v2389
  %v2519 = vunpack.c.l.b16 %v2390
  %v2520 = vunpack.c.h.b16 %v2390
  %v2521 = vunpack.c.l.b16 %v2391
  %v2522 = vunpack.c.l.b16 %v2392
  %v2523 = vunpack.c.h.b16 %v2392
  %v2524 = vunpack.c.l.b16 %v2393
  %v2525 = vunpack.c.l.b16 %v2394
  %v2526 = vunpack.c.h.b16 %v2394
  %v2527 = vunpack.c.l.b16 %v2395
  %v2528 = vunpack.c.l.b16 %v2396
  %v2529 = vunpack.c.h.b16 %v2396
  %v2530 = vunpack.c.l.b16 %v2397
  %v2531 = vunpack.c.l.b16 %v2398
  %v2532 = vunpack.c.h.b16 %v2398
  %v2533 = vunpack.c.l.b16 %v2399
  %v2534 = vunpack.c.l.b16 %v2400
  %v2535 = vunpack.c.h.b16 %v2400
  %v2536 = vunpack.c.l.b16 %v2401
  %v2537 = vunpack.c.l.b16 %v2402
  %v2538 = vunpack.c.h.b16 %v2402
  %v2539 = vunpack.c.l.b16 %v2403
  %v2540 = vunpack.c.l.b16 %v2404
  %v2541 = vunpack.c.h.b16 %v2404
  %v2542 = vunpack.c.l.b16 %v2405
  %v2543 = vpack.c.b16 %v2474, %v2471
  %v2544 = vpack.c.b16 %v2475, %v2472
  %v2545 = vpack.c.b16 %v2476, %v2473
  %v2546 = vpack.c.b16 %v2480, %v2477
  %v2547 = vpack.c.b16 %v2481, %v2478
  %v2548 = vpack.c.b16 %v2482, %v2479
  %v2549 = vpack.c.b16 %v2486, %v2483
  %v2550 = vpack.c.b16 %v2487, %v2484
  %v2551 = vpack.c.b16 %v2488, %v2485
  %v2552 = vpack.c.b16 %v2492, %v2489
  %v2553 = vpack.c.b16 %v2493, %v2490
  %v2554 = vpack.c.b16 %v2494, %v2491
  %v2555 = vpack.c.b16 %v2498, %v2495
  %v2556 = vpack.c.b16 %v2499, %v2496
  %v2557 = vpack.c.b16 %v2500, %v2497
  %v2558 = vpack.c.b16 %v2504, %v2501
  %v2559 = vpack.c.b16 %v2505, %v2502
  %v2560 = vpack.c.b16 %v2506, %v2503
  %v2561 = vpack.c.b16 %v2510, %v2507
  %v2562 = vpack.c.b16 %v2511, %v2508
  %v2563 = vpack.c.b16 %v2512, %v2509
  %v2564 = vpack.c.b16 %v2516, %v2513
  %v2565 = vpack.c.b16 %v2517, %v2514
  %v2566 = vpack.c.b16 %v2518, %v2515
  %v2567 = vpack.c.b16 %v2522, %v2519
  %v2568 = vpack.c.b16 %v2523, %v2520
  %v2569 = vpack.c.b16 %v2524, %v2521
  %v2570 = vpack.c.b16 %v2528, %v2525
  %v2571 = vpack.c.b16 %v2529, %v2526
  %v2572 = vpack.c.b16 %v2530, %v2527
  %v2573 = vpack.c.b16 %v2534, %v2531
  %v2574 = vpack.c.b16 %v2535, %v2532
  %v2575 = vpack.c.b16 %v2536, %v2533
  %v2576 = vpack.c.b16 %v2540, %v2537
  %v2577 = vpack.c.b16 %v2541, %v2538
  %v2578 = vpack.c.b16 %v2542, %v2539
  %v2616 = vsel %vm1896, %v2357, 0
  %2618 = vmatprep.subr.bf16.mxu0 %v2544
  %2619 = vmatpush1.bf16.msra.mxu0 %v2543
  %2620 = vmatprep.subr.bf16.mxu0 %v2547
  %2621 = vmatpush1.bf16.msra.mxu0 %v2546
  %2622 = vmatprep.subr.bf16.mxu0 %v2550
  %2623 = vmatpush1.bf16.msra.mxu0 %v2549
  %2624 = vmatprep.subr.bf16.mxu0 %v2553
  %2625 = vmatpush1.bf16.msra.mxu0 %v2552
  %2626 = vmatprep.subr.bf16.mxu0 %v2556
  %2627 = vmatpush1.bf16.msra.mxu0 %v2555
  %2628 = vmatprep.subr.bf16.mxu0 %v2559
  %2629 = vmatpush1.bf16.msra.mxu0 %v2558
  %2630 = vmatprep.subr.bf16.mxu0 %v2562
  %2631 = vmatpush1.bf16.msra.mxu0 %v2561
  %2632 = vmatprep.subr.bf16.mxu0 %v2565
  %2633 = vmatpush1.bf16.msra.mxu0 %v2564
  %2634 = vmatprep.subr.bf16.mxu0 %v2568
  %2635 = vmatpush1.bf16.msra.mxu0 %v2567
  %2636 = vmatprep.subr.bf16.mxu0 %v2571
  %2637 = vmatpush1.bf16.msra.mxu0 %v2570
  %2638 = vmatprep.subr.bf16.mxu0 %v2574
  %2639 = vmatpush1.bf16.msra.mxu0 %v2573
  %2640 = vmatprep.subr.bf16.mxu0 %v2577
  %2641 = vmatpush1.bf16.msra.mxu0 %v2576
  %2642 = vmatprep.subr.bf16.mxu0 0
  %2643 = vmatpush1.bf16.msra.mxu0 0
  %2644 = vmatprep.subr.bf16.mxu0 0
  %2645 = vmatpush1.bf16.msra.mxu0 0
  %2646 = vmatprep.subr.bf16.mxu0 0
  %2647 = vmatpush1.bf16.msra.mxu0 0
  %2648 = vmatprep.subr.bf16.mxu0 0
  %2649 = vmatpush1.bf16.msra.mxu0 0
  %2650 = vmatprep.mubr.bf16.mxu0 %v2616
  %2651 = vmatmul.mubr.bf16.gmra.mrb[0].mxu0 %v2356
  %v2652 = vpop.f32.mrb[0].mxu0
  %v2653 = vadd.f32 %v2411, %v2652
  %v2654 = vpop.f32.mrb[0].mxu0
  %v2655 = vadd.f32 %v2415, %v2654
  %v2656 = vpop.f32.mrb[0].mxu0
  %v2657 = vpop.f32.mrb[0].mxu0
  %2658 = vdwg.mxu0
  %2659 = vmatprep.subr.bf16.mxu0 0
  %2660 = vmatpush1.bf16.msra.mxu0 %v2545
  %2661 = vmatprep.subr.bf16.mxu0 0
  %2662 = vmatpush1.bf16.msra.mxu0 %v2548
  %2663 = vmatprep.subr.bf16.mxu0 0
  %2664 = vmatpush1.bf16.msra.mxu0 %v2551
  %2665 = vmatprep.subr.bf16.mxu0 0
  %2666 = vmatpush1.bf16.msra.mxu0 %v2554
  %2667 = vmatprep.subr.bf16.mxu0 0
  %2668 = vmatpush1.bf16.msra.mxu0 %v2557
  %2669 = vmatprep.subr.bf16.mxu0 0
  %2670 = vmatpush1.bf16.msra.mxu0 %v2560
  %2671 = vmatprep.subr.bf16.mxu0 0
  %2672 = vmatpush1.bf16.msra.mxu0 %v2563
  %2673 = vmatprep.subr.bf16.mxu0 0
  %2674 = vmatpush1.bf16.msra.mxu0 %v2566
  %2675 = vmatprep.subr.bf16.mxu0 0
  %2676 = vmatpush1.bf16.msra.mxu0 %v2569
  %2677 = vmatprep.subr.bf16.mxu0 0
  %2678 = vmatpush1.bf16.msra.mxu0 %v2572
  %2679 = vmatprep.subr.bf16.mxu0 0
  %2680 = vmatpush1.bf16.msra.mxu0 %v2575
  %2681 = vmatprep.subr.bf16.mxu0 0
  %2682 = vmatpush1.bf16.msra.mxu0 %v2578
  %2683 = vmatprep.subr.bf16.mxu0 0
  %2684 = vmatpush1.bf16.msra.mxu0 0
  %2685 = vmatprep.subr.bf16.mxu0 0
  %2686 = vmatpush1.bf16.msra.mxu0 0
  %2687 = vmatprep.subr.bf16.mxu0 0
  %2688 = vmatpush1.bf16.msra.mxu0 0
  %2689 = vmatprep.subr.bf16.mxu0 0
  %2690 = vmatpush1.bf16.msra.mxu0 0
  %2691 = vmatprep.mubr.bf16.mxu0 %v2616
  %2692 = vmatmul.mubr.bf16.gmra.mrb[0].mxu0 %v2356
  %v2693 = vpop.f32.mrb[0].mxu0
  %v2694 = vadd.f32 %v2419, %v2693
  %v2695 = vpop.f32.mrb[0].mxu0
  %v2696 = vpop.f32.mrb[0].mxu0
  %v2697 = vpop.f32.mrb[0].mxu0
  %2698 = vdwg.mxu0
  %v2699 = vmax.f32 %v2653, 0.0
  %v2700 = vmax.f32 %v2655, 0.0
  %v2701 = vmax.f32 %v2694, 0.0
  %v2702 = vpack.c.bf16 %v2699, %v2699
  %v2703 = vpack.c.bf16 %v2700, %v2700
  %v2704 = vpack.c.bf16 %v2701, %v2701
  %v2705 = vld [vmem:[%s16] sm:$0xff]
  %v2706 = vld [vmem:[%s16 + $0x8] sm:$0xff]
  %v2707 = vld [vmem:[%s16 + $0x10] sm:$0xff]
  %v2708 = vld [vmem:[%s16 + $0x18] sm:$0xf]
  %v2709 = vld [vmem:[%s16 + $0x1c] sm:$0xff]
  %v2710 = vld [vmem:[%s16 + $0x24] sm:$0xff]
  %v2711 = vld [vmem:[%s16 + $0x2c] sm:$0xff]
  %v2712 = vld [vmem:[%s16 + $0x34] sm:$0xf]
  %v2713 = vld [vmem:[%s16 + $0x38] sm:$0xff]
  %v2714 = vld [vmem:[%s16 + $0x40] sm:$0xff]
  %v2715 = vld [vmem:[%s16 + $0x48] sm:$0xff]
  %v2716 = vld [vmem:[%s16 + $0x50] sm:$0xf]
  %v2717 = vld [vmem:[%s16 + $0x54] sm:$0xff]
  %v2718 = vld [vmem:[%s16 + $0x5c] sm:$0xff]
  %v2719 = vld [vmem:[%s16 + $0x64] sm:$0xff]
  %v2720 = vld [vmem:[%s16 + $0x6c] sm:$0xf]
  %v2721 = vld [vmem:[%s16 + $0x70] sm:$0xff]
  %v2722 = vld [vmem:[%s16 + $0x78] sm:$0xff]
  %v2723 = vld [vmem:[%s16 + $0x80] sm:$0xff]
  %v2724 = vld [vmem:[%s16 + $0x88] sm:$0xf]
  %v2725 = vld [vmem:[%s16 + $0x8c] sm:$0xff]
  %v2726 = vld [vmem:[%s16 + $0x94] sm:$0xff]
  %v2727 = vld [vmem:[%s16 + $0x9c] sm:$0xff]
  %v2728 = vld [vmem:[%s16 + $0xa4] sm:$0xf]
  %v2729 = vld [vmem:[%s16 + $0xa8] sm:$0xff]
  %v2730 = vld [vmem:[%s16 + $0xb0] sm:$0xff]
  %v2731 = vld [vmem:[%s16 + $0xb8] sm:$0xff]
  %v2732 = vld [vmem:[%s16 + $0xc0] sm:$0xf]
  %v2733 = vld [vmem:[%s16 + $0xc4] sm:$0xff]
  %v2734 = vld [vmem:[%s16 + $0xcc] sm:$0xff]
  %v2735 = vld [vmem:[%s16 + $0xd4] sm:$0xff]
  %v2736 = vld [vmem:[%s16 + $0xdc] sm:$0xf]
  %v2737 = vld [vmem:[%s16 + $0xe0] sm:$0xff]
  %v2738 = vld [vmem:[%s16 + $0xe8] sm:$0xff]
  %v2739 = vld [vmem:[%s16 + $0xf0] sm:$0xff]
  %v2740 = vld [vmem:[%s16 + $0xf8] sm:$0xf]
  %v2741 = vld [vmem:[%s16 + $0xfc] sm:$0xff]
  %v2742 = vld [vmem:[%s16 + $0x104] sm:$0xff]
  %v2743 = vld [vmem:[%s16 + $0x10c] sm:$0xff]
  %v2744 = vld [vmem:[%s16 + $0x114] sm:$0xf]
  %v2745 = vld [vmem:[%s16 + $0x118] sm:$0xff]
  %v2746 = vld [vmem:[%s16 + $0x120] sm:$0xff]
  %v2747 = vld [vmem:[%s16 + $0x128] sm:$0xff]
  %v2748 = vld [vmem:[%s16 + $0x130] sm:$0xf]
  %v2749 = vld [vmem:[%s16 + $0x134] sm:$0xff]
  %v2750 = vld [vmem:[%s16 + $0x13c] sm:$0xff]
  %v2751 = vld [vmem:[%s16 + $0x144] sm:$0xff]
  %v2752 = vld [vmem:[%s16 + $0x14c] sm:$0xf]
  %v2753 = vld [vmem:[%s16 + $0x150] sm:$0xff]
  %v2754 = vld [vmem:[%s16 + $0x158] sm:$0xff]
  %v2755 = vld [vmem:[%s16 + $0x160] sm:$0xff]
  %v2756 = vld [vmem:[%s16 + $0x168] sm:$0xf]
  %v2757 = vld [vmem:[%s16 + $0x16c] sm:$0xff]
  %v2758 = vld [vmem:[%s16 + $0x174] sm:$0xff]
  %v2759 = vld [vmem:[%s16 + $0x17c] sm:$0xff]
  %v2760 = vld [vmem:[%s16 + $0x184] sm:$0xf]
  %v2761 = vld [vmem:[%s16 + $0x188] sm:$0xff]
  %v2762 = vld [vmem:[%s16 + $0x190] sm:$0xff]
  %v2763 = vld [vmem:[%s16 + $0x198] sm:$0xff]
  %v2764 = vld [vmem:[%s16 + $0x1a0] sm:$0xf]
  %v2765 = vld [vmem:[%s16 + $0x1a4] sm:$0xff]
  %v2766 = vld [vmem:[%s16 + $0x1ac] sm:$0xff]
  %v2767 = vld [vmem:[%s16 + $0x1b4] sm:$0xff]
  %v2768 = vld [vmem:[%s16 + $0x1bc] sm:$0xf]
  %v2769 = vld [vmem:[%s16 + $0x1c0] sm:$0xff]
  %v2770 = vld [vmem:[%s16 + $0x1c8] sm:$0xff]
  %v2771 = vld [vmem:[%s16 + $0x1d0] sm:$0xff]
  %v2772 = vld [vmem:[%s16 + $0x1d8] sm:$0xf]
  %v2773 = vld [vmem:[%s16 + $0x1dc] sm:$0xff]
  %v2774 = vld [vmem:[%s16 + $0x1e4] sm:$0xff]
  %v2775 = vld [vmem:[%s16 + $0x1ec] sm:$0xff]
  %v2776 = vld [vmem:[%s16 + $0x1f4] sm:$0xf]
  %v2777 = vld [vmem:[%s16 + $0x1f8] sm:$0xff]
  %v2778 = vld [vmem:[%s16 + $0x200] sm:$0xff]
  %v2779 = vld [vmem:[%s16 + $0x208] sm:$0xff]
  %v2780 = vld [vmem:[%s16 + $0x210] sm:$0xf]
  %v2781 = vld [vmem:[%s16 + $0x214] sm:$0xff]
  %v2782 = vld [vmem:[%s16 + $0x21c] sm:$0xff]
  %v2783 = vld [vmem:[%s16 + $0x224] sm:$0xff]
  %v2784 = vld [vmem:[%s16 + $0x22c] sm:$0xf]
  %v2785 = vld [vmem:[%s16 + $0x230] sm:$0xff]
  %v2786 = vld [vmem:[%s16 + $0x238] sm:$0xff]
  %v2787 = vld [vmem:[%s16 + $0x240] sm:$0xff]
  %v2788 = vld [vmem:[%s16 + $0x248] sm:$0xf]
  %v2789 = vld [vmem:[%s16 + $0x24c] sm:$0xff]
  %v2790 = vld [vmem:[%s16 + $0x254] sm:$0xff]
  %v2791 = vld [vmem:[%s16 + $0x25c] sm:$0xff]
  %v2792 = vld [vmem:[%s16 + $0x264] sm:$0xf]
  %v2793 = vld [vmem:[%s16 + $0x268] sm:$0xff]
  %v2794 = vld [vmem:[%s16 + $0x270] sm:$0xff]
  %v2795 = vld [vmem:[%s16 + $0x278] sm:$0xff]
  %v2796 = vld [vmem:[%s16 + $0x280] sm:$0xf]
  %v2797 = vld [vmem:[%s16 + $0x284] sm:$0xff]
  %v2798 = vld [vmem:[%s16 + $0x28c] sm:$0xff]
  %v2799 = vld [vmem:[%s16 + $0x294] sm:$0xff]
  %v2800 = vld [vmem:[%s16 + $0x29c] sm:$0xf]
  %v2801 = vld [vmem:[%s16 + $0x2a0] sm:$0xff]
  %v2802 = vld [vmem:[%s16 + $0x2a8] sm:$0xff]
  %v2803 = vld [vmem:[%s16 + $0x2b0] sm:$0xff]
  %v2804 = vld [vmem:[%s16 + $0x2b8] sm:$0xf]
  %v2805 = vld [vmem:[%s16 + $0x2bc] sm:$0xff]
  %v2806 = vld [vmem:[%s16 + $0x2c4] sm:$0xff]
  %v2807 = vld [vmem:[%s16 + $0x2cc] sm:$0xff]
  %v2808 = vld [vmem:[%s16 + $0x2d4] sm:$0xf]
  %v2809 = vld [vmem:[%s16 + $0x2d8] sm:$0xff]
  %v2810 = vld [vmem:[%s16 + $0x2e0] sm:$0xff]
  %v2811 = vld [vmem:[%s16 + $0x2e8] sm:$0xff]
  %v2812 = vld [vmem:[%s16 + $0x2f0] sm:$0xf]
  %v2813 = vld [vmem:[%s16 + $0x2f4] sm:$0xff]
  %v2814 = vld [vmem:[%s16 + $0x2fc] sm:$0xff]
  %v2815 = vld [vmem:[%s16 + $0x304] sm:$0xff]
  %v2816 = vld [vmem:[%s16 + $0x30c] sm:$0xf]
  %v2817 = vld [vmem:[%s16 + $0x310] sm:$0xff]
  %v2818 = vld [vmem:[%s16 + $0x318] sm:$0xff]
  %v2819 = vld [vmem:[%s16 + $0x320] sm:$0xff]
  %v2820 = vld [vmem:[%s16 + $0x328] sm:$0xf]
  %v2821 = vld [vmem:[%s16 + $0x32c] sm:$0xff]
  %v2822 = vld [vmem:[%s16 + $0x334] sm:$0xff]
  %v2823 = vld [vmem:[%s16 + $0x33c] sm:$0xff]
  %v2824 = vld [vmem:[%s16 + $0x344] sm:$0xf]
  %v2825 = vld [vmem:[%s16 + $0x348] sm:$0xff]
  %v2826 = vld [vmem:[%s16 + $0x350] sm:$0xff]
  %v2827 = vld [vmem:[%s16 + $0x358] sm:$0xff]
  %v2828 = vld [vmem:[%s16 + $0x360] sm:$0xf]
  %v2829 = vld [vmem:[%s16 + $0x364] sm:$0xff]
  %v2830 = vld [vmem:[%s16 + $0x36c] sm:$0xff]
  %v2831 = vld [vmem:[%s16 + $0x374] sm:$0xff]
  %v2832 = vld [vmem:[%s16 + $0x37c] sm:$0xf]
  %v2833 = vld [vmem:[%s16 + $0x380] sm:$0xff]
  %v2834 = vld [vmem:[%s16 + $0x388] sm:$0xff]
  %v2835 = vld [vmem:[%s16 + $0x390] sm:$0xff]
  %v2836 = vld [vmem:[%s16 + $0x398] sm:$0xf]
  %v2837 = vld [vmem:[%s16 + $0x39c] sm:$0xff]
  %v2838 = vld [vmem:[%s16 + $0x3a4] sm:$0xff]
  %v2839 = vld [vmem:[%s16 + $0x3ac] sm:$0xff]
  %v2840 = vld [vmem:[%s16 + $0x3b4] sm:$0xf]
  %v2841 = vld [vmem:[%s16 + $0x3b8] sm:$0xff]
  %v2842 = vld [vmem:[%s16 + $0x3c0] sm:$0xff]
  %v2843 = vld [vmem:[%s16 + $0x3c8] sm:$0xff]
  %v2844 = vld [vmem:[%s16 + $0x3d0] sm:$0xf]
  %v2845 = vld [vmem:[%s16 + $0x3d4] sm:$0xff]
  %v2846 = vld [vmem:[%s16 + $0x3dc] sm:$0xff]
  %v2847 = vld [vmem:[%s16 + $0x3e4] sm:$0xff]
  %v2848 = vld [vmem:[%s16 + $0x3ec] sm:$0xf]
  %v2849 = vld [vmem:[%s16 + $0x3f0] sm:$0xff]
  %v2850 = vld [vmem:[%s16 + $0x3f8] sm:$0xff]
  %v2851 = vld [vmem:[%s16 + $0x400] sm:$0xff]
  %v2852 = vld [vmem:[%s16 + $0x408] sm:$0xf]
  %v2853 = vld [vmem:[%s16 + $0x40c] sm:$0xff]
  %v2854 = vld [vmem:[%s16 + $0x414] sm:$0xff]
  %v2855 = vld [vmem:[%s16 + $0x41c] sm:$0xff]
  %v2856 = vld [vmem:[%s16 + $0x424] sm:$0xf]
  %v2857 = vld [vmem:[%s16 + $0x428] sm:$0xff]
  %v2858 = vld [vmem:[%s16 + $0x430] sm:$0xff]
  %v2859 = vld [vmem:[%s16 + $0x438] sm:$0xff]
  %v2860 = vld [vmem:[%s16 + $0x440] sm:$0xf]
  %v2861 = vld [vmem:[%s16 + $0x444] sm:$0xff]
  %v2862 = vld [vmem:[%s16 + $0x44c] sm:$0xff]
  %v2863 = vld [vmem:[%s16 + $0x454] sm:$0xff]
  %v2864 = vld [vmem:[%s16 + $0x45c] sm:$0xf]
  %v2865 = vld [vmem:[%s16 + $0x460] sm:$0xff]
  %v2866 = vld [vmem:[%s16 + $0x468] sm:$0xff]
  %v2867 = vld [vmem:[%s16 + $0x470] sm:$0xff]
  %v2868 = vld [vmem:[%s16 + $0x478] sm:$0xf]
  %v2869 = vld [vmem:[%s16 + $0x47c] sm:$0xff]
  %v2870 = vld [vmem:[%s16 + $0x484] sm:$0xff]
  %v2871 = vld [vmem:[%s16 + $0x48c] sm:$0xff]
  %v2872 = vld [vmem:[%s16 + $0x494] sm:$0xf]
  %v2873 = vld [vmem:[%s16 + $0x498] sm:$0xff]
  %v2874 = vld [vmem:[%s16 + $0x4a0] sm:$0xff]
  %v2875 = vld [vmem:[%s16 + $0x4a8] sm:$0xff]
  %v2876 = vld [vmem:[%s16 + $0x4b0] sm:$0xf]
  %v2877 = vld [vmem:[%s16 + $0x4b4] sm:$0xff]
  %v2878 = vld [vmem:[%s16 + $0x4bc] sm:$0xff]
  %v2879 = vld [vmem:[%s16 + $0x4c4] sm:$0xff]
  %v2880 = vld [vmem:[%s16 + $0x4cc] sm:$0xf]
  %v2881 = vld [vmem:[%s16 + $0x4d0] sm:$0xff]
  %v2882 = vld [vmem:[%s16 + $0x4d8] sm:$0xff]
  %v2883 = vld [vmem:[%s16 + $0x4e0] sm:$0xff]
  %v2884 = vld [vmem:[%s16 + $0x4e8] sm:$0xf]
  %v2885 = vld [vmem:[%s16 + $0x4ec] sm:$0xff]
  %v2886 = vld [vmem:[%s16 + $0x4f4] sm:$0xff]
  %v2887 = vld [vmem:[%s16 + $0x4fc] sm:$0xff]
  %v2888 = vld [vmem:[%s16 + $0x504] sm:$0xf]
  %v2889 = vld [vmem:[%s16 + $0x508] sm:$0xff]
  %v2890 = vld [vmem:[%s16 + $0x510] sm:$0xff]
  %v2891 = vld [vmem:[%s16 + $0x518] sm:$0xff]
  %v2892 = vld [vmem:[%s16 + $0x520] sm:$0xf]
  %v2893 = vld [vmem:[%s16 + $0x524] sm:$0xff]
  %v2894 = vld [vmem:[%s16 + $0x52c] sm:$0xff]
  %v2895 = vld [vmem:[%s16 + $0x534] sm:$0xff]
  %v2896 = vld [vmem:[%s16 + $0x53c] sm:$0xf]
  %v2897 = vld [vmem:[%s17] sm:$0x7f]
  %v2899 = vlaneseq
  %v2900 = vshrl.u32 %v2899, 7
  %v2901 = vsub.s32 0, %v2900
  %v2902 = vrot.slane %v2897, %v2901
  %v2903 = vlaneseq
  %v2904 = vshrl.u32 %v2903, 7
  %v2905 = vsub.s32 1, %v2904
  %v2906 = vrot.slane %v2897, %v2905
  %v2907 = vlaneseq
  %v2908 = vshrl.u32 %v2907, 7
  %v2909 = vsub.s32 2, %v2908
  %v2910 = vrot.slane %v2897, %v2909
  %v2911 = vlaneseq
  %v2912 = vshrl.u32 %v2911, 7
  %v2913 = vsub.s32 3, %v2912
  %v2914 = vrot.slane %v2897, %v2913
  %v2915 = vlaneseq
  %v2916 = vshrl.u32 %v2915, 7
  %v2917 = vsub.s32 4, %v2916
  %v2918 = vrot.slane %v2897, %v2917
  %v2919 = vlaneseq
  %v2920 = vshrl.u32 %v2919, 7
  %v2921 = vsub.s32 5, %v2920
  %v2922 = vrot.slane %v2897, %v2921
  %v2923 = vlaneseq
  %v2924 = vshrl.u32 %v2923, 7
  %v2925 = vsub.s32 6, %v2924
  %v2926 = vrot.slane %v2897, %v2925
  %v3126 = vunpack.c.l.b16 %v2705
  %v3127 = vunpack.c.h.b16 %v2705
  %v3128 = vunpack.c.l.b16 %v2706
  %v3129 = vunpack.c.h.b16 %v2706
  %v3130 = vunpack.c.l.b16 %v2707
  %v3131 = vunpack.c.h.b16 %v2707
  %v3132 = vunpack.c.l.b16 %v2708
  %v3133 = vunpack.c.l.b16 %v2709
  %v3134 = vunpack.c.h.b16 %v2709
  %v3135 = vunpack.c.l.b16 %v2710
  %v3136 = vunpack.c.h.b16 %v2710
  %v3137 = vunpack.c.l.b16 %v2711
  %v3138 = vunpack.c.h.b16 %v2711
  %v3139 = vunpack.c.l.b16 %v2712
  %v3140 = vunpack.c.l.b16 %v2713
  %v3141 = vunpack.c.h.b16 %v2713
  %v3142 = vunpack.c.l.b16 %v2714
  %v3143 = vunpack.c.h.b16 %v2714
  %v3144 = vunpack.c.l.b16 %v2715
  %v3145 = vunpack.c.h.b16 %v2715
  %v3146 = vunpack.c.l.b16 %v2716
  %v3147 = vunpack.c.l.b16 %v2717
  %v3148 = vunpack.c.h.b16 %v2717
  %v3149 = vunpack.c.l.b16 %v2718
  %v3150 = vunpack.c.h.b16 %v2718
  %v3151 = vunpack.c.l.b16 %v2719
  %v3152 = vunpack.c.h.b16 %v2719
  %v3153 = vunpack.c.l.b16 %v2720
  %v3154 = vunpack.c.l.b16 %v2721
  %v3155 = vunpack.c.h.b16 %v2721
  %v3156 = vunpack.c.l.b16 %v2722
  %v3157 = vunpack.c.h.b16 %v2722
  %v3158 = vunpack.c.l.b16 %v2723
  %v3159 = vunpack.c.h.b16 %v2723
  %v3160 = vunpack.c.l.b16 %v2724
  %v3161 = vunpack.c.l.b16 %v2725
  %v3162 = vunpack.c.h.b16 %v2725
  %v3163 = vunpack.c.l.b16 %v2726
  %v3164 = vunpack.c.h.b16 %v2726
  %v3165 = vunpack.c.l.b16 %v2727
  %v3166 = vunpack.c.h.b16 %v2727
  %v3167 = vunpack.c.l.b16 %v2728
  %v3168 = vunpack.c.l.b16 %v2729
  %v3169 = vunpack.c.h.b16 %v2729
  %v3170 = vunpack.c.l.b16 %v2730
  %v3171 = vunpack.c.h.b16 %v2730
  %v3172 = vunpack.c.l.b16 %v2731
  %v3173 = vunpack.c.h.b16 %v2731
  %v3174 = vunpack.c.l.b16 %v2732
  %v3175 = vunpack.c.l.b16 %v2733
  %v3176 = vunpack.c.h.b16 %v2733
  %v3177 = vunpack.c.l.b16 %v2734
  %v3178 = vunpack.c.h.b16 %v2734
  %v3179 = vunpack.c.l.b16 %v2735
  %v3180 = vunpack.c.h.b16 %v2735
  %v3181 = vunpack.c.l.b16 %v2736
  %v3182 = vunpack.c.l.b16 %v2737
  %v3183 = vunpack.c.h.b16 %v2737
  %v3184 = vunpack.c.l.b16 %v2738
  %v3185 = vunpack.c.h.b16 %v2738
  %v3186 = vunpack.c.l.b16 %v2739
  %v3187 = vunpack.c.h.b16 %v2739
  %v3188 = vunpack.c.l.b16 %v2740
  %v3189 = vunpack.c.l.b16 %v2741
  %v3190 = vunpack.c.h.b16 %v2741
  %v3191 = vunpack.c.l.b16 %v2742
  %v3192 = vunpack.c.h.b16 %v2742
  %v3193 = vunpack.c.l.b16 %v2743
  %v3194 = vunpack.c.h.b16 %v2743
  %v3195 = vunpack.c.l.b16 %v2744
  %v3196 = vunpack.c.l.b16 %v2745
  %v3197 = vunpack.c.h.b16 %v2745
  %v3198 = vunpack.c.l.b16 %v2746
  %v3199 = vunpack.c.h.b16 %v2746
  %v3200 = vunpack.c.l.b16 %v2747
  %v3201 = vunpack.c.h.b16 %v2747
  %v3202 = vunpack.c.l.b16 %v2748
  %v3203 = vunpack.c.l.b16 %v2749
  %v3204 = vunpack.c.h.b16 %v2749
  %v3205 = vunpack.c.l.b16 %v2750
  %v3206 = vunpack.c.h.b16 %v2750
  %v3207 = vunpack.c.l.b16 %v2751
  %v3208 = vunpack.c.h.b16 %v2751
  %v3209 = vunpack.c.l.b16 %v2752
  %v3210 = vunpack.c.l.b16 %v2753
  %v3211 = vunpack.c.h.b16 %v2753
  %v3212 = vunpack.c.l.b16 %v2754
  %v3213 = vunpack.c.h.b16 %v2754
  %v3214 = vunpack.c.l.b16 %v2755
  %v3215 = vunpack.c.h.b16 %v2755
  %v3216 = vunpack.c.l.b16 %v2756
  %v3217 = vunpack.c.l.b16 %v2757
  %v3218 = vunpack.c.h.b16 %v2757
  %v3219 = vunpack.c.l.b16 %v2758
  %v3220 = vunpack.c.h.b16 %v2758
  %v3221 = vunpack.c.l.b16 %v2759
  %v3222 = vunpack.c.h.b16 %v2759
  %v3223 = vunpack.c.l.b16 %v2760
  %v3224 = vunpack.c.l.b16 %v2761
  %v3225 = vunpack.c.h.b16 %v2761
  %v3226 = vunpack.c.l.b16 %v2762
  %v3227 = vunpack.c.h.b16 %v2762
  %v3228 = vunpack.c.l.b16 %v2763
  %v3229 = vunpack.c.h.b16 %v2763
  %v3230 = vunpack.c.l.b16 %v2764
  %v3231 = vunpack.c.l.b16 %v2765
  %v3232 = vunpack.c.h.b16 %v2765
  %v3233 = vunpack.c.l.b16 %v2766
  %v3234 = vunpack.c.h.b16 %v2766
  %v3235 = vunpack.c.l.b16 %v2767
  %v3236 = vunpack.c.h.b16 %v2767
  %v3237 = vunpack.c.l.b16 %v2768
  %v3238 = vunpack.c.l.b16 %v2769
  %v3239 = vunpack.c.h.b16 %v2769
  %v3240 = vunpack.c.l.b16 %v2770
  %v3241 = vunpack.c.h.b16 %v2770
  %v3242 = vunpack.c.l.b16 %v2771
  %v3243 = vunpack.c.h.b16 %v2771
  %v3244 = vunpack.c.l.b16 %v2772
  %v3245 = vunpack.c.l.b16 %v2773
  %v3246 = vunpack.c.h.b16 %v2773
  %v3247 = vunpack.c.l.b16 %v2774
  %v3248 = vunpack.c.h.b16 %v2774
  %v3249 = vunpack.c.l.b16 %v2775
  %v3250 = vunpack.c.h.b16 %v2775
  %v3251 = vunpack.c.l.b16 %v2776
  %v3252 = vunpack.c.l.b16 %v2777
  %v3253 = vunpack.c.h.b16 %v2777
  %v3254 = vunpack.c.l.b16 %v2778
  %v3255 = vunpack.c.h.b16 %v2778
  %v3256 = vunpack.c.l.b16 %v2779
  %v3257 = vunpack.c.h.b16 %v2779
  %v3258 = vunpack.c.l.b16 %v2780
  %v3259 = vunpack.c.l.b16 %v2781
  %v3260 = vunpack.c.h.b16 %v2781
  %v3261 = vunpack.c.l.b16 %v2782
  %v3262 = vunpack.c.h.b16 %v2782
  %v3263 = vunpack.c.l.b16 %v2783
  %v3264 = vunpack.c.h.b16 %v2783
  %v3265 = vunpack.c.l.b16 %v2784
  %v3266 = vunpack.c.l.b16 %v2785
  %v3267 = vunpack.c.h.b16 %v2785
  %v3268 = vunpack.c.l.b16 %v2786
  %v3269 = vunpack.c.h.b16 %v2786
  %v3270 = vunpack.c.l.b16 %v2787
  %v3271 = vunpack.c.h.b16 %v2787
  %v3272 = vunpack.c.l.b16 %v2788
  %v3273 = vunpack.c.l.b16 %v2789
  %v3274 = vunpack.c.h.b16 %v2789
  %v3275 = vunpack.c.l.b16 %v2790
  %v3276 = vunpack.c.h.b16 %v2790
  %v3277 = vunpack.c.l.b16 %v2791
  %v3278 = vunpack.c.h.b16 %v2791
  %v3279 = vunpack.c.l.b16 %v2792
  %v3280 = vunpack.c.l.b16 %v2793
  %v3281 = vunpack.c.h.b16 %v2793
  %v3282 = vunpack.c.l.b16 %v2794
  %v3283 = vunpack.c.h.b16 %v2794
  %v3284 = vunpack.c.l.b16 %v2795
  %v3285 = vunpack.c.h.b16 %v2795
  %v3286 = vunpack.c.l.b16 %v2796
  %v3287 = vunpack.c.l.b16 %v2797
  %v3288 = vunpack.c.h.b16 %v2797
  %v3289 = vunpack.c.l.b16 %v2798
  %v3290 = vunpack.c.h.b16 %v2798
  %v3291 = vunpack.c.l.b16 %v2799
  %v3292 = vunpack.c.h.b16 %v2799
  %v3293 = vunpack.c.l.b16 %v2800
  %v3294 = vunpack.c.l.b16 %v2801
  %v3295 = vunpack.c.h.b16 %v2801
  %v3296 = vunpack.c.l.b16 %v2802
  %v3297 = vunpack.c.h.b16 %v2802
  %v3298 = vunpack.c.l.b16 %v2803
  %v3299 = vunpack.c.h.b16 %v2803
  %v3300 = vunpack.c.l.b16 %v2804
  %v3301 = vunpack.c.l.b16 %v2805
  %v3302 = vunpack.c.h.b16 %v2805
  %v3303 = vunpack.c.l.b16 %v2806
  %v3304 = vunpack.c.h.b16 %v2806
  %v3305 = vunpack.c.l.b16 %v2807
  %v3306 = vunpack.c.h.b16 %v2807
  %v3307 = vunpack.c.l.b16 %v2808
  %v3308 = vunpack.c.l.b16 %v2809
  %v3309 = vunpack.c.h.b16 %v2809
  %v3310 = vunpack.c.l.b16 %v2810
  %v3311 = vunpack.c.h.b16 %v2810
  %v3312 = vunpack.c.l.b16 %v2811
  %v3313 = vunpack.c.h.b16 %v2811
  %v3314 = vunpack.c.l.b16 %v2812
  %v3315 = vunpack.c.l.b16 %v2813
  %v3316 = vunpack.c.h.b16 %v2813
  %v3317 = vunpack.c.l.b16 %v2814
  %v3318 = vunpack.c.h.b16 %v2814
  %v3319 = vunpack.c.l.b16 %v2815
  %v3320 = vunpack.c.h.b16 %v2815
  %v3321 = vunpack.c.l.b16 %v2816
  %v3322 = vunpack.c.l.b16 %v2817
  %v3323 = vunpack.c.h.b16 %v2817
  %v3324 = vunpack.c.l.b16 %v2818
  %v3325 = vunpack.c.h.b16 %v2818
  %v3326 = vunpack.c.l.b16 %v2819
  %v3327 = vunpack.c.h.b16 %v2819
  %v3328 = vunpack.c.l.b16 %v2820
  %v3329 = vunpack.c.l.b16 %v2821
  %v3330 = vunpack.c.h.b16 %v2821
  %v3331 = vunpack.c.l.b16 %v2822
  %v3332 = vunpack.c.h.b16 %v2822
  %v3333 = vunpack.c.l.b16 %v2823
  %v3334 = vunpack.c.h.b16 %v2823
  %v3335 = vunpack.c.l.b16 %v2824
  %v3336 = vunpack.c.l.b16 %v2825
  %v3337 = vunpack.c.h.b16 %v2825
  %v3338 = vunpack.c.l.b16 %v2826
  %v3339 = vunpack.c.h.b16 %v2826
  %v3340 = vunpack.c.l.b16 %v2827
  %v3341 = vunpack.c.h.b16 %v2827
  %v3342 = vunpack.c.l.b16 %v2828
  %v3343 = vunpack.c.l.b16 %v2829
  %v3344 = vunpack.c.h.b16 %v2829
  %v3345 = vunpack.c.l.b16 %v2830
  %v3346 = vunpack.c.h.b16 %v2830
  %v3347 = vunpack.c.l.b16 %v2831
  %v3348 = vunpack.c.h.b16 %v2831
  %v3349 = vunpack.c.l.b16 %v2832
  %v3350 = vunpack.c.l.b16 %v2833
  %v3351 = vunpack.c.h.b16 %v2833
  %v3352 = vunpack.c.l.b16 %v2834
  %v3353 = vunpack.c.h.b16 %v2834
  %v3354 = vunpack.c.l.b16 %v2835
  %v3355 = vunpack.c.h.b16 %v2835
  %v3356 = vunpack.c.l.b16 %v2836
  %v3357 = vunpack.c.l.b16 %v2837
  %v3358 = vunpack.c.h.b16 %v2837
  %v3359 = vunpack.c.l.b16 %v2838
  %v3360 = vunpack.c.h.b16 %v2838
  %v3361 = vunpack.c.l.b16 %v2839
  %v3362 = vunpack.c.h.b16 %v2839
  %v3363 = vunpack.c.l.b16 %v2840
  %v3364 = vunpack.c.l.b16 %v2841
  %v3365 = vunpack.c.h.b16 %v2841
  %v3366 = vunpack.c.l.b16 %v2842
  %v3367 = vunpack.c.h.b16 %v2842
  %v3368 = vunpack.c.l.b16 %v2843
  %v3369 = vunpack.c.h.b16 %v2843
  %v3370 = vunpack.c.l.b16 %v2844
  %v3371 = vunpack.c.l.b16 %v2845
  %v3372 = vunpack.c.h.b16 %v2845
  %v3373 = vunpack.c.l.b16 %v2846
  %v3374 = vunpack.c.h.b16 %v2846
  %v3375 = vunpack.c.l.b16 %v2847
  %v3376 = vunpack.c.h.b16 %v2847
  %v3377 = vunpack.c.l.b16 %v2848
  %v3378 = vunpack.c.l.b16 %v2849
  %v3379 = vunpack.c.h.b16 %v2849
  %v3380 = vunpack.c.l.b16 %v2850
  %v3381 = vunpack.c.h.b16 %v2850
  %v3382 = vunpack.c.l.b16 %v2851
  %v3383 = vunpack.c.h.b16 %v2851
  %v3384 = vunpack.c.l.b16 %v2852
  %v3385 = vunpack.c.l.b16 %v2853
  %v3386 = vunpack.c.h.b16 %v2853
  %v3387 = vunpack.c.l.b16 %v2854
  %v3388 = vunpack.c.h.b16 %v2854
  %v3389 = vunpack.c.l.b16 %v2855
  %v3390 = vunpack.c.h.b16 %v2855
  %v3391 = vunpack.c.l.b16 %v2856
  %v3392 = vunpack.c.l.b16 %v2857
  %v3393 = vunpack.c.h.b16 %v2857
  %v3394 = vunpack.c.l.b16 %v2858
  %v3395 = vunpack.c.h.b16 %v2858
  %v3396 = vunpack.c.l.b16 %v2859
  %v3397 = vunpack.c.h.b16 %v2859
  %v3398 = vunpack.c.l.b16 %v2860
  %v3399 = vunpack.c.l.b16 %v2861
  %v3400 = vunpack.c.h.b16 %v2861
  %v3401 = vunpack.c.l.b16 %v2862
  %v3402 = vunpack.c.h.b16 %v2862
  %v3403 = vunpack.c.l.b16 %v2863
  %v3404 = vunpack.c.h.b16 %v2863
  %v3405 = vunpack.c.l.b16 %v2864
  %v3406 = vunpack.c.l.b16 %v2865
  %v3407 = vunpack.c.h.b16 %v2865
  %v3408 = vunpack.c.l.b16 %v2866
  %v3409 = vunpack.c.h.b16 %v2866
  %v3410 = vunpack.c.l.b16 %v2867
  %v3411 = vunpack.c.h.b16 %v2867
  %v3412 = vunpack.c.l.b16 %v2868
  %v3413 = vunpack.c.l.b16 %v2869
  %v3414 = vunpack.c.h.b16 %v2869
  %v3415 = vunpack.c.l.b16 %v2870
  %v3416 = vunpack.c.h.b16 %v2870
  %v3417 = vunpack.c.l.b16 %v2871
  %v3418 = vunpack.c.h.b16 %v2871
  %v3419 = vunpack.c.l.b16 %v2872
  %v3420 = vunpack.c.l.b16 %v2873
  %v3421 = vunpack.c.h.b16 %v2873
  %v3422 = vunpack.c.l.b16 %v2874
  %v3423 = vunpack.c.h.b16 %v2874
  %v3424 = vunpack.c.l.b16 %v2875
  %v3425 = vunpack.c.h.b16 %v2875
  %v3426 = vunpack.c.l.b16 %v2876
  %v3427 = vunpack.c.l.b16 %v2877
  %v3428 = vunpack.c.h.b16 %v2877
  %v3429 = vunpack.c.l.b16 %v2878
  %v3430 = vunpack.c.h.b16 %v2878
  %v3431 = vunpack.c.l.b16 %v2879
  %v3432 = vunpack.c.h.b16 %v2879
  %v3433 = vunpack.c.l.b16 %v2880
  %v3434 = vunpack.c.l.b16 %v2881
  %v3435 = vunpack.c.h.b16 %v2881
  %v3436 = vunpack.c.l.b16 %v2882
  %v3437 = vunpack.c.h.b16 %v2882
  %v3438 = vunpack.c.l.b16 %v2883
  %v3439 = vunpack.c.h.b16 %v2883
  %v3440 = vunpack.c.l.b16 %v2884
  %v3441 = vunpack.c.l.b16 %v2885
  %v3442 = vunpack.c.h.b16 %v2885
  %v3443 = vunpack.c.l.b16 %v2886
  %v3444 = vunpack.c.h.b16 %v2886
  %v3445 = vunpack.c.l.b16 %v2887
  %v3446 = vunpack.c.h.b16 %v2887
  %v3447 = vunpack.c.l.b16 %v2888
  %v3448 = vunpack.c.l.b16 %v2889
  %v3449 = vunpack.c.h.b16 %v2889
  %v3450 = vunpack.c.l.b16 %v2890
  %v3451 = vunpack.c.h.b16 %v2890
  %v3452 = vunpack.c.l.b16 %v2891
  %v3453 = vunpack.c.h.b16 %v2891
  %v3454 = vunpack.c.l.b16 %v2892
  %v3455 = vunpack.c.l.b16 %v2893
  %v3456 = vunpack.c.h.b16 %v2893
  %v3457 = vunpack.c.l.b16 %v2894
  %v3458 = vunpack.c.h.b16 %v2894
  %v3459 = vunpack.c.l.b16 %v2895
  %v3460 = vunpack.c.h.b16 %v2895
  %v3461 = vunpack.c.l.b16 %v2896
  %v3462 = vpack.c.b16 %v3133, %v3126
  %v3463 = vpack.c.b16 %v3134, %v3127
  %v3464 = vpack.c.b16 %v3135, %v3128
  %v3465 = vpack.c.b16 %v3136, %v3129
  %v3466 = vpack.c.b16 %v3137, %v3130
  %v3467 = vpack.c.b16 %v3138, %v3131
  %v3468 = vpack.c.b16 %v3139, %v3132
  %v3469 = vpack.c.b16 %v3147, %v3140
  %v3470 = vpack.c.b16 %v3148, %v3141
  %v3471 = vpack.c.b16 %v3149, %v3142
  %v3472 = vpack.c.b16 %v3150, %v3143
  %v3473 = vpack.c.b16 %v3151, %v3144
  %v3474 = vpack.c.b16 %v3152, %v3145
  %v3475 = vpack.c.b16 %v3153, %v3146
  %v3476 = vpack.c.b16 %v3161, %v3154
  %v3477 = vpack.c.b16 %v3162, %v3155
  %v3478 = vpack.c.b16 %v3163, %v3156
  %v3479 = vpack.c.b16 %v3164, %v3157
  %v3480 = vpack.c.b16 %v3165, %v3158
  %v3481 = vpack.c.b16 %v3166, %v3159
  %v3482 = vpack.c.b16 %v3167, %v3160
  %v3483 = vpack.c.b16 %v3175, %v3168
  %v3484 = vpack.c.b16 %v3176, %v3169
  %v3485 = vpack.c.b16 %v3177, %v3170
  %v3486 = vpack.c.b16 %v3178, %v3171
  %v3487 = vpack.c.b16 %v3179, %v3172
  %v3488 = vpack.c.b16 %v3180, %v3173
  %v3489 = vpack.c.b16 %v3181, %v3174
  %v3490 = vpack.c.b16 %v3189, %v3182
  %v3491 = vpack.c.b16 %v3190, %v3183
  %v3492 = vpack.c.b16 %v3191, %v3184
  %v3493 = vpack.c.b16 %v3192, %v3185
  %v3494 = vpack.c.b16 %v3193, %v3186
  %v3495 = vpack.c.b16 %v3194, %v3187
  %v3496 = vpack.c.b16 %v3195, %v3188
  %v3497 = vpack.c.b16 %v3203, %v3196
  %v3498 = vpack.c.b16 %v3204, %v3197
  %v3499 = vpack.c.b16 %v3205, %v3198
  %v3500 = vpack.c.b16 %v3206, %v3199
  %v3501 = vpack.c.b16 %v3207, %v3200
  %v3502 = vpack.c.b16 %v3208, %v3201
  %v3503 = vpack.c.b16 %v3209, %v3202
  %v3504 = vpack.c.b16 %v3217, %v3210
  %v3505 = vpack.c.b16 %v3218, %v3211
  %v3506 = vpack.c.b16 %v3219, %v3212
  %v3507 = vpack.c.b16 %v3220, %v3213
  %v3508 = vpack.c.b16 %v3221, %v3214
  %v3509 = vpack.c.b16 %v3222, %v3215
  %v3510 = vpack.c.b16 %v3223, %v3216
  %v3511 = vpack.c.b16 %v3231, %v3224
  %v3512 = vpack.c.b16 %v3232, %v3225
  %v3513 = vpack.c.b16 %v3233, %v3226
  %v3514 = vpack.c.b16 %v3234, %v3227
  %v3515 = vpack.c.b16 %v3235, %v3228
  %v3516 = vpack.c.b16 %v3236, %v3229
  %v3517 = vpack.c.b16 %v3237, %v3230
  %v3518 = vpack.c.b16 %v3245, %v3238
  %v3519 = vpack.c.b16 %v3246, %v3239
  %v3520 = vpack.c.b16 %v3247, %v3240
  %v3521 = vpack.c.b16 %v3248, %v3241
  %v3522 = vpack.c.b16 %v3249, %v3242
  %v3523 = vpack.c.b16 %v3250, %v3243
  %v3524 = vpack.c.b16 %v3251, %v3244
  %v3525 = vpack.c.b16 %v3259, %v3252
  %v3526 = vpack.c.b16 %v3260, %v3253
  %v3527 = vpack.c.b16 %v3261, %v3254
  %v3528 = vpack.c.b16 %v3262, %v3255
  %v3529 = vpack.c.b16 %v3263, %v3256
  %v3530 = vpack.c.b16 %v3264, %v3257
  %v3531 = vpack.c.b16 %v3265, %v3258
  %v3532 = vpack.c.b16 %v3273, %v3266
  %v3533 = vpack.c.b16 %v3274, %v3267
  %v3534 = vpack.c.b16 %v3275, %v3268
  %v3535 = vpack.c.b16 %v3276, %v3269
  %v3536 = vpack.c.b16 %v3277, %v3270
  %v3537 = vpack.c.b16 %v3278, %v3271
  %v3538 = vpack.c.b16 %v3279, %v3272
  %v3539 = vpack.c.b16 %v3287, %v3280
  %v3540 = vpack.c.b16 %v3288, %v3281
  %v3541 = vpack.c.b16 %v3289, %v3282
  %v3542 = vpack.c.b16 %v3290, %v3283
  %v3543 = vpack.c.b16 %v3291, %v3284
  %v3544 = vpack.c.b16 %v3292, %v3285
  %v3545 = vpack.c.b16 %v3293, %v3286
  %v3546 = vpack.c.b16 %v3301, %v3294
  %v3547 = vpack.c.b16 %v3302, %v3295
  %v3548 = vpack.c.b16 %v3303, %v3296
  %v3549 = vpack.c.b16 %v3304, %v3297
  %v3550 = vpack.c.b16 %v3305, %v3298
  %v3551 = vpack.c.b16 %v3306, %v3299
  %v3552 = vpack.c.b16 %v3307, %v3300
  %v3553 = vpack.c.b16 %v3315, %v3308
  %v3554 = vpack.c.b16 %v3316, %v3309
  %v3555 = vpack.c.b16 %v3317, %v3310
  %v3556 = vpack.c.b16 %v3318, %v3311
  %v3557 = vpack.c.b16 %v3319, %v3312
  %v3558 = vpack.c.b16 %v3320, %v3313
  %v3559 = vpack.c.b16 %v3321, %v3314
  %v3560 = vpack.c.b16 %v3329, %v3322
  %v3561 = vpack.c.b16 %v3330, %v3323
  %v3562 = vpack.c.b16 %v3331, %v3324
  %v3563 = vpack.c.b16 %v3332, %v3325
  %v3564 = vpack.c.b16 %v3333, %v3326
  %v3565 = vpack.c.b16 %v3334, %v3327
  %v3566 = vpack.c.b16 %v3335, %v3328
  %v3567 = vpack.c.b16 %v3343, %v3336
  %v3568 = vpack.c.b16 %v3344, %v3337
  %v3569 = vpack.c.b16 %v3345, %v3338
  %v3570 = vpack.c.b16 %v3346, %v3339
  %v3571 = vpack.c.b16 %v3347, %v3340
  %v3572 = vpack.c.b16 %v3348, %v3341
  %v3573 = vpack.c.b16 %v3349, %v3342
  %v3574 = vpack.c.b16 %v3357, %v3350
  %v3575 = vpack.c.b16 %v3358, %v3351
  %v3576 = vpack.c.b16 %v3359, %v3352
  %v3577 = vpack.c.b16 %v3360, %v3353
  %v3578 = vpack.c.b16 %v3361, %v3354
  %v3579 = vpack.c.b16 %v3362, %v3355
  %v3580 = vpack.c.b16 %v3363, %v3356
  %v3581 = vpack.c.b16 %v3371, %v3364
  %v3582 = vpack.c.b16 %v3372, %v3365
  %v3583 = vpack.c.b16 %v3373, %v3366
  %v3584 = vpack.c.b16 %v3374, %v3367
  %v3585 = vpack.c.b16 %v3375, %v3368
  %v3586 = vpack.c.b16 %v3376, %v3369
  %v3587 = vpack.c.b16 %v3377, %v3370
  %v3588 = vpack.c.b16 %v3385, %v3378
  %v3589 = vpack.c.b16 %v3386, %v3379
  %v3590 = vpack.c.b16 %v3387, %v3380
  %v3591 = vpack.c.b16 %v3388, %v3381
  %v3592 = vpack.c.b16 %v3389, %v3382
  %v3593 = vpack.c.b16 %v3390, %v3383
  %v3594 = vpack.c.b16 %v3391, %v3384
  %v3595 = vpack.c.b16 %v3399, %v3392
  %v3596 = vpack.c.b16 %v3400, %v3393
  %v3597 = vpack.c.b16 %v3401, %v3394
  %v3598 = vpack.c.b16 %v3402, %v3395
  %v3599 = vpack.c.b16 %v3403, %v3396
  %v3600 = vpack.c.b16 %v3404, %v3397
  %v3601 = vpack.c.b16 %v3405, %v3398
  %v3602 = vpack.c.b16 %v3413, %v3406
  %v3603 = vpack.c.b16 %v3414, %v3407
  %v3604 = vpack.c.b16 %v3415, %v3408
  %v3605 = vpack.c.b16 %v3416, %v3409
  %v3606 = vpack.c.b16 %v3417, %v3410
  %v3607 = vpack.c.b16 %v3418, %v3411
  %v3608 = vpack.c.b16 %v3419, %v3412
  %v3609 = vpack.c.b16 %v3427, %v3420
  %v3610 = vpack.c.b16 %v3428, %v3421
  %v3611 = vpack.c.b16 %v3429, %v3422
  %v3612 = vpack.c.b16 %v3430, %v3423
  %v3613 = vpack.c.b16 %v3431, %v3424
  %v3614 = vpack.c.b16 %v3432, %v3425
  %v3615 = vpack.c.b16 %v3433, %v3426
  %v3616 = vpack.c.b16 %v3441, %v3434
  %v3617 = vpack.c.b16 %v3442, %v3435
  %v3618 = vpack.c.b16 %v3443, %v3436
  %v3619 = vpack.c.b16 %v3444, %v3437
  %v3620 = vpack.c.b16 %v3445, %v3438
  %v3621 = vpack.c.b16 %v3446, %v3439
  %v3622 = vpack.c.b16 %v3447, %v3440
  %v3623 = vpack.c.b16 %v3455, %v3448
  %v3624 = vpack.c.b16 %v3456, %v3449
  %v3625 = vpack.c.b16 %v3457, %v3450
  %v3626 = vpack.c.b16 %v3458, %v3451
  %v3627 = vpack.c.b16 %v3459, %v3452
  %v3628 = vpack.c.b16 %v3460, %v3453
  %v3629 = vpack.c.b16 %v3461, %v3454
  %3798 = vmatprep.subr.bf16.mxu0 %v3463
  %3799 = vmatpush1.bf16.msra.mxu0 %v3462
  %3800 = vmatprep.subr.bf16.mxu0 %v3470
  %3801 = vmatpush1.bf16.msra.mxu0 %v3469
  %3802 = vmatprep.subr.bf16.mxu0 %v3477
  %3803 = vmatpush1.bf16.msra.mxu0 %v3476
  %3804 = vmatprep.subr.bf16.mxu0 %v3484
  %3805 = vmatpush1.bf16.msra.mxu0 %v3483
  %3806 = vmatprep.subr.bf16.mxu0 %v3491
  %3807 = vmatpush1.bf16.msra.mxu0 %v3490
  %3808 = vmatprep.subr.bf16.mxu0 %v3498
  %3809 = vmatpush1.bf16.msra.mxu0 %v3497
  %3810 = vmatprep.subr.bf16.mxu0 %v3505
  %3811 = vmatpush1.bf16.msra.mxu0 %v3504
  %3812 = vmatprep.subr.bf16.mxu0 %v3512
  %3813 = vmatpush1.bf16.msra.mxu0 %v3511
  %3814 = vmatprep.subr.bf16.mxu0 %v3519
  %3815 = vmatpush1.bf16.msra.mxu0 %v3518
  %3816 = vmatprep.subr.bf16.mxu0 %v3526
  %3817 = vmatpush1.bf16.msra.mxu0 %v3525
  %3818 = vmatprep.subr.bf16.mxu0 %v3533
  %3819 = vmatpush1.bf16.msra.mxu0 %v3532
  %3820 = vmatprep.subr.bf16.mxu0 %v3540
  %3821 = vmatpush1.bf16.msra.mxu0 %v3539
  %3822 = vmatprep.subr.bf16.mxu0 %v3547
  %3823 = vmatpush1.bf16.msra.mxu0 %v3546
  %3824 = vmatprep.subr.bf16.mxu0 %v3554
  %3825 = vmatpush1.bf16.msra.mxu0 %v3553
  %3826 = vmatprep.subr.bf16.mxu0 %v3561
  %3827 = vmatpush1.bf16.msra.mxu0 %v3560
  %3828 = vmatprep.subr.bf16.mxu0 %v3568
  %3829 = vmatpush1.bf16.msra.mxu0 %v3567
  %3830 = vmatprep.mubr.bf16.mxu0 %v2703
  %3831 = vmatmul.mubr.bf16.gmra.mrb[0].mxu0 %v2702
  %v3832 = vpop.f32.mrb[0].mxu0
  %v3833 = vadd.f32 %v2902, %v3832
  %v3834 = vpop.f32.mrb[0].mxu0
  %v3835 = vadd.f32 %v2906, %v3834
  %v3836 = vpop.f32.mrb[0].mxu0
  %v3837 = vpop.f32.mrb[0].mxu0
  %3838 = vdwg.mxu0
  %3839 = vmatprep.subr.bf16.mxu0 %v3575
  %3840 = vmatpush1.bf16.msra.mxu0 %v3574
  %3841 = vmatprep.subr.bf16.mxu0 %v3582
  %3842 = vmatpush1.bf16.msra.mxu0 %v3581
  %3843 = vmatprep.subr.bf16.mxu0 %v3589
  %3844 = vmatpush1.bf16.msra.mxu0 %v3588
  %3845 = vmatprep.subr.bf16.mxu0 %v3596
  %3846 = vmatpush1.bf16.msra.mxu0 %v3595
  %3847 = vmatprep.subr.bf16.mxu0 %v3603
  %3848 = vmatpush1.bf16.msra.mxu0 %v3602
  %3849 = vmatprep.subr.bf16.mxu0 %v3610
  %3850 = vmatpush1.bf16.msra.mxu0 %v3609
  %3851 = vmatprep.subr.bf16.mxu0 %v3617
  %3852 = vmatpush1.bf16.msra.mxu0 %v3616
  %3853 = vmatprep.subr.bf16.mxu0 %v3624
  %3854 = vmatpush1.bf16.msra.mxu0 %v3623
  %3855 = vmatprep.subr.bf16.mxu0 0
  %3856 = vmatpush1.bf16.msra.mxu0 0
  %3857 = vmatprep.subr.bf16.mxu0 0
  %3858 = vmatpush1.bf16.msra.mxu0 0
  %3859 = vmatprep.subr.bf16.mxu0 0
  %3860 = vmatpush1.bf16.msra.mxu0 0
  %3861 = vmatprep.subr.bf16.mxu0 0
  %3862 = vmatpush1.bf16.msra.mxu0 0
  %3863 = vmatprep.subr.bf16.mxu0 0
  %3864 = vmatpush1.bf16.msra.mxu0 0
  %3865 = vmatprep.subr.bf16.mxu0 0
  %3866 = vmatpush1.bf16.msra.mxu0 0
  %3867 = vmatprep.subr.bf16.mxu0 0
  %3868 = vmatpush1.bf16.msra.mxu0 0
  %3869 = vmatprep.subr.bf16.mxu0 0
  %3870 = vmatpush1.bf16.msra.mxu0 0
  %3871 = vmatprep.mubr.bf16.mxu0 0
  %3872 = vmatmul.mubr.bf16.gmra.mrb[0].mxu0 %v2704
  %v3873 = vpop.f32.mrb[0].mxu0
  %v3874 = vadd.f32 %v3833, %v3873
  %v3875 = vpop.f32.mrb[0].mxu0
  %v3876 = vadd.f32 %v3835, %v3875
  %v3877 = vpop.f32.mrb[0].mxu0
  %v3878 = vpop.f32.mrb[0].mxu0
  %3879 = vdwg.mxu0
  %3880 = vmatprep.subr.bf16.mxu0 %v3465
  %3881 = vmatpush1.bf16.msra.mxu0 %v3464
  %3882 = vmatprep.subr.bf16.mxu0 %v3472
  %3883 = vmatpush1.bf16.msra.mxu0 %v3471
  %3884 = vmatprep.subr.bf16.mxu0 %v3479
  %3885 = vmatpush1.bf16.msra.mxu0 %v3478
  %3886 = vmatprep.subr.bf16.mxu0 %v3486
  %3887 = vmatpush1.bf16.msra.mxu0 %v3485
  %3888 = vmatprep.subr.bf16.mxu0 %v3493
  %3889 = vmatpush1.bf16.msra.mxu0 %v3492
  %3890 = vmatprep.subr.bf16.mxu0 %v3500
  %3891 = vmatpush1.bf16.msra.mxu0 %v3499
  %3892 = vmatprep.subr.bf16.mxu0 %v3507
  %3893 = vmatpush1.bf16.msra.mxu0 %v3506
  %3894 = vmatprep.subr.bf16.mxu0 %v3514
  %3895 = vmatpush1.bf16.msra.mxu0 %v3513
  %3896 = vmatprep.subr.bf16.mxu0 %v3521
  %3897 = vmatpush1.bf16.msra.mxu0 %v3520
  %3898 = vmatprep.subr.bf16.mxu0 %v3528
  %3899 = vmatpush1.bf16.msra.mxu0 %v3527
  %3900 = vmatprep.subr.bf16.mxu0 %v3535
  %3901 = vmatpush1.bf16.msra.mxu0 %v3534
  %3902 = vmatprep.subr.bf16.mxu0 %v3542
  %3903 = vmatpush1.bf16.msra.mxu0 %v3541
  %3904 = vmatprep.subr.bf16.mxu0 %v3549
  %3905 = vmatpush1.bf16.msra.mxu0 %v3548
  %3906 = vmatprep.subr.bf16.mxu0 %v3556
  %3907 = vmatpush1.bf16.msra.mxu0 %v3555
  %3908 = vmatprep.subr.bf16.mxu0 %v3563
  %3909 = vmatpush1.bf16.msra.mxu0 %v3562
  %3910 = vmatprep.subr.bf16.mxu0 %v3570
  %3911 = vmatpush1.bf16.msra.mxu0 %v3569
  %3912 = vmatprep.mubr.bf16.mxu0 %v2703
  %3913 = vmatmul.mubr.bf16.gmra.mrb[0].mxu0 %v2702
  %v3914 = vpop.f32.mrb[0].mxu0
  %v3915 = vadd.f32 %v2910, %v3914
  %v3916 = vpop.f32.mrb[0].mxu0
  %v3917 = vadd.f32 %v2914, %v3916
  %v3918 = vpop.f32.mrb[0].mxu0
  %v3919 = vpop.f32.mrb[0].mxu0
  %3920 = vdwg.mxu0
  %3921 = vmatprep.subr.bf16.mxu0 %v3577
  %3922 = vmatpush1.bf16.msra.mxu0 %v3576
  %3923 = vmatprep.subr.bf16.mxu0 %v3584
  %3924 = vmatpush1.bf16.msra.mxu0 %v3583
  %3925 = vmatprep.subr.bf16.mxu0 %v3591
  %3926 = vmatpush1.bf16.msra.mxu0 %v3590
  %3927 = vmatprep.subr.bf16.mxu0 %v3598
  %3928 = vmatpush1.bf16.msra.mxu0 %v3597
  %3929 = vmatprep.subr.bf16.mxu0 %v3605
  %3930 = vmatpush1.bf16.msra.mxu0 %v3604
  %3931 = vmatprep.subr.bf16.mxu0 %v3612
  %3932 = vmatpush1.bf16.msra.mxu0 %v3611
  %3933 = vmatprep.subr.bf16.mxu0 %v3619
  %3934 = vmatpush1.bf16.msra.mxu0 %v3618
  %3935 = vmatprep.subr.bf16.mxu0 %v3626
  %3936 = vmatpush1.bf16.msra.mxu0 %v3625
  %3937 = vmatprep.subr.bf16.mxu0 0
  %3938 = vmatpush1.bf16.msra.mxu0 0
  %3939 = vmatprep.subr.bf16.mxu0 0
  %3940 = vmatpush1.bf16.msra.mxu0 0
  %3941 = vmatprep.subr.bf16.mxu0 0
  %3942 = vmatpush1.bf16.msra.mxu0 0
  %3943 = vmatprep.subr.bf16.mxu0 0
  %3944 = vmatpush1.bf16.msra.mxu0 0
  %3945 = vmatprep.subr.bf16.mxu0 0
  %3946 = vmatpush1.bf16.msra.mxu0 0
  %3947 = vmatprep.subr.bf16.mxu0 0
  %3948 = vmatpush1.bf16.msra.mxu0 0
  %3949 = vmatprep.subr.bf16.mxu0 0
  %3950 = vmatpush1.bf16.msra.mxu0 0
  %3951 = vmatprep.subr.bf16.mxu0 0
  %3952 = vmatpush1.bf16.msra.mxu0 0
  %3953 = vmatprep.mubr.bf16.mxu0 0
  %3954 = vmatmul.mubr.bf16.gmra.mrb[0].mxu0 %v2704
  %v3955 = vpop.f32.mrb[0].mxu0
  %v3956 = vadd.f32 %v3915, %v3955
  %v3957 = vpop.f32.mrb[0].mxu0
  %v3958 = vadd.f32 %v3917, %v3957
  %v3959 = vpop.f32.mrb[0].mxu0
  %v3960 = vpop.f32.mrb[0].mxu0
  %3961 = vdwg.mxu0
  %3962 = vmatprep.subr.bf16.mxu0 %v3467
  %3963 = vmatpush1.bf16.msra.mxu0 %v3466
  %3964 = vmatprep.subr.bf16.mxu0 %v3474
  %3965 = vmatpush1.bf16.msra.mxu0 %v3473
  %3966 = vmatprep.subr.bf16.mxu0 %v3481
  %3967 = vmatpush1.bf16.msra.mxu0 %v3480
  %3968 = vmatprep.subr.bf16.mxu0 %v3488
  %3969 = vmatpush1.bf16.msra.mxu0 %v3487
  %3970 = vmatprep.subr.bf16.mxu0 %v3495
  %3971 = vmatpush1.bf16.msra.mxu0 %v3494
  %3972 = vmatprep.subr.bf16.mxu0 %v3502
  %3973 = vmatpush1.bf16.msra.mxu0 %v3501
  %3974 = vmatprep.subr.bf16.mxu0 %v3509
  %3975 = vmatpush1.bf16.msra.mxu0 %v3508
  %3976 = vmatprep.subr.bf16.mxu0 %v3516
  %3977 = vmatpush1.bf16.msra.mxu0 %v3515
  %3978 = vmatprep.subr.bf16.mxu0 %v3523
  %3979 = vmatpush1.bf16.msra.mxu0 %v3522
  %3980 = vmatprep.subr.bf16.mxu0 %v3530
  %3981 = vmatpush1.bf16.msra.mxu0 %v3529
  %3982 = vmatprep.subr.bf16.mxu0 %v3537
  %3983 = vmatpush1.bf16.msra.mxu0 %v3536
  %3984 = vmatprep.subr.bf16.mxu0 %v3544
  %3985 = vmatpush1.bf16.msra.mxu0 %v3543
  %3986 = vmatprep.subr.bf16.mxu0 %v3551
  %3987 = vmatpush1.bf16.msra.mxu0 %v3550
  %3988 = vmatprep.subr.bf16.mxu0 %v3558
  %3989 = vmatpush1.bf16.msra.mxu0 %v3557
  %3990 = vmatprep.subr.bf16.mxu0 %v3565
  %3991 = vmatpush1.bf16.msra.mxu0 %v3564
  %3992 = vmatprep.subr.bf16.mxu0 %v3572
  %3993 = vmatpush1.bf16.msra.mxu0 %v3571
  %3994 = vmatprep.mubr.bf16.mxu0 %v2703
  %3995 = vmatmul.mubr.bf16.gmra.mrb[0].mxu0 %v2702
  %v3996 = vpop.f32.mrb[0].mxu0
  %v3997 = vadd.f32 %v2918, %v3996
  %v3998 = vpop.f32.mrb[0].mxu0
  %v3999 = vadd.f32 %v2922, %v3998
  %v4000 = vpop.f32.mrb[0].mxu0
  %v4001 = vpop.f32.mrb[0].mxu0
  %4002 = vdwg.mxu0
  %4003 = vmatprep.subr.bf16.mxu0 %v3579
  %4004 = vmatpush1.bf16.msra.mxu0 %v3578
  %4005 = vmatprep.subr.bf16.mxu0 %v3586
  %4006 = vmatpush1.bf16.msra.mxu0 %v3585
  %4007 = vmatprep.subr.bf16.mxu0 %v3593
  %4008 = vmatpush1.bf16.msra.mxu0 %v3592
  %4009 = vmatprep.subr.bf16.mxu0 %v3600
  %4010 = vmatpush1.bf16.msra.mxu0 %v3599
  %4011 = vmatprep.subr.bf16.mxu0 %v3607
  %4012 = vmatpush1.bf16.msra.mxu0 %v3606
  %4013 = vmatprep.subr.bf16.mxu0 %v3614
  %4014 = vmatpush1.bf16.msra.mxu0 %v3613
  %4015 = vmatprep.subr.bf16.mxu0 %v3621
  %4016 = vmatpush1.bf16.msra.mxu0 %v3620
  %4017 = vmatprep.subr.bf16.mxu0 %v3628
  %4018 = vmatpush1.bf16.msra.mxu0 %v3627
  %4019 = vmatprep.subr.bf16.mxu0 0
  %4020 = vmatpush1.bf16.msra.mxu0 0
  %4021 = vmatprep.subr.bf16.mxu0 0
  %4022 = vmatpush1.bf16.msra.mxu0 0
  %4023 = vmatprep.subr.bf16.mxu0 0
  %4024 = vmatpush1.bf16.msra.mxu0 0
  %4025 = vmatprep.subr.bf16.mxu0 0
  %4026 = vmatpush1.bf16.msra.mxu0 0
  %4027 = vmatprep.subr.bf16.mxu0 0
  %4028 = vmatpush1.bf16.msra.mxu0 0
  %4029 = vmatprep.subr.bf16.mxu0 0
  %4030 = vmatpush1.bf16.msra.mxu0 0
  %4031 = vmatprep.subr.bf16.mxu0 0
  %4032 = vmatpush1.bf16.msra.mxu0 0
  %4033 = vmatprep.subr.bf16.mxu0 0
  %4034 = vmatpush1.bf16.msra.mxu0 0
  %4035 = vmatprep.mubr.bf16.mxu0 0
  %4036 = vmatmul.mubr.bf16.gmra.mrb[0].mxu0 %v2704
  %v4037 = vpop.f32.mrb[0].mxu0
  %v4038 = vadd.f32 %v3997, %v4037
  %v4039 = vpop.f32.mrb[0].mxu0
  %v4040 = vadd.f32 %v3999, %v4039
  %v4041 = vpop.f32.mrb[0].mxu0
  %v4042 = vpop.f32.mrb[0].mxu0
  %4043 = vdwg.mxu0
  %4044 = vmatprep.subr.bf16.mxu0 0
  %4045 = vmatpush1.bf16.msra.mxu0 %v3468
  %4046 = vmatprep.subr.bf16.mxu0 0
  %4047 = vmatpush1.bf16.msra.mxu0 %v3475
  %4048 = vmatprep.subr.bf16.mxu0 0
  %4049 = vmatpush1.bf16.msra.mxu0 %v3482
  %4050 = vmatprep.subr.bf16.mxu0 0
  %4051 = vmatpush1.bf16.msra.mxu0 %v3489
  %4052 = vmatprep.subr.bf16.mxu0 0
  %4053 = vmatpush1.bf16.msra.mxu0 %v3496
  %4054 = vmatprep.subr.bf16.mxu0 0
  %4055 = vmatpush1.bf16.msra.mxu0 %v3503
  %4056 = vmatprep.subr.bf16.mxu0 0
  %4057 = vmatpush1.bf16.msra.mxu0 %v3510
  %4058 = vmatprep.subr.bf16.mxu0 0
  %4059 = vmatpush1.bf16.msra.mxu0 %v3517
  %4060 = vmatprep.subr.bf16.mxu0 0
  %4061 = vmatpush1.bf16.msra.mxu0 %v3524
  %4062 = vmatprep.subr.bf16.mxu0 0
  %4063 = vmatpush1.bf16.msra.mxu0 %v3531
  %4064 = vmatprep.subr.bf16.mxu0 0
  %4065 = vmatpush1.bf16.msra.mxu0 %v3538
  %4066 = vmatprep.subr.bf16.mxu0 0
  %4067 = vmatpush1.bf16.msra.mxu0 %v3545
  %4068 = vmatprep.subr.bf16.mxu0 0
  %4069 = vmatpush1.bf16.msra.mxu0 %v3552
  %4070 = vmatprep.subr.bf16.mxu0 0
  %4071 = vmatpush1.bf16.msra.mxu0 %v3559
  %4072 = vmatprep.subr.bf16.mxu0 0
  %4073 = vmatpush1.bf16.msra.mxu0 %v3566
  %4074 = vmatprep.subr.bf16.mxu0 0
  %4075 = vmatpush1.bf16.msra.mxu0 %v3573
  %4076 = vmatprep.mubr.bf16.mxu0 %v2703
  %4077 = vmatmul.mubr.bf16.gmra.mrb[0].mxu0 %v2702
  %v4078 = vpop.f32.mrb[0].mxu0
  %v4079 = vadd.f32 %v2926, %v4078
  %v4080 = vpop.f32.mrb[0].mxu0
  %v4081 = vpop.f32.mrb[0].mxu0
  %v4082 = vpop.f32.mrb[0].mxu0
  %4083 = vdwg.mxu0
  %4084 = vmatprep.subr.bf16.mxu0 0
  %4085 = vmatpush1.bf16.msra.mxu0 %v3580
  %4086 = vmatprep.subr.bf16.mxu0 0
  %4087 = vmatpush1.bf16.msra.mxu0 %v3587
  %4088 = vmatprep.subr.bf16.mxu0 0
  %4089 = vmatpush1.bf16.msra.mxu0 %v3594
  %4090 = vmatprep.subr.bf16.mxu0 0
  %4091 = vmatpush1.bf16.msra.mxu0 %v3601
  %4092 = vmatprep.subr.bf16.mxu0 0
  %4093 = vmatpush1.bf16.msra.mxu0 %v3608
  %4094 = vmatprep.subr.bf16.mxu0 0
  %4095 = vmatpush1.bf16.msra.mxu0 %v3615
  %4096 = vmatprep.subr.bf16.mxu0 0
  %4097 = vmatpush1.bf16.msra.mxu0 %v3622
  %4098 = vmatprep.subr.bf16.mxu0 0
  %4099 = vmatpush1.bf16.msra.mxu0 %v3629
  %4100 = vmatprep.subr.bf16.mxu0 0
  %4101 = vmatpush1.bf16.msra.mxu0 0
  %4102 = vmatprep.subr.bf16.mxu0 0
  %4103 = vmatpush1.bf16.msra.mxu0 0
  %4104 = vmatprep.subr.bf16.mxu0 0
  %4105 = vmatpush1.bf16.msra.mxu0 0
  %4106 = vmatprep.subr.bf16.mxu0 0
  %4107 = vmatpush1.bf16.msra.mxu0 0
  %4108 = vmatprep.subr.bf16.mxu0 0
  %4109 = vmatpush1.bf16.msra.mxu0 0
  %4110 = vmatprep.subr.bf16.mxu0 0
  %4111 = vmatpush1.bf16.msra.mxu0 0
  %4112 = vmatprep.subr.bf16.mxu0 0
  %4113 = vmatpush1.bf16.msra.mxu0 0
  %4114 = vmatprep.subr.bf16.mxu0 0
  %4115 = vmatpush1.bf16.msra.mxu0 0
  %4116 = vmatprep.mubr.bf16.mxu0 0
  %4117 = vmatmul.mubr.bf16.gmra.mrb[0].mxu0 %v2704
  %v4118 = vpop.f32.mrb[0].mxu0
  %v4119 = vadd.f32 %v4079, %v4118
  %v4120 = vpop.f32.mrb[0].mxu0
  %v4121 = vpop.f32.mrb[0].mxu0
  %v4122 = vpop.f32.mrb[0].mxu0
  %4123 = vdwg.mxu0
  %v4124 = vxor.u32 %v3874, 2147483648
  %v4125 = vxor.u32 %v3876, 2147483648
  %v4126 = vxor.u32 %v3956, 2147483648
  %v4127 = vxor.u32 %v3958, 2147483648
  %v4128 = vxor.u32 %v4038, 2147483648
  %v4129 = vxor.u32 %v4040, 2147483648
  %v4130 = vxor.u32 %v4119, 2147483648
  %v4131 = vmul.f32 %v4124, 1.442695
  %v4132 = vpow.pop %v4131
  %v4133 = vmul.f32 %v4125, 1.442695
  %v4134 = vpow.pop %v4133
  %v4135 = vmul.f32 %v4126, 1.442695
  %v4136 = vpow.pop %v4135
  %v4137 = vmul.f32 %v4127, 1.442695
  %v4138 = vpow.pop %v4137
  %v4139 = vmul.f32 %v4128, 1.442695
  %v4140 = vpow.pop %v4139
  %v4141 = vmul.f32 %v4129, 1.442695
  %v4142 = vpow.pop %v4141
  %v4143 = vmul.f32 %v4130, 1.442695
  %v4144 = vpow.pop %v4143
  %v4145 = vadd.f32 %v4132, 1.0
  %v4146 = vadd.f32 %v4134, 1.0
  %v4147 = vadd.f32 %v4136, 1.0
  %v4148 = vadd.f32 %v4138, 1.0
  %v4149 = vadd.f32 %v4140, 1.0
  %v4150 = vadd.f32 %v4142, 1.0
  %v4151 = vadd.f32 %v4144, 1.0
  %v4152 = vrcp.pop %v4145
  %v4153 = vmul.f32 1.0, %v4152
  %v4154 = vrcp.pop %v4146
  %v4155 = vmul.f32 1.0, %v4154
  %v4156 = vrcp.pop %v4147
  %v4157 = vmul.f32 1.0, %v4156
  %v4158 = vrcp.pop %v4148
  %v4159 = vmul.f32 1.0, %v4158
  %v4160 = vrcp.pop %v4149
  %v4161 = vmul.f32 1.0, %v4160
  %v4162 = vrcp.pop %v4150
  %v4163 = vmul.f32 1.0, %v4162
  %v4164 = vrcp.pop %v4151
  %v4165 = vmul.f32 1.0, %v4164
  %4166 = vst [vmem:[%s18] sm:$0xff] %v4153
  %4167 = vst [vmem:[%s18 + $0x8] sm:$0xff] %v4155
  %4168 = vst [vmem:[%s18 + $0x10] sm:$0xff] %v4157
  %4169 = vst [vmem:[%s18 + $0x18] sm:$0xff] %v4159
  %4170 = vst [vmem:[%s18 + $0x20] sm:$0xff] %v4161
  %4171 = vst [vmem:[%s18 + $0x28] sm:$0xff] %v4163
  %4172 = vst.msk [vmem:[%s18 + $0x30] sm:$0xff] %vm1073, %v4165
  %4173 = vst [vmem:[%s19] sm:$0xff] %v2085
  %4174 = vst [vmem:[%s19 + $0x8] sm:$0xff] %v2087
  // Predicated region
  $region74: #{cvae_forward.1} parent=0 // pred_check
    _
  $region75: #{cvae_forward.1} parent=0 // pred_check_branch
    %4176 = sbr.rel (0) target = $region77
  $region76: #{cvae_forward.1} parent=0 // pred_region
    _
  $region77: #{cvae_forward.1} parent=0 // pred_fallthru
    _
  // Predicated region
  $region78: #{cvae_forward.1} parent=0 // pred_check
    _
  $region79: #{cvae_forward.1} parent=0 // pred_check_branch
    %4178 = sbr.rel (0) target = $region81
  $region80: #{cvae_forward.1} parent=0 // pred_region
    _
  $region81: #{cvae_forward.1} parent=0 // pred_fallthru
    _
  // Predicated region
  $region82: #{cvae_forward.1} parent=0 // pred_check
    _
  $region83: #{cvae_forward.1} parent=0 // pred_check_branch
    %4180 = sbr.rel (0) target = $region85
  $region84: #{cvae_forward.1} parent=0 // pred_region
    _
  $region85: #{cvae_forward.1} parent=0 // pred_fallthru
    _
  // Predicated region
  $region86: #{cvae_forward.1} parent=0 // pred_check
    _
  $region87: #{cvae_forward.1} parent=0 // pred_check_branch
    %4182 = sbr.rel (0) target = $region89
  $region88: #{cvae_forward.1} parent=0 // pred_region
    _
  $region89: #{cvae_forward.1} parent=0 // pred_fallthru
    _

</llo_original>
